<compile_context>
chip_gen: v6e
topology: v6e:2x2x1
jax: 0.10.0
libtpu: 0.0.40
codegen_flags: <defaults>
</compile_context>

<pallas_src>
import functools

import numpy as np
import jax
import jax.numpy as jnp
from jax.experimental import pallas as pl
from jax.experimental.pallas import tpu as pltpu


_EPS = 1e-5
_CONV_TILE_CAP = 256          # conv L-tile cap (double-buffered Ci=768 tiles fit
                              # comfortably under v7x's 64 MiB VMEM as well)
_EW_TILE_CAP = 512            # elementwise / 1x1-conv L-tile cap
_VMEM_LIMIT = 32 * 1024 * 1024


def _pick_tile(L, cap):
    """Largest multiple of 8 that divides L and is <= cap."""
    assert L % 8 == 0, f"sequence length {L} must be a multiple of 8"
    t = min(L, cap)
    while L % t:
        t -= 8
    return t


# ----------------------------- Pallas kernels ------------------------------ #

def _conv_stats_kernel(xa_ref, xb_ref, w_ref, sc_ref, sh_ref, y_ref, st_ref,
                       *, K, P, L_valid, apply_in_act, use_im2col):
    """One L-tile of Conv1d(ks=K, same zero-pad), batch folded into the matmul M.

    xa_ref : (N, T, Ci)  bf16  tile i of the zero-padded input
    xb_ref : (N, 8, Ci)  bf16  first 8 rows of tile i+1 (supplies the K-1 halo)
    w_ref  : (K, Ci, Co) bf16
    sc_ref, sh_ref : (1, Ci) f32  producer-BN scale/shift (used iff apply_in_act:
                                  the input is h = relu(x*scale + shift))
    y_ref  : (N, T, Co)  bf16  pre-BN conv output tile
    st_ref : (1, 2, Co)  f32   per-tile [sum, sum_of_squares] partial
    """
    i = pl.program_id(0)
    N, T, Ci = xa_ref.shape
    Co = w_ref.shape[2]
    halo = K - 1

    # (N, T + K - 1, Ci) window for this output tile.
    x_win = jnp.concatenate([xa_ref[...], xb_ref[:, :halo, :]], axis=1)

    if apply_in_act:
        # Fused BN+ReLU of the previous conv, applied on the fly.  Rows that land
        # in the zero padding must stay zero -> mask by global padded position.
        h = jnp.maximum(x_win.astype(jnp.float32) * sc_ref[...] + sh_ref[...], 0.0)
        pos = i * T + jax.lax.broadcasted_iota(jnp.int32, (1, T + halo, 1), 1)
        valid = (pos >= P) & (pos < P + L_valid)
        x_win = jnp.where(valid, h, 0.0).astype(jnp.bfloat16)

    if use_im2col:
        # Fold the K taps into the contraction: (N*T, K*Ci) @ (K*Ci, Co).
        cols = jnp.concatenate([x_win[:, k:k + T, :] for k in range(K)], axis=-1)
        acc = jnp.dot(cols.reshape(N * T, K * Ci),
                      w_ref[...].reshape(K * Ci, Co),
                      preferred_element_type=jnp.float32)
    else:
        acc = jnp.zeros((N * T, Co), jnp.float32)
        for k in range(K):
            acc = acc + jnp.dot(x_win[:, k:k + T, :].reshape(N * T, Ci),
                                w_ref[k],
                                preferred_element_type=jnp.float32)

    y_ref[...] = acc.reshape(N, T, Co).astype(y_ref.dtype)

    st_ref[...] = jnp.concatenate(
        [jnp.sum(acc, axis=0, keepdims=True),
         jnp.sum(acc * acc, axis=0, keepdims=True)], axis=0)[None]


def _bn_relu_kernel(y_ref, sc_ref, sh_ref, o_ref):
    """Elementwise y*scale + shift -> ReLU (per L-tile)."""
    o_ref[...] = jnp.maximum(
        y_ref[...].astype(jnp.float32) * sc_ref[...] + sh_ref[...], 0.0
    ).astype(o_ref.dtype)


def _conv1x1_kernel(x_ref, w_ref, b_ref, sc_ref, sh_ref, o_ref):
    """relu(x*scale + shift) -> pointwise conv with bias, lane-dense output."""
    N, T, Ci = x_ref.shape
    Cp = w_ref.shape[1]
    h = jnp.maximum(x_ref[...].astype(jnp.float32) * sc_ref[...] + sh_ref[...], 0.0)
    acc = jnp.dot(h.reshape(N * T, Ci).astype(jnp.bfloat16), w_ref[...],
                  preferred_element_type=jnp.float32) + b_ref[...]
    o_ref[...] = acc.reshape(N, T, Cp).astype(o_ref.dtype)


# ----------------------------- kernel wrappers ------------------------------ #

def conv_stats(x, w, in_scale=None, in_shift=None, apply_in_act=False):
    """Conv1d (same zero-pad, bias folded away by BN) on (N, L, Ci).

    Returns (pre-BN output (N, L, Co) bf16, stats (2, Co) f32 = [sum, sumsq]).
    If apply_in_act, the input is first normalized: relu(x*in_scale + in_shift).
    """
    N, L, Ci = x.shape
    K, Ci_w, Co = w.shape
    assert Ci_w == Ci
    P = (K - 1) // 2
    assert K - 1 <= 8, "halo BlockSpec assumes kernel_size <= 9"

    T = _pick_tile(L, _CONV_TILE_CAP)
    nt = L // T
    tb = T // 8
    Lpad = nt * T + 8
    # Zero-pad left by P and right up to Lpad (covers conv pad + halo slab).
    xp = jnp.pad(x.astype(jnp.bfloat16), ((0, 0), (P, Lpad - L - P), (0, 0)))

    if in_scale is None:
        in_scale = jnp.ones((1, Ci), jnp.float32)
        in_shift = jnp.zeros((1, Ci), jnp.float32)
    else:
        in_scale = in_scale.reshape(1, Ci).astype(jnp.float32)
        in_shift = in_shift.reshape(1, Ci).astype(jnp.float32)

    # im2col pays off when the per-tap contraction is small for the MXU.
    use_im2col = Ci < 128
    kernel = functools.partial(_conv_stats_kernel, K=K, P=P, L_valid=L,
                               apply_in_act=apply_in_act, use_im2col=use_im2col)

    flops = 2 * N * L * K * Ci * Co
    bytes_accessed = (N * Lpad * Ci * 2 + K * Ci * Co * 2
                      + N * L * Co * 2 + nt * 2 * Co * 4)

    y, st = pl.pallas_call(
        kernel,
        grid=(nt,),
        in_specs=[
            pl.BlockSpec((N, T, Ci), lambda i: (0, i, 0)),            # tile
            pl.BlockSpec((N, 8, Ci), lambda i: (0, (i + 1) * tb, 0)), # halo slab
            pl.BlockSpec((K, Ci, Co), lambda i: (0, 0, 0)),
            pl.BlockSpec((1, Ci), lambda i: (0, 0)),
            pl.BlockSpec((1, Ci), lambda i: (0, 0)),
        ],
        out_specs=[
            pl.BlockSpec((N, T, Co), lambda i: (0, i, 0)),
            pl.BlockSpec((1, 2, Co), lambda i: (i, 0, 0)),            # per-tile stats
        ],
        out_shape=[
            jax.ShapeDtypeStruct((N, L, Co), jnp.bfloat16),
            jax.ShapeDtypeStruct((nt, 2, Co), jnp.float32),
        ],
        compiler_params=pltpu.CompilerParams(
            dimension_semantics=("parallel",),    # every block distinct -> megacore OK
            vmem_limit_bytes=_VMEM_LIMIT),
        cost_estimate=pl.CostEstimate(flops=flops, transcendentals=0,
                                      bytes_accessed=bytes_accessed),
    )(xp, xp, w.astype(jnp.bfloat16), in_scale, in_shift)
    return y, jnp.sum(st, axis=0)


def _bn_scale_shift(st, gamma, beta, count, eps=_EPS):
    """Training-mode BN: biased batch stats from [sum, sumsq] -> scale/shift."""
    mean = st[0] / count
    var = jnp.maximum(st[1] / count - mean * mean, 0.0)
    scale = gamma * jax.lax.rsqrt(var + eps)
    shift = beta - mean * scale
    return scale.reshape(1, -1), shift.reshape(1, -1)


def bn_relu(y, scale, shift):
    N, L, Co = y.shape
    T = _pick_tile(L, _EW_TILE_CAP)
    nt = L // T
    return pl.pallas_call(
        _bn_relu_kernel,
        grid=(nt,),
        in_specs=[
            pl.BlockSpec((N, T, Co), lambda i: (0, i, 0)),
            pl.BlockSpec((1, Co), lambda i: (0, 0)),
            pl.BlockSpec((1, Co), lambda i: (0, 0)),
        ],
        out_specs=pl.BlockSpec((N, T, Co), lambda i: (0, i, 0)),
        out_shape=jax.ShapeDtypeStruct((N, L, Co), jnp.bfloat16),
        compiler_params=pltpu.CompilerParams(
            dimension_semantics=("parallel",),
            vmem_limit_bytes=_VMEM_LIMIT),
    )(y, scale.astype(jnp.float32), shift.astype(jnp.float32))


def conv1x1_final(x, w, b, in_scale, in_shift):
    """Fused relu(bn(x)) + final 1x1 conv; lane-dense 128-padded output,
    sliced to num_classes in the wrapper."""
    N, L, Ci = x.shape
    Co = w.shape[1]
    Cp = max(128, ((Co + 127) // 128) * 128)
    wp = jnp.zeros((Ci, Cp), jnp.float32).at[:, :Co].set(w).astype(jnp.bfloat16)
    bp = jnp.zeros((1, Cp), jnp.float32).at[:, :Co].set(b.reshape(1, Co))
    sc = in_scale.reshape(1, Ci).astype(jnp.float32)
    sh = in_shift.reshape(1, Ci).astype(jnp.float32)
    T = _pick_tile(L, _EW_TILE_CAP)
    nt = L // T
    out = pl.pallas_call(
        _conv1x1_kernel,
        grid=(nt,),
        in_specs=[
            pl.BlockSpec((N, T, Ci), lambda i: (0, i, 0)),
            pl.BlockSpec((Ci, Cp), lambda i: (0, 0)),
            pl.BlockSpec((1, Cp), lambda i: (0, 0)),
            pl.BlockSpec((1, Ci), lambda i: (0, 0)),
            pl.BlockSpec((1, Ci), lambda i: (0, 0)),
        ],
        out_specs=pl.BlockSpec((N, T, Cp), lambda i: (0, i, 0)),
        out_shape=jax.ShapeDtypeStruct((N, L, Cp), jnp.float32),
        compiler_params=pltpu.CompilerParams(
            dimension_semantics=("parallel",),
            vmem_limit_bytes=_VMEM_LIMIT),
    )(x.astype(jnp.bfloat16), wp, bp, sc, sh)
    return out[:, :, :Co]


# ----------------------------- plain-JAX glue ------------------------------- #

def maxpool2(x):
    # nn.MaxPool1d(2): (N, L, C) -> (N, L//2, C)
    N, L, C = x.shape
    return jnp.max(x.reshape(N, L // 2, 2, C), axis=2)


def upsample_linear_x2(x):
    # nn.Upsample(scale_factor=2, mode='linear', align_corners=False)
    N, L, C = x.shape
    Lout = 2 * L
    j = np.arange(Lout, dtype=np.float64)
    src = np.maximum((j + 0.5) * 0.5 - 0.5, 0.0)
    i0 = np.minimum(np.floor(src).astype(np.int32), L - 1)
    i1 = np.minimum(i0 + 1, L - 1)
    lam = jnp.asarray((src - i0).astype(np.float32))[None, :, None]
    x0 = jnp.take(x, jnp.asarray(i0), axis=1).astype(jnp.float32)
    x1 = jnp.take(x, jnp.asarray(i1), axis=1).astype(jnp.float32)
    return (x0 * (1.0 - lam) + x1 * lam).astype(x.dtype)


# ------------------------ parameter initialization -------------------------- #

def _init_conv(key, ci, co, k):
    kw, kb = jax.random.split(key)
    bound = 1.0 / np.sqrt(ci * k)
    w = jax.random.uniform(kw, (co, ci, k), jnp.float32, -bound, bound)
    b = jax.random.uniform(kb, (co,), jnp.float32, -bound, bound)
    return jnp.transpose(w, (2, 1, 0)), b          # -> (K, Ci, Co)


def _init_vgg(key, ci, mid, co, ks=7):
    k1, k2 = jax.random.split(key)
    w1, b1 = _init_conv(k1, ci, mid, ks)
    w2, b2 = _init_conv(k2, mid, co, ks)
    # b1/b2 are kept for fidelity with nn.Conv1d but are not passed to the
    # kernels: training-mode BatchNorm right after each conv cancels them exactly.
    return dict(
        w1=w1, b1=b1, g1=jnp.ones((mid,), jnp.float32), be1=jnp.zeros((mid,), jnp.float32),
        w2=w2, b2=b2, g2=jnp.ones((co,), jnp.float32), be2=jnp.zeros((co,), jnp.float32),
    )


def init_unet_params(key, num_classes, input_channels=3):
    nb = [32, 64, 128, 256, 512]
    keys = jax.random.split(key, 10)
    params = {
        "c0_0": _init_vgg(keys[0], input_channels, nb[0], nb[0]),
        "c1_0": _init_vgg(keys[1], nb[0], nb[1], nb[1]),
        "c2_0": _init_vgg(keys[2], nb[1], nb[2], nb[2]),
        "c3_0": _init_vgg(keys[3], nb[2], nb[3], nb[3]),
        "c4_0": _init_vgg(keys[4], nb[3], nb[4], nb[4]),
        "c3_1": _init_vgg(keys[5], nb[3] + nb[4], nb[3], nb[3]),
        "c2_2": _init_vgg(keys[6], nb[2] + nb[3], nb[2], nb[2]),
        "c1_3": _init_vgg(keys[7], nb[1] + nb[2], nb[1], nb[1]),
        "c0_4": _init_vgg(keys[8], nb[0] + nb[1], nb[0], nb[0]),
    }
    wf, bf = _init_conv(keys[9], nb[0], num_classes, 1)
    params["final_w"] = wf[0]      # (Ci, num_classes)
    params["final_b"] = bf
    return params


# ------------------------------ model forward ------------------------------- #

def vgg_block_pre(p, x):
    """Conv->BN->ReLU->Conv with training-mode batch statistics.

    Returns (pre-BN conv2 output, bn2 scale, bn2 shift) so the caller can fuse
    the final BN+ReLU into its consumer."""
    N, L, _ = x.shape
    cnt = float(N * L)
    y1, st1 = conv_stats(x, p["w1"])
    sc1, sh1 = _bn_scale_shift(st1, p["g1"], p["be1"], cnt)
    # bn1 + ReLU is fused into conv2's input path (apply_in_act=True).
    y2, st2 = conv_stats(y1, p["w2"], in_scale=sc1, in_shift=sh1, apply_in_act=True)
    sc2, sh2 = _bn_scale_shift(st2, p["g2"], p["be2"], cnt)
    return y2, sc2, sh2


def vgg_block(p, x):
    y2, sc2, sh2 = vgg_block_pre(p, x)
    return bn_relu(y2, sc2, sh2)


def unet_forward(params, x_ncl):
    # x_ncl: PyTorch-convention (N, C, L)
    x = jnp.transpose(x_ncl, (0, 2, 1)).astype(jnp.bfloat16)   # -> (N, L, C)

    x0_0 = vgg_block(params["c0_0"], x)
    x1_0 = vgg_block(params["c1_0"], maxpool2(x0_0))
    x2_0 = vgg_block(params["c2_0"], maxpool2(x1_0))
    x3_0 = vgg_block(params["c3_0"], maxpool2(x2_0))
    x4_0 = vgg_block(params["c4_0"], maxpool2(x3_0))

    x3_1 = vgg_block(params["c3_1"],
                     jnp.concatenate([x3_0, upsample_linear_x2(x4_0)], axis=-1))
    x2_2 = vgg_block(params["c2_2"],
                     jnp.concatenate([x2_0, upsample_linear_x2(x3_1)], axis=-1))
    x1_3 = vgg_block(params["c1_3"],
                     jnp.concatenate([x1_0, upsample_linear_x2(x2_2)], axis=-1))

    # Last decoder block: its bn2+ReLU is fused into the final 1x1 conv kernel,
    # so the largest decoder activation never makes an extra HBM round trip.
    y0_4, sc, sh = vgg_block_pre(params["c0_4"],
                                 jnp.concatenate([x0_0, upsample_linear_x2(x1_3)],
                                                 axis=-1))
    out = conv1x1_final(y0_4, params["final_w"], params["final_b"], sc, sh)
    return jnp.transpose(out, (0, 2, 1))            # back to (N, num_classes, L)


# --------------------------- reference (sanity) ------------------------------ #

def _ref_conv_bn_relu(x, w, b, g, be, eps=_EPS):
    """Pure-JAX reference for Conv1d(with bias)+BN(train)+ReLU; inputs/weights are
    bf16-rounded to mirror the kernels' dtype policy (accumulation in f32)."""
    xb = x.astype(jnp.bfloat16).astype(jnp.float32)
    wb = w.astype(jnp.bfloat16).astype(jnp.float32)
    N, L, Ci = x.shape
    K = w.shape[0]
    P = (K - 1) // 2
    xp = jnp.pad(xb, ((0, 0), (P, P), (0, 0)))
    y = sum(jnp.einsum("nlc,cd->nld", xp[:, k:k + L, :], wb[k]) for k in range(K)) + b
    m = jnp.mean(y, axis=(0, 1))
    v = jnp.mean((y - m) ** 2, axis=(0, 1))
    return jnp.maximum((y - m) * (g / jnp.sqrt(v + eps)) + be, 0.0)


# ---------------------------------- main ------------------------------------ #

if __name__ == "__main__":
    NUM_CLASSES = 5
    N, C_IN, L = 2, 3, 512    # L must be a multiple of 128 (4 pools x 8-row tiles)

    key = jax.random.PRNGKey(0)
    k_par, k_x = jax.random.split(key)
    params = init_unet_params(k_par, NUM_CLASSES, input_channels=C_IN)
    x = jax.random.normal(k_x, (N, C_IN, L), jnp.float32)   # PyTorch NCL input

    # Sanity check: first Conv+BN+ReLU (also demonstrates that the conv bias is
    # cancelled by training-mode BN — the reference includes it, the kernel not).
    x_nlc = jnp.transpose(x, (0, 2, 1))
    p0 = params["c0_0"]
    y1, st1 = conv_stats(x_nlc, p0["w1"])
    sc1, sh1 = _bn_scale_shift(st1, p0["g1"], p0["be1"], float(N * L))
    got = bn_relu(y1, sc1, sh1).astype(jnp.float32)
    ref = _ref_conv_bn_relu(x_nlc, p0["w1"], p0["b1"], p0["g1"], p0["be1"])
    np.testing.assert_allclose(np.asarray(got), np.asarray(ref), atol=2e-2, rtol=2e-2)

    # Full forward pass.
    fwd = jax.jit(unet_forward)
    out = jax.block_until_ready(fwd(params, x))
    assert out.shape == (N, NUM_CLASSES, L), out.shape
    assert bool(jnp.all(jnp.isfinite(out)))
    print("KERNEL_OK")
</pallas_src>

<mosaic_0001>
module attributes {stable_mosaic.version = 11 : i64} {
  func.func @_conv_stats_kernel(%arg0: i32, %arg1: memref<2x256x3xbf16, #tpu.memory_space<vmem>>, %arg2: memref<2x8x3xbf16, #tpu.memory_space<vmem>>, %arg3: memref<7x3x32xbf16, #tpu.memory_space<vmem>>, %arg4: memref<1x3xf32, #tpu.memory_space<vmem>>, %arg5: memref<1x3xf32, #tpu.memory_space<vmem>>, %arg6: memref<2x256x32xbf16, #tpu.memory_space<vmem>>, %arg7: memref<1x2x32xf32, #tpu.memory_space<vmem>>) attributes {dimension_semantics = [#tpu.dimension_semantics<parallel>], iteration_bounds = array<i64: 2>, scalar_prefetch = 0 : i64, scratch_operands = 0 : i64, tpu.core_type = #tpu.core_type<tc>, window_params = [{transform_indices = @transform_0, window_bounds = array<i64: 2, 256, 3>}, {transform_indices = @transform_1, window_bounds = array<i64: 2, 8, 3>}, {pipeline_mode = #tpu.pipeline_mode<synchronous>, transform_indices = @transform_2, window_bounds = array<i64: 7, 3, 32>}, {pipeline_mode = #tpu.pipeline_mode<synchronous>, transform_indices = @transform_3, window_bounds = array<i64: 1, 3>}, {pipeline_mode = #tpu.pipeline_mode<synchronous>, transform_indices = @transform_4, window_bounds = array<i64: 1, 3>}, {transform_indices = @transform_5, window_bounds = array<i64: 2, 256, 32>}, {transform_indices = @transform_6, window_bounds = array<i64: 1, 2, 32>}]} {
    %c0 = arith.constant 0 : index
    %c0_0 = arith.constant 0 : index
    %c0_1 = arith.constant 0 : index
    %0 = vector.load %arg1[%c0, %c0_0, %c0_1] : memref<2x256x3xbf16, #tpu.memory_space<vmem>>, vector<2x256x3xbf16>
    %c0_2 = arith.constant 0 : index
    %c0_3 = arith.constant 0 : index
    %c0_4 = arith.constant 0 : index
    %1 = vector.load %arg2[%c0_2, %c0_3, %c0_4] : memref<2x8x3xbf16, #tpu.memory_space<vmem>>, vector<2x6x3xbf16>
    %2 = tpu.concatenate %0, %1 in 1 : vector<2x256x3xbf16>, vector<2x6x3xbf16> -> vector<2x262x3xbf16>
    %3 = vector.extract_strided_slice %2 {offsets = [0, 0, 0], sizes = [2, 256, 3], strides = [1, 1, 1]} : vector<2x262x3xbf16> to vector<2x256x3xbf16>
    %4 = vector.extract_strided_slice %2 {offsets = [0, 1, 0], sizes = [2, 256, 3], strides = [1, 1, 1]} : vector<2x262x3xbf16> to vector<2x256x3xbf16>
    %5 = vector.extract_strided_slice %2 {offsets = [0, 2, 0], sizes = [2, 256, 3], strides = [1, 1, 1]} : vector<2x262x3xbf16> to vector<2x256x3xbf16>
    %6 = vector.extract_strided_slice %2 {offsets = [0, 3, 0], sizes = [2, 256, 3], strides = [1, 1, 1]} : vector<2x262x3xbf16> to vector<2x256x3xbf16>
    %7 = vector.extract_strided_slice %2 {offsets = [0, 4, 0], sizes = [2, 256, 3], strides = [1, 1, 1]} : vector<2x262x3xbf16> to vector<2x256x3xbf16>
    %8 = vector.extract_strided_slice %2 {offsets = [0, 5, 0], sizes = [2, 256, 3], strides = [1, 1, 1]} : vector<2x262x3xbf16> to vector<2x256x3xbf16>
    %9 = vector.extract_strided_slice %2 {offsets = [0, 6, 0], sizes = [2, 256, 3], strides = [1, 1, 1]} : vector<2x262x3xbf16> to vector<2x256x3xbf16>
    %10 = tpu.concatenate %3, %4, %5, %6, %7, %8, %9 in 2 : vector<2x256x3xbf16>, vector<2x256x3xbf16>, vector<2x256x3xbf16>, vector<2x256x3xbf16>, vector<2x256x3xbf16>, vector<2x256x3xbf16>, vector<2x256x3xbf16> -> vector<2x256x21xbf16>
    %11 = vector.shape_cast %10 : vector<2x256x21xbf16> to vector<512x21xbf16>
    %c0_5 = arith.constant 0 : index
    %c0_6 = arith.constant 0 : index
    %c0_7 = arith.constant 0 : index
    %12 = vector.load %arg3[%c0_5, %c0_6, %c0_7] : memref<7x3x32xbf16, #tpu.memory_space<vmem>>, vector<7x3x32xbf16>
    %13 = vector.shape_cast %12 : vector<7x3x32xbf16> to vector<21x32xbf16>
    %cst = arith.constant dense<0.000000e+00> : vector<512x32xf32>
    %14 = tpu.matmul %11, %13, %cst {dimension_numbers = #tpu.dot_dimension_numbers<[1], [0], [0], [1], [0, 0, 1, 1], [], []>} : vector<512x21xbf16>, vector<21x32xbf16>, vector<512x32xf32> -> vector<512x32xf32>
    %15 = vector.shape_cast %14 : vector<512x32xf32> to vector<2x256x32xf32>
    %16 = arith.truncf %15 : vector<2x256x32xf32> to vector<2x256x32xbf16>
    %c0_8 = arith.constant 0 : index
    %c0_9 = arith.constant 0 : index
    %c0_10 = arith.constant 0 : index
    %17 = vector.load %arg6[%c0_8, %c0_9, %c0_10] : memref<2x256x32xbf16, #tpu.memory_space<vmem>>, vector<2x256x32xbf16>
    tpu.vector_store %arg6[%c0_8, %c0_9, %c0_10], %16 {strides = array<i32>} : memref<2x256x32xbf16, #tpu.memory_space<vmem>>, vector<2x256x32xbf16>,
    %cst_11 = arith.constant dense<0.000000e+00> : vector<32xf32>
    %18 = vector.multi_reduction <add>, %14, %cst_11 [0] : vector<512x32xf32> to vector<32xf32>
    %19 = vector.shape_cast %18 : vector<32xf32> to vector<1x32xf32>
    %20 = arith.mulf %14, %14 : vector<512x32xf32>
    %cst_12 = arith.constant dense<0.000000e+00> : vector<32xf32>
    %21 = vector.multi_reduction <add>, %20, %cst_12 [0] : vector<512x32xf32> to vector<32xf32>
    %22 = vector.shape_cast %21 : vector<32xf32> to vector<1x32xf32>
    %23 = tpu.concatenate %19, %22 in 0 : vector<1x32xf32>, vector<1x32xf32> -> vector<2x32xf32>
    %24 = vector.shape_cast %23 : vector<2x32xf32> to vector<1x2x32xf32>
    %c0_13 = arith.constant 0 : index
    %c0_14 = arith.constant 0 : index
    %c0_15 = arith.constant 0 : index
    %25 = vector.load %arg7[%c0_13, %c0_14, %c0_15] : memref<1x2x32xf32, #tpu.memory_space<vmem>>, vector<1x2x32xf32>
    tpu.vector_store %arg7[%c0_13, %c0_14, %c0_15], %24 {strides = array<i32>} : memref<1x2x32xf32, #tpu.memory_space<vmem>>, vector<1x2x32xf32>,
    return
  }
  func.func @transform_0(%arg0: i32) -> (i32, i32, i32) {
    %c0_i32 = arith.constant 0 : i32
    %c0_i32_0 = arith.constant 0 : i32
    %c0_i32_1 = arith.constant 0 : i32
    return %c0_i32, %arg0, %c0_i32_0 : i32, i32, i32
  }
  func.func @transform_1(%arg0: i32) -> (i32, i32, i32) {
    %c1_i32 = arith.constant 1 : i32
    %0 = arith.addi %arg0, %c1_i32 : i32
    %c32_i32 = arith.constant 32 : i32
    %1 = arith.muli %0, %c32_i32 : i32
    %c0_i32 = arith.constant 0 : i32
    %c0_i32_0 = arith.constant 0 : i32
    %c0_i32_1 = arith.constant 0 : i32
    return %c0_i32, %1, %c0_i32_0 : i32, i32, i32
  }
  func.func @transform_2(%arg0: i32) -> (i32, i32, i32) {
    %c0_i32 = arith.constant 0 : i32
    %c0_i32_0 = arith.constant 0 : i32
    %c0_i32_1 = arith.constant 0 : i32
    %c0_i32_2 = arith.constant 0 : i32
    return %c0_i32, %c0_i32_0, %c0_i32_1 : i32, i32, i32
  }
  func.func @transform_3(%arg0: i32) -> (i32, i32) {
    %c0_i32 = arith.constant 0 : i32
    %c0_i32_0 = arith.constant 0 : i32
    %c0_i32_1 = arith.constant 0 : i32
    return %c0_i32, %c0_i32_0 : i32, i32
  }
  func.func @transform_4(%arg0: i32) -> (i32, i32) {
    %c0_i32 = arith.constant 0 : i32
    %c0_i32_0 = arith.constant 0 : i32
    %c0_i32_1 = arith.constant 0 : i32
    return %c0_i32, %c0_i32_0 : i32, i32
  }
  func.func @transform_5(%arg0: i32) -> (i32, i32, i32) {
    %c0_i32 = arith.constant 0 : i32
    %c0_i32_0 = arith.constant 0 : i32
    %c0_i32_1 = arith.constant 0 : i32
    return %c0_i32, %arg0, %c0_i32_0 : i32, i32, i32
  }
  func.func @transform_6(%arg0: i32) -> (i32, i32, i32) {
    %c0_i32 = arith.constant 0 : i32
    %c0_i32_0 = arith.constant 0 : i32
    %c0_i32_1 = arith.constant 0 : i32
    return %arg0, %c0_i32, %c0_i32_0 : i32, i32, i32
  }
}

</mosaic_0001>

<llo_original>
// kernel: tpu_custom_call.1
$region0: #{tpu_custom_call.1}
  #allocation0 [shape = 'u32[]', space=smem, size = 0x4, offset = 0x4, fixed_abs, tag = 'smem constant byte address 0x4 - core index']
  #allocation1 [shape = 'u32[144,128]{1,0:T(1,128)}', space=vmem, size = 0x12000, scoped, tag = 'internal scratch']
  %s0 = inlined_call_operand.vmem [shape: bf16[2,520,3], index: 0, kind: input, shape index: {}]
  %s1 = inlined_call_operand.vmem [shape: bf16[2,520,3], index: 1, kind: input, shape index: {}]
  %s2 = inlined_call_operand.vmem [shape: bf16[7,3,32], index: 2, kind: input, shape index: {}]
  %s3 = inlined_call_operand.vmem [shape: f32[1,3], index: 3, kind: input, shape index: {}]
  %s4 = inlined_call_operand.vmem [shape: f32[1,3], index: 4, kind: input, shape index: {}]
  %s5 = inlined_call_operand.vmem [shape: bf16[2,512,32], index: 5, kind: output, shape index: {0}]
  %s6 = inlined_call_operand.hbm [shape: f32[2,2,32], index: 6, kind: output, shape index: {1}]
  %7 = xla_tuple %s5, %s6
  %s8 = sld [smem:[#allocation0]]
  $region201: #{tpu_custom_call.1} parent=0
    _
  %s10 = ssub.s32 1, %s8
  %s11 = scalar_select 0, %s10, %s8
  $region1: #{tpu_custom_call.1} parent=0
    #allocation2 [shape = 'u8[262144]{0}', space=vmem, size = 0x40000, scoped, tag = 'input window, operand 0']
    #allocation3 [shape = 'u8[8192]{0}', space=vmem, size = 0x2000, scoped, tag = 'input window, operand 1']
    #allocation4 [shape = 'u8[262144]{0}', space=vmem, size = 0x40000, scoped, tag = 'output window, operand 0']
    #allocation5 [shape = 'u8[2048]{0}', space=vmem, size = 0x800, scoped, tag = 'output window, operand 1']
    #allocation6 [shape = 's32[2]{0}', space=sflag, size = 0x8, scoped, tag = 'scoped memory for tpu_custom_call.1']
    %12 = vsyncpa [#allocation6], 0
    %s13 = scalar_lea.sflag [#allocation6], 1
    %14 = vsyncpa %s13, 0
    loop: start=0, step=1, limit=4
    $region2: #{tpu_custom_call.1} parent=1 // loop_pre_header
      _
    $region3: #{tpu_custom_call.1} parent=1 // loop_header
      %s16 = sphi 0, %s20
      %p17 = scmp.ge.s32.totalorder %s16, 4
      %s26 = sphi 0, %s28
      %s29 = sphi 0, %s26
      %s30 = sphi 0, %s29
      %s46 = sphi 0, %s30
      %s56 = sphi 0, %s58
      %s59 = sphi 0, %s56
      %s60 = sphi 0, %s59
      %s76 = sphi 0, %s60
      %s80 = sphi 0, %s80
      %s82 = sphi 0, %s80
      %s83 = sphi 0, %s82
      %s97 = sphi 0, %s83
      %s101 = sphi 0, %s101
      %s103 = sphi 0, %s101
      %s104 = sphi 0, %s103
      %s118 = sphi 0, %s104
      %s122 = sphi 0, %s122
      %s124 = sphi 0, %s122
      %s125 = sphi 0, %s124
      %s139 = sphi 0, %s125
      %s145 = sphi 0, %s147
      %s148 = sphi 0, %s145
      %s149 = sphi 0, %s148
      %s165 = sphi 0, %s149
      %s171 = sphi 0, %s173
      %s174 = sphi 0, %s171
      %s175 = sphi 0, %s174
      %s191 = sphi 0, %s175
    $region4: #{tpu_custom_call.1} parent=1 // loop_header_branch
      %19 = sbr.rel (%p17) target = $region8
    $region5: #{tpu_custom_call.1} parent=1 // loop_body
      %s21 = ssub.s32 %s16, 1
      %s22 = ssub.s32 %s16, 2
      %s23 = sadd.s32 %s16, 1
      %s24 = ssub.s32 %s16, %s23
      %p25 = scmp.eq.s32.totalorder %s24, 0
      %s27 = sadd.s32 %s26, 1
      %s28 = scalar_select %p25, %s26, %s27
      %p31 = pneg %p25
      %p32 = scmp.eq.s32.totalorder %s16, 1
      %p33 = por %p31, %p32
      %p34 = scmp.ne.s32.totalorder %s26, %s29
      %p35 = scmp.eq.s32.totalorder %s16, 0
      %p36 = por %p34, %p35
      %p37 = scmp.ne.s32.totalorder %s26, %s29
      %p38 = scmp.eq.s32.totalorder %s21, 1
      %p39 = por %p37, %p38
      %p40 = scmp.ne.s32.totalorder %s29, %s30
      %p41 = scmp.eq.s32.totalorder %s21, 0
      %p42 = por %p40, %p41
      %p43 = scmp.ne.s32.totalorder %s29, %s30
      %p44 = scmp.eq.s32.totalorder %s22, 1
      %p45 = por %p43, %p44
      %p47 = scmp.ne.s32.totalorder %s30, %s46
      %p48 = scmp.eq.s32.totalorder %s22, 0
      %p49 = por %p47, %p48
      %s50 = sadd.s32 %s16, 1
      %s51 = smul.u32 %s50, 32
      %s52 = sadd.s32 %s23, 1
      %s53 = smul.u32 %s52, 32
      %s54 = ssub.s32 %s51, %s53
      %p55 = scmp.eq.s32.totalorder %s54, 0
      %s57 = sadd.s32 %s56, 1
      %s58 = scalar_select %p55, %s56, %s57
      %p61 = pneg %p55
      %p62 = scmp.eq.s32.totalorder %s16, 1
      %p63 = por %p61, %p62
      %p64 = scmp.ne.s32.totalorder %s56, %s59
      %p65 = scmp.eq.s32.totalorder %s16, 0
      %p66 = por %p64, %p65
      %p67 = scmp.ne.s32.totalorder %s56, %s59
      %p68 = scmp.eq.s32.totalorder %s21, 1
      %p69 = por %p67, %p68
      %p70 = scmp.ne.s32.totalorder %s59, %s60
      %p71 = scmp.eq.s32.totalorder %s21, 0
      %p72 = por %p70, %p71
      %p73 = scmp.ne.s32.totalorder %s59, %s60
      %p74 = scmp.eq.s32.totalorder %s22, 1
      %p75 = por %p73, %p74
      %p77 = scmp.ne.s32.totalorder %s60, %s76
      %p78 = scmp.eq.s32.totalorder %s22, 0
      %p79 = por %p77, %p78
      %s81 = sadd.s32 %s80, 1
      %p84 = scmp.eq.s32.totalorder %s16, 1
      %p85 = scmp.ne.s32.totalorder %s80, %s82
      %p86 = scmp.eq.s32.totalorder %s16, 0
      %p87 = por %p85, %p86
      %p88 = scmp.ne.s32.totalorder %s80, %s82
      %p89 = scmp.eq.s32.totalorder %s21, 1
      %p90 = por %p88, %p89
      %p91 = scmp.ne.s32.totalorder %s82, %s83
      %p92 = scmp.eq.s32.totalorder %s21, 0
      %p93 = por %p91, %p92
      %p94 = scmp.ne.s32.totalorder %s82, %s83
      %p95 = scmp.eq.s32.totalorder %s22, 1
      %p96 = por %p94, %p95
      %p98 = scmp.ne.s32.totalorder %s83, %s97
      %p99 = scmp.eq.s32.totalorder %s22, 0
      %p100 = por %p98, %p99
      %s102 = sadd.s32 %s101, 1
      %p105 = scmp.eq.s32.totalorder %s16, 1
      %p106 = scmp.ne.s32.totalorder %s101, %s103
      %p107 = scmp.eq.s32.totalorder %s16, 0
      %p108 = por %p106, %p107
      %p109 = scmp.ne.s32.totalorder %s101, %s103
      %p110 = scmp.eq.s32.totalorder %s21, 1
      %p111 = por %p109, %p110
      %p112 = scmp.ne.s32.totalorder %s103, %s104
      %p113 = scmp.eq.s32.totalorder %s21, 0
      %p114 = por %p112, %p113
      %p115 = scmp.ne.s32.totalorder %s103, %s104
      %p116 = scmp.eq.s32.totalorder %s22, 1
      %p117 = por %p115, %p116
      %p119 = scmp.ne.s32.totalorder %s104, %s118
      %p120 = scmp.eq.s32.totalorder %s22, 0
      %p121 = por %p119, %p120
      %s123 = sadd.s32 %s122, 1
      %p126 = scmp.eq.s32.totalorder %s16, 1
      %p127 = scmp.ne.s32.totalorder %s122, %s124
      %p128 = scmp.eq.s32.totalorder %s16, 0
      %p129 = por %p127, %p128
      %p130 = scmp.ne.s32.totalorder %s122, %s124
      %p131 = scmp.eq.s32.totalorder %s21, 1
      %p132 = por %p130, %p131
      %p133 = scmp.ne.s32.totalorder %s124, %s125
      %p134 = scmp.eq.s32.totalorder %s21, 0
      %p135 = por %p133, %p134
      %p136 = scmp.ne.s32.totalorder %s124, %s125
      %p137 = scmp.eq.s32.totalorder %s22, 1
      %p138 = por %p136, %p137
      %p140 = scmp.ne.s32.totalorder %s125, %s139
      %p141 = scmp.eq.s32.totalorder %s22, 0
      %p142 = por %p140, %p141
      %s143 = ssub.s32 %s16, %s23
      %p144 = scmp.eq.s32.totalorder %s143, 0
      %s146 = sadd.s32 %s145, 1
      %s147 = scalar_select %p144, %s145, %s146
      %p150 = pneg %p144
      %p151 = scmp.eq.s32.totalorder %s16, 1
      %p152 = por %p150, %p151
      %p153 = scmp.ne.s32.totalorder %s145, %s148
      %p154 = scmp.eq.s32.totalorder %s16, 0
      %p155 = por %p153, %p154
      %p156 = scmp.ne.s32.totalorder %s145, %s148
      %p157 = scmp.eq.s32.totalorder %s21, 1
      %p158 = por %p156, %p157
      %p159 = scmp.ne.s32.totalorder %s148, %s149
      %p160 = scmp.eq.s32.totalorder %s21, 0
      %p161 = por %p159, %p160
      %p162 = scmp.ne.s32.totalorder %s148, %s149
      %p163 = scmp.eq.s32.totalorder %s22, 1
      %p164 = por %p162, %p163
      %p166 = scmp.ne.s32.totalorder %s149, %s165
      %p167 = scmp.eq.s32.totalorder %s22, 0
      %p168 = por %p166, %p167
      %s169 = ssub.s32 %s16, %s23
      %p170 = scmp.eq.s32.totalorder %s169, 0
      %s172 = sadd.s32 %s171, 1
      %s173 = scalar_select %p170, %s171, %s172
      %p176 = pneg %p170
      %p177 = scmp.eq.s32.totalorder %s16, 1
      %p178 = por %p176, %p177
      %p179 = scmp.ne.s32.totalorder %s171, %s174
      %p180 = scmp.eq.s32.totalorder %s16, 0
      %p181 = por %p179, %p180
      %p182 = scmp.ne.s32.totalorder %s171, %s174
      %p183 = scmp.eq.s32.totalorder %s21, 1
      %p184 = por %p182, %p183
      %p185 = scmp.ne.s32.totalorder %s174, %s175
      %p186 = scmp.eq.s32.totalorder %s21, 0
      %p187 = por %p185, %p186
      %p188 = scmp.ne.s32.totalorder %s174, %s175
      %p189 = scmp.eq.s32.totalorder %s22, 1
      %p190 = por %p188, %p189
      %p192 = scmp.ne.s32.totalorder %s175, %s191
      %p193 = scmp.eq.s32.totalorder %s22, 0
      %p194 = por %p192, %p193
      %p195 = scmp.le.s32.totalorder 1, %s16
      %p196 = scmp.lt.s32.totalorder %s16, 3
      %p197 = pnand %p195, %p196
      %p198 = pneg %p197
      // Predicated region
      $region9: #{tpu_custom_call.1} parent=5 // pred_check
        _
      $region10: #{tpu_custom_call.1} parent=5 // pred_check_branch
        %200 = sbr.rel (%p197) target = $region12
      $region11: #{tpu_custom_call.1} parent=5 // pred_region
        %s201 = ssub.s32 %s16, 1
        // Predicated region
        $region13: #{tpu_custom_call.1} parent=11 // pred_check
          %p202 = pneg %p93
        $region14: #{tpu_custom_call.1} parent=11 // pred_check_branch
          %204 = sbr.rel (%p202) target = $region16
        $region15: #{tpu_custom_call.1} parent=11 // pred_region
          _
        $region16: #{tpu_custom_call.1} parent=11 // pred_fallthru
          _
        // Predicated region
        $region17: #{tpu_custom_call.1} parent=11 // pred_check
          %p205 = pneg %p114
        $region18: #{tpu_custom_call.1} parent=11 // pred_check_branch
          %207 = sbr.rel (%p205) target = $region20
        $region19: #{tpu_custom_call.1} parent=11 // pred_region
          _
        $region20: #{tpu_custom_call.1} parent=11 // pred_fallthru
          _
        // Predicated region
        $region21: #{tpu_custom_call.1} parent=11 // pred_check
          %p208 = pneg %p135
        $region22: #{tpu_custom_call.1} parent=11 // pred_check_branch
          %210 = sbr.rel (%p208) target = $region24
        $region23: #{tpu_custom_call.1} parent=11 // pred_region
          _
        $region24: #{tpu_custom_call.1} parent=11 // pred_fallthru
          _
      $region12: #{tpu_custom_call.1} parent=5 // pred_fallthru
        _
      %p211 = scmp.lt.s32.totalorder %s16, 2
      // Predicated region
      $region25: #{tpu_custom_call.1} parent=5 // pred_check
        %p212 = pneg %p211
      $region26: #{tpu_custom_call.1} parent=5 // pred_check_branch
        %214 = sbr.rel (%p212) target = $region28
      $region27: #{tpu_custom_call.1} parent=5 // pred_region
        // Predicated region
        $region29: #{tpu_custom_call.1} parent=27 // pred_check
          %p215 = pneg %p36
        $region30: #{tpu_custom_call.1} parent=27 // pred_check_branch
          %217 = sbr.rel (%p215) target = $region32
        $region31: #{tpu_custom_call.1} parent=27 // pred_region
          %s218 = sand.u32 %s26, 1
          %s219 = sand.u32 %s26, 1
          %s220 = smul.addr %s219, 256
          %s221 = scalar_lea.vmem [#allocation2], %s220
          %s222 = smul.u32 32, %s16
          %s223 = ssub.s32 65, %s222
          %p224 = scmp.lt.s32.totalorder %s223, 32
          %s225 = scalar_select %p224, %s223, 32
          %s226 = smul.u32 128, %s225
          %p227 = scmp.ne.s32.totalorder 0, %s226
          %s228 = smul.addr %s222, 4
          %s229 = scalar_lea.vmem %s0, %s228
          // Predicated region
          $region33: #{tpu_custom_call.1} parent=31 // pred_check
            %p230 = pneg %p227
          $region34: #{tpu_custom_call.1} parent=31 // pred_check_branch
            %232 = sbr.rel (%p230) target = $region36
          $region35: #{tpu_custom_call.1} parent=31 // pred_region
            // Predicated region
            $region37: #{tpu_custom_call.1} parent=35 // pred_check
              _
            $region38: #{tpu_custom_call.1} parent=35 // pred_check_branch
              %234 = sbr.rel target = $region40
            $region39: #{tpu_custom_call.1} parent=35 // pred_region
              // Predicated region
              $region59: #{tpu_custom_call.1} parent=39 // pred_check
                _
              $region60: #{tpu_custom_call.1} parent=39 // pred_check_branch
                %412 = sbr.rel (0) target = $region62
              $region61: #{tpu_custom_call.1} parent=39 // pred_region
                %s413 = sshrl.u32 %s225, 5
                // While loop
                $region63: #{tpu_custom_call.1} parent=61 // loop_pre_header
                  _
                $region64: #{tpu_custom_call.1} parent=61 // loop_header
                  %s415 = sphi 0, %s417
                  %p416 = scmp.ge.s32.totalorder %s415, %s413
                  %s420 = sphi 0, %s425
                  %s421 = sphi %s229, %s428
                  %s422 = sphi %s221, %s429
                $region65: #{tpu_custom_call.1} parent=61 // loop_header_branch
                  %419 = sbr.rel (%p416) target = $region69
                $region66: #{tpu_custom_call.1} parent=61 // loop_body
                  %s423 = sadd.s32 1, %s420
                  %p424 = scmp.ge.s32.totalorder %s423, %s413
                  %s425 = scalar_select %p424, 0, %s423
                  %s426 = smul.u32 %s425, 128
                  %s427 = smul.u32 %s425, 128
                  %s428 = scalar_lea.vmem %s229, %s426
                  %s429 = scalar_lea.vmem %s221, %s427 [#allocation2]
                $region67: #{tpu_custom_call.1} parent=61 // loop_footer
                  %s417 = sadd.s32 %s415, 1
                $region68: #{tpu_custom_call.1} parent=61 // loop_footer_branch
                  %414 = sbr.rel target = $region64
                $region69: #{tpu_custom_call.1} parent=61 // loop_exit
                  _
                %s430 = sshrl.u32 %s225, 5
                %s431 = sand.u32 %s225, 31
                %s432 = smul.u32 %s430, 32
                %s433 = smul.u32 4, %s432
                %s434 = scalar_lea.vmem %s229, %s433
                %s435 = smul.u32 4, %s432
                %s436 = scalar_lea.vmem %s221, %s435 [#allocation2]
                // While loop
                $region70: #{tpu_custom_call.1} parent=61 // loop_pre_header
                  _
                $region71: #{tpu_custom_call.1} parent=61 // loop_header
                  %s438 = sphi 0, %s440
                  %p439 = scmp.ge.s32.totalorder %s438, %s431
                  %s443 = sphi 0, %s448
                  %s444 = sphi %s434, %s451
                  %s445 = sphi %s436, %s452
                $region72: #{tpu_custom_call.1} parent=61 // loop_header_branch
                  %442 = sbr.rel (%p439) target = $region76
                $region73: #{tpu_custom_call.1} parent=61 // loop_body
                  %s446 = sadd.s32 1, %s443
                  %p447 = scmp.ge.s32.totalorder %s446, %s431
                  %s448 = scalar_select %p447, 0, %s446
                  %s449 = smul.u32 %s448, 4
                  %s450 = smul.u32 %s448, 4
                  %s451 = scalar_lea.vmem %s434, %s449
                  %s452 = scalar_lea.vmem %s436, %s450 [#allocation2]
                $region74: #{tpu_custom_call.1} parent=61 // loop_footer
                  %s440 = sadd.s32 %s438, 1
                $region75: #{tpu_custom_call.1} parent=61 // loop_footer_branch
                  %437 = sbr.rel target = $region71
                $region76: #{tpu_custom_call.1} parent=61 // loop_exit
                  _
                %s454 = ssub.s32 16, 1
                %s455 = sshrl.u32 %s225, 5
                // While loop
                $region77: #{tpu_custom_call.1} parent=61 // loop_pre_header
                  _
                $region78: #{tpu_custom_call.1} parent=61 // loop_header
                  %s457 = sphi 0, %s459
                  %p458 = scmp.ge.s32.totalorder %s457, %s455
                  %s462 = sphi 0, %s595
                  %s463 = sphi %s229, %s598
                  %s464 = sphi %s221, %s599
                $region79: #{tpu_custom_call.1} parent=61 // loop_header_branch
                  %461 = sbr.rel (%p458) target = $region83
                $region80: #{tpu_custom_call.1} parent=61 // loop_body
                  %v465 = vld [vmem:[%s463] sm:%s454]
                  %466 = vst [vmem:[%s464] sm:%s454] %v465
                  %v467 = vld [vmem:[%s463 + $0x4] sm:%s454]
                  %468 = vst [vmem:[%s464 + $0x4] sm:%s454] %v467
                  %v469 = vld [vmem:[%s463 + $0x8] sm:%s454]
                  %470 = vst [vmem:[%s464 + $0x8] sm:%s454] %v469
                  %v471 = vld [vmem:[%s463 + $0xc] sm:%s454]
                  %472 = vst [vmem:[%s464 + $0xc] sm:%s454] %v471
                  %v473 = vld [vmem:[%s463 + $0x10] sm:%s454]
                  %474 = vst [vmem:[%s464 + $0x10] sm:%s454] %v473
                  %v475 = vld [vmem:[%s463 + $0x14] sm:%s454]
                  %476 = vst [vmem:[%s464 + $0x14] sm:%s454] %v475
                  %v477 = vld [vmem:[%s463 + $0x18] sm:%s454]
                  %478 = vst [vmem:[%s464 + $0x18] sm:%s454] %v477
                  %v479 = vld [vmem:[%s463 + $0x1c] sm:%s454]
                  %480 = vst [vmem:[%s464 + $0x1c] sm:%s454] %v479
                  %v481 = vld [vmem:[%s463 + $0x20] sm:%s454]
                  %482 = vst [vmem:[%s464 + $0x20] sm:%s454] %v481
                  %v483 = vld [vmem:[%s463 + $0x24] sm:%s454]
                  %484 = vst [vmem:[%s464 + $0x24] sm:%s454] %v483
                  %v485 = vld [vmem:[%s463 + $0x28] sm:%s454]
                  %486 = vst [vmem:[%s464 + $0x28] sm:%s454] %v485
                  %v487 = vld [vmem:[%s463 + $0x2c] sm:%s454]
                  %488 = vst [vmem:[%s464 + $0x2c] sm:%s454] %v487
                  %v489 = vld [vmem:[%s463 + $0x30] sm:%s454]
                  %490 = vst [vmem:[%s464 + $0x30] sm:%s454] %v489
                  %v491 = vld [vmem:[%s463 + $0x34] sm:%s454]
                  %492 = vst [vmem:[%s464 + $0x34] sm:%s454] %v491
                  %v493 = vld [vmem:[%s463 + $0x38] sm:%s454]
                  %494 = vst [vmem:[%s464 + $0x38] sm:%s454] %v493
                  %v495 = vld [vmem:[%s463 + $0x3c] sm:%s454]
                  %496 = vst [vmem:[%s464 + $0x3c] sm:%s454] %v495
                  %v497 = vld [vmem:[%s463 + $0x40] sm:%s454]
                  %498 = vst [vmem:[%s464 + $0x40] sm:%s454] %v497
                  %v499 = vld [vmem:[%s463 + $0x44] sm:%s454]
                  %500 = vst [vmem:[%s464 + $0x44] sm:%s454] %v499
                  %v501 = vld [vmem:[%s463 + $0x48] sm:%s454]
                  %502 = vst [vmem:[%s464 + $0x48] sm:%s454] %v501
                  %v503 = vld [vmem:[%s463 + $0x4c] sm:%s454]
                  %504 = vst [vmem:[%s464 + $0x4c] sm:%s454] %v503
                  %v505 = vld [vmem:[%s463 + $0x50] sm:%s454]
                  %506 = vst [vmem:[%s464 + $0x50] sm:%s454] %v505
                  %v507 = vld [vmem:[%s463 + $0x54] sm:%s454]
                  %508 = vst [vmem:[%s464 + $0x54] sm:%s454] %v507
                  %v509 = vld [vmem:[%s463 + $0x58] sm:%s454]
                  %510 = vst [vmem:[%s464 + $0x58] sm:%s454] %v509
                  %v511 = vld [vmem:[%s463 + $0x5c] sm:%s454]
                  %512 = vst [vmem:[%s464 + $0x5c] sm:%s454] %v511
                  %v513 = vld [vmem:[%s463 + $0x60] sm:%s454]
                  %514 = vst [vmem:[%s464 + $0x60] sm:%s454] %v513
                  %v515 = vld [vmem:[%s463 + $0x64] sm:%s454]
                  %516 = vst [vmem:[%s464 + $0x64] sm:%s454] %v515
                  %v517 = vld [vmem:[%s463 + $0x68] sm:%s454]
                  %518 = vst [vmem:[%s464 + $0x68] sm:%s454] %v517
                  %v519 = vld [vmem:[%s463 + $0x6c] sm:%s454]
                  %520 = vst [vmem:[%s464 + $0x6c] sm:%s454] %v519
                  %v521 = vld [vmem:[%s463 + $0x70] sm:%s454]
                  %522 = vst [vmem:[%s464 + $0x70] sm:%s454] %v521
                  %v523 = vld [vmem:[%s463 + $0x74] sm:%s454]
                  %524 = vst [vmem:[%s464 + $0x74] sm:%s454] %v523
                  %v525 = vld [vmem:[%s463 + $0x78] sm:%s454]
                  %526 = vst [vmem:[%s464 + $0x78] sm:%s454] %v525
                  %v527 = vld [vmem:[%s463 + $0x7c] sm:%s454]
                  %528 = vst [vmem:[%s464 + $0x7c] sm:%s454] %v527
                  %v529 = vld [vmem:[%s463 + $0x104] sm:%s454]
                  %530 = vst [vmem:[%s464 + $0x80] sm:%s454] %v529
                  %v531 = vld [vmem:[%s463 + $0x108] sm:%s454]
                  %532 = vst [vmem:[%s464 + $0x84] sm:%s454] %v531
                  %v533 = vld [vmem:[%s463 + $0x10c] sm:%s454]
                  %534 = vst [vmem:[%s464 + $0x88] sm:%s454] %v533
                  %v535 = vld [vmem:[%s463 + $0x110] sm:%s454]
                  %536 = vst [vmem:[%s464 + $0x8c] sm:%s454] %v535
                  %v537 = vld [vmem:[%s463 + $0x114] sm:%s454]
                  %538 = vst [vmem:[%s464 + $0x90] sm:%s454] %v537
                  %v539 = vld [vmem:[%s463 + $0x118] sm:%s454]
                  %540 = vst [vmem:[%s464 + $0x94] sm:%s454] %v539
                  %v541 = vld [vmem:[%s463 + $0x11c] sm:%s454]
                  %542 = vst [vmem:[%s464 + $0x98] sm:%s454] %v541
                  %v543 = vld [vmem:[%s463 + $0x120] sm:%s454]
                  %544 = vst [vmem:[%s464 + $0x9c] sm:%s454] %v543
                  %v545 = vld [vmem:[%s463 + $0x124] sm:%s454]
                  %546 = vst [vmem:[%s464 + $0xa0] sm:%s454] %v545
                  %v547 = vld [vmem:[%s463 + $0x128] sm:%s454]
                  %548 = vst [vmem:[%s464 + $0xa4] sm:%s454] %v547
                  %v549 = vld [vmem:[%s463 + $0x12c] sm:%s454]
                  %550 = vst [vmem:[%s464 + $0xa8] sm:%s454] %v549
                  %v551 = vld [vmem:[%s463 + $0x130] sm:%s454]
                  %552 = vst [vmem:[%s464 + $0xac] sm:%s454] %v551
                  %v553 = vld [vmem:[%s463 + $0x134] sm:%s454]
                  %554 = vst [vmem:[%s464 + $0xb0] sm:%s454] %v553
                  %v555 = vld [vmem:[%s463 + $0x138] sm:%s454]
                  %556 = vst [vmem:[%s464 + $0xb4] sm:%s454] %v555
                  %v557 = vld [vmem:[%s463 + $0x13c] sm:%s454]
                  %558 = vst [vmem:[%s464 + $0xb8] sm:%s454] %v557
                  %v559 = vld [vmem:[%s463 + $0x140] sm:%s454]
                  %560 = vst [vmem:[%s464 + $0xbc] sm:%s454] %v559
                  %v561 = vld [vmem:[%s463 + $0x144] sm:%s454]
                  %562 = vst [vmem:[%s464 + $0xc0] sm:%s454] %v561
                  %v563 = vld [vmem:[%s463 + $0x148] sm:%s454]
                  %564 = vst [vmem:[%s464 + $0xc4] sm:%s454] %v563
                  %v565 = vld [vmem:[%s463 + $0x14c] sm:%s454]
                  %566 = vst [vmem:[%s464 + $0xc8] sm:%s454] %v565
                  %v567 = vld [vmem:[%s463 + $0x150] sm:%s454]
                  %568 = vst [vmem:[%s464 + $0xcc] sm:%s454] %v567
                  %v569 = vld [vmem:[%s463 + $0x154] sm:%s454]
                  %570 = vst [vmem:[%s464 + $0xd0] sm:%s454] %v569
                  %v571 = vld [vmem:[%s463 + $0x158] sm:%s454]
                  %572 = vst [vmem:[%s464 + $0xd4] sm:%s454] %v571
                  %v573 = vld [vmem:[%s463 + $0x15c] sm:%s454]
                  %574 = vst [vmem:[%s464 + $0xd8] sm:%s454] %v573
                  %v575 = vld [vmem:[%s463 + $0x160] sm:%s454]
                  %576 = vst [vmem:[%s464 + $0xdc] sm:%s454] %v575
                  %v577 = vld [vmem:[%s463 + $0x164] sm:%s454]
                  %578 = vst [vmem:[%s464 + $0xe0] sm:%s454] %v577
                  %v579 = vld [vmem:[%s463 + $0x168] sm:%s454]
                  %580 = vst [vmem:[%s464 + $0xe4] sm:%s454] %v579
                  %v581 = vld [vmem:[%s463 + $0x16c] sm:%s454]
                  %582 = vst [vmem:[%s464 + $0xe8] sm:%s454] %v581
                  %v583 = vld [vmem:[%s463 + $0x170] sm:%s454]
                  %584 = vst [vmem:[%s464 + $0xec] sm:%s454] %v583
                  %v585 = vld [vmem:[%s463 + $0x174] sm:%s454]
                  %586 = vst [vmem:[%s464 + $0xf0] sm:%s454] %v585
                  %v587 = vld [vmem:[%s463 + $0x178] sm:%s454]
                  %588 = vst [vmem:[%s464 + $0xf4] sm:%s454] %v587
                  %v589 = vld [vmem:[%s463 + $0x17c] sm:%s454]
                  %590 = vst [vmem:[%s464 + $0xf8] sm:%s454] %v589
                  %v591 = vld [vmem:[%s463 + $0x180] sm:%s454]
                  %592 = vst [vmem:[%s464 + $0xfc] sm:%s454] %v591
                  %s593 = sadd.s32 1, %s462
                  %p594 = scmp.ge.s32.totalorder %s593, %s455
                  %s595 = scalar_select %p594, 0, %s593
                  %s596 = smul.u32 %s595, 128
                  %s597 = smul.u32 %s595, 128
                  %s598 = scalar_lea.vmem %s229, %s596
                  %s599 = scalar_lea.vmem %s221, %s597 [#allocation2]
                $region81: #{tpu_custom_call.1} parent=61 // loop_footer
                  %s459 = sadd.s32 %s457, 1
                $region82: #{tpu_custom_call.1} parent=61 // loop_footer_branch
                  %456 = sbr.rel target = $region78
                $region83: #{tpu_custom_call.1} parent=61 // loop_exit
                  _
                %s600 = sshrl.u32 %s225, 5
                %s601 = sand.u32 %s225, 31
                %s602 = smul.u32 %s600, 32
                %s603 = smul.u32 4, %s602
                %s604 = scalar_lea.vmem %s229, %s603
                %s605 = smul.u32 4, %s602
                %s606 = scalar_lea.vmem %s221, %s605 [#allocation2]
                // While loop
                $region84: #{tpu_custom_call.1} parent=61 // loop_pre_header
                  _
                $region85: #{tpu_custom_call.1} parent=61 // loop_header
                  %s608 = sphi 0, %s610
                  %p609 = scmp.ge.s32.totalorder %s608, %s601
                  %s613 = sphi 0, %s622
                  %s614 = sphi %s604, %s625
                  %s615 = sphi %s606, %s626
                $region86: #{tpu_custom_call.1} parent=61 // loop_header_branch
                  %612 = sbr.rel (%p609) target = $region90
                $region87: #{tpu_custom_call.1} parent=61 // loop_body
                  %v616 = vld [vmem:[%s614] sm:%s454]
                  %617 = vst [vmem:[%s615] sm:%s454] %v616
                  %v618 = vld [vmem:[%s614 + $0x104] sm:%s454]
                  %619 = vst [vmem:[%s615 + $0x80] sm:%s454] %v618
                  %s620 = sadd.s32 1, %s613
                  %p621 = scmp.ge.s32.totalorder %s620, %s601
                  %s622 = scalar_select %p621, 0, %s620
                  %s623 = smul.u32 %s622, 4
                  %s624 = smul.u32 %s622, 4
                  %s625 = scalar_lea.vmem %s604, %s623
                  %s626 = scalar_lea.vmem %s606, %s624 [#allocation2]
                $region88: #{tpu_custom_call.1} parent=61 // loop_footer
                  %s610 = sadd.s32 %s608, 1
                $region89: #{tpu_custom_call.1} parent=61 // loop_footer_branch
                  %607 = sbr.rel target = $region85
                $region90: #{tpu_custom_call.1} parent=61 // loop_exit
                  _
              $region62: #{tpu_custom_call.1} parent=39 // pred_fallthru
                _
            $region40: #{tpu_custom_call.1} parent=35 // pred_fallthru
              _
            // Predicated region
            $region41: #{tpu_custom_call.1} parent=35 // pred_check
              _
            $region42: #{tpu_custom_call.1} parent=35 // pred_check_branch
              %236 = sbr.rel (0) target = $region44
            $region43: #{tpu_custom_call.1} parent=35 // pred_region
              %s238 = ssub.s32 16, 1
              %s239 = sshrl.u32 %s225, 5
              // While loop
              $region45: #{tpu_custom_call.1} parent=43 // loop_pre_header
                _
              $region46: #{tpu_custom_call.1} parent=43 // loop_header
                %s241 = sphi 0, %s243
                %p242 = scmp.ge.s32.totalorder %s241, %s239
                %s246 = sphi 0, %s379
                %s247 = sphi %s229, %s382
                %s248 = sphi %s221, %s383
              $region47: #{tpu_custom_call.1} parent=43 // loop_header_branch
                %245 = sbr.rel (%p242) target = $region51
              $region48: #{tpu_custom_call.1} parent=43 // loop_body
                %v249 = vld [vmem:[%s247] sm:%s238]
                %250 = vst [vmem:[%s248] sm:%s238] %v249
                %v251 = vld [vmem:[%s247 + $0x4] sm:%s238]
                %252 = vst [vmem:[%s248 + $0x4] sm:%s238] %v251
                %v253 = vld [vmem:[%s247 + $0x8] sm:%s238]
                %254 = vst [vmem:[%s248 + $0x8] sm:%s238] %v253
                %v255 = vld [vmem:[%s247 + $0xc] sm:%s238]
                %256 = vst [vmem:[%s248 + $0xc] sm:%s238] %v255
                %v257 = vld [vmem:[%s247 + $0x10] sm:%s238]
                %258 = vst [vmem:[%s248 + $0x10] sm:%s238] %v257
                %v259 = vld [vmem:[%s247 + $0x14] sm:%s238]
                %260 = vst [vmem:[%s248 + $0x14] sm:%s238] %v259
                %v261 = vld [vmem:[%s247 + $0x18] sm:%s238]
                %262 = vst [vmem:[%s248 + $0x18] sm:%s238] %v261
                %v263 = vld [vmem:[%s247 + $0x1c] sm:%s238]
                %264 = vst [vmem:[%s248 + $0x1c] sm:%s238] %v263
                %v265 = vld [vmem:[%s247 + $0x20] sm:%s238]
                %266 = vst [vmem:[%s248 + $0x20] sm:%s238] %v265
                %v267 = vld [vmem:[%s247 + $0x24] sm:%s238]
                %268 = vst [vmem:[%s248 + $0x24] sm:%s238] %v267
                %v269 = vld [vmem:[%s247 + $0x28] sm:%s238]
                %270 = vst [vmem:[%s248 + $0x28] sm:%s238] %v269
                %v271 = vld [vmem:[%s247 + $0x2c] sm:%s238]
                %272 = vst [vmem:[%s248 + $0x2c] sm:%s238] %v271
                %v273 = vld [vmem:[%s247 + $0x30] sm:%s238]
                %274 = vst [vmem:[%s248 + $0x30] sm:%s238] %v273
                %v275 = vld [vmem:[%s247 + $0x34] sm:%s238]
                %276 = vst [vmem:[%s248 + $0x34] sm:%s238] %v275
                %v277 = vld [vmem:[%s247 + $0x38] sm:%s238]
                %278 = vst [vmem:[%s248 + $0x38] sm:%s238] %v277
                %v279 = vld [vmem:[%s247 + $0x3c] sm:%s238]
                %280 = vst [vmem:[%s248 + $0x3c] sm:%s238] %v279
                %v281 = vld [vmem:[%s247 + $0x40] sm:%s238]
                %282 = vst [vmem:[%s248 + $0x40] sm:%s238] %v281
                %v283 = vld [vmem:[%s247 + $0x44] sm:%s238]
                %284 = vst [vmem:[%s248 + $0x44] sm:%s238] %v283
                %v285 = vld [vmem:[%s247 + $0x48] sm:%s238]
                %286 = vst [vmem:[%s248 + $0x48] sm:%s238] %v285
                %v287 = vld [vmem:[%s247 + $0x4c] sm:%s238]
                %288 = vst [vmem:[%s248 + $0x4c] sm:%s238] %v287
                %v289 = vld [vmem:[%s247 + $0x50] sm:%s238]
                %290 = vst [vmem:[%s248 + $0x50] sm:%s238] %v289
                %v291 = vld [vmem:[%s247 + $0x54] sm:%s238]
                %292 = vst [vmem:[%s248 + $0x54] sm:%s238] %v291
                %v293 = vld [vmem:[%s247 + $0x58] sm:%s238]
                %294 = vst [vmem:[%s248 + $0x58] sm:%s238] %v293
                %v295 = vld [vmem:[%s247 + $0x5c] sm:%s238]
                %296 = vst [vmem:[%s248 + $0x5c] sm:%s238] %v295
                %v297 = vld [vmem:[%s247 + $0x60] sm:%s238]
                %298 = vst [vmem:[%s248 + $0x60] sm:%s238] %v297
                %v299 = vld [vmem:[%s247 + $0x64] sm:%s238]
                %300 = vst [vmem:[%s248 + $0x64] sm:%s238] %v299
                %v301 = vld [vmem:[%s247 + $0x68] sm:%s238]
                %302 = vst [vmem:[%s248 + $0x68] sm:%s238] %v301
                %v303 = vld [vmem:[%s247 + $0x6c] sm:%s238]
                %304 = vst [vmem:[%s248 + $0x6c] sm:%s238] %v303
                %v305 = vld [vmem:[%s247 + $0x70] sm:%s238]
                %306 = vst [vmem:[%s248 + $0x70] sm:%s238] %v305
                %v307 = vld [vmem:[%s247 + $0x74] sm:%s238]
                %308 = vst [vmem:[%s248 + $0x74] sm:%s238] %v307
                %v309 = vld [vmem:[%s247 + $0x78] sm:%s238]
                %310 = vst [vmem:[%s248 + $0x78] sm:%s238] %v309
                %v311 = vld [vmem:[%s247 + $0x7c] sm:%s238]
                %312 = vst [vmem:[%s248 + $0x7c] sm:%s238] %v311
                %v313 = vld [vmem:[%s247 + $0x104] sm:%s238]
                %314 = vst [vmem:[%s248 + $0x80] sm:%s238] %v313
                %v315 = vld [vmem:[%s247 + $0x108] sm:%s238]
                %316 = vst [vmem:[%s248 + $0x84] sm:%s238] %v315
                %v317 = vld [vmem:[%s247 + $0x10c] sm:%s238]
                %318 = vst [vmem:[%s248 + $0x88] sm:%s238] %v317
                %v319 = vld [vmem:[%s247 + $0x110] sm:%s238]
                %320 = vst [vmem:[%s248 + $0x8c] sm:%s238] %v319
                %v321 = vld [vmem:[%s247 + $0x114] sm:%s238]
                %322 = vst [vmem:[%s248 + $0x90] sm:%s238] %v321
                %v323 = vld [vmem:[%s247 + $0x118] sm:%s238]
                %324 = vst [vmem:[%s248 + $0x94] sm:%s238] %v323
                %v325 = vld [vmem:[%s247 + $0x11c] sm:%s238]
                %326 = vst [vmem:[%s248 + $0x98] sm:%s238] %v325
                %v327 = vld [vmem:[%s247 + $0x120] sm:%s238]
                %328 = vst [vmem:[%s248 + $0x9c] sm:%s238] %v327
                %v329 = vld [vmem:[%s247 + $0x124] sm:%s238]
                %330 = vst [vmem:[%s248 + $0xa0] sm:%s238] %v329
                %v331 = vld [vmem:[%s247 + $0x128] sm:%s238]
                %332 = vst [vmem:[%s248 + $0xa4] sm:%s238] %v331
                %v333 = vld [vmem:[%s247 + $0x12c] sm:%s238]
                %334 = vst [vmem:[%s248 + $0xa8] sm:%s238] %v333
                %v335 = vld [vmem:[%s247 + $0x130] sm:%s238]
                %336 = vst [vmem:[%s248 + $0xac] sm:%s238] %v335
                %v337 = vld [vmem:[%s247 + $0x134] sm:%s238]
                %338 = vst [vmem:[%s248 + $0xb0] sm:%s238] %v337
                %v339 = vld [vmem:[%s247 + $0x138] sm:%s238]
                %340 = vst [vmem:[%s248 + $0xb4] sm:%s238] %v339
                %v341 = vld [vmem:[%s247 + $0x13c] sm:%s238]
                %342 = vst [vmem:[%s248 + $0xb8] sm:%s238] %v341
                %v343 = vld [vmem:[%s247 + $0x140] sm:%s238]
                %344 = vst [vmem:[%s248 + $0xbc] sm:%s238] %v343
                %v345 = vld [vmem:[%s247 + $0x144] sm:%s238]
                %346 = vst [vmem:[%s248 + $0xc0] sm:%s238] %v345
                %v347 = vld [vmem:[%s247 + $0x148] sm:%s238]
                %348 = vst [vmem:[%s248 + $0xc4] sm:%s238] %v347
                %v349 = vld [vmem:[%s247 + $0x14c] sm:%s238]
                %350 = vst [vmem:[%s248 + $0xc8] sm:%s238] %v349
                %v351 = vld [vmem:[%s247 + $0x150] sm:%s238]
                %352 = vst [vmem:[%s248 + $0xcc] sm:%s238] %v351
                %v353 = vld [vmem:[%s247 + $0x154] sm:%s238]
                %354 = vst [vmem:[%s248 + $0xd0] sm:%s238] %v353
                %v355 = vld [vmem:[%s247 + $0x158] sm:%s238]
                %356 = vst [vmem:[%s248 + $0xd4] sm:%s238] %v355
                %v357 = vld [vmem:[%s247 + $0x15c] sm:%s238]
                %358 = vst [vmem:[%s248 + $0xd8] sm:%s238] %v357
                %v359 = vld [vmem:[%s247 + $0x160] sm:%s238]
                %360 = vst [vmem:[%s248 + $0xdc] sm:%s238] %v359
                %v361 = vld [vmem:[%s247 + $0x164] sm:%s238]
                %362 = vst [vmem:[%s248 + $0xe0] sm:%s238] %v361
                %v363 = vld [vmem:[%s247 + $0x168] sm:%s238]
                %364 = vst [vmem:[%s248 + $0xe4] sm:%s238] %v363
                %v365 = vld [vmem:[%s247 + $0x16c] sm:%s238]
                %366 = vst [vmem:[%s248 + $0xe8] sm:%s238] %v365
                %v367 = vld [vmem:[%s247 + $0x170] sm:%s238]
                %368 = vst [vmem:[%s248 + $0xec] sm:%s238] %v367
                %v369 = vld [vmem:[%s247 + $0x174] sm:%s238]
                %370 = vst [vmem:[%s248 + $0xf0] sm:%s238] %v369
                %v371 = vld [vmem:[%s247 + $0x178] sm:%s238]
                %372 = vst [vmem:[%s248 + $0xf4] sm:%s238] %v371
                %v373 = vld [vmem:[%s247 + $0x17c] sm:%s238]
                %374 = vst [vmem:[%s248 + $0xf8] sm:%s238] %v373
                %v375 = vld [vmem:[%s247 + $0x180] sm:%s238]
                %376 = vst [vmem:[%s248 + $0xfc] sm:%s238] %v375
                %s377 = sadd.s32 1, %s246
                %p378 = scmp.ge.s32.totalorder %s377, %s239
                %s379 = scalar_select %p378, 0, %s377
                %s380 = smul.u32 %s379, 128
                %s381 = smul.u32 %s379, 128
                %s382 = scalar_lea.vmem %s229, %s380
                %s383 = scalar_lea.vmem %s221, %s381 [#allocation2]
              $region49: #{tpu_custom_call.1} parent=43 // loop_footer
                %s243 = sadd.s32 %s241, 1
              $region50: #{tpu_custom_call.1} parent=43 // loop_footer_branch
                %240 = sbr.rel target = $region46
              $region51: #{tpu_custom_call.1} parent=43 // loop_exit
                _
              %s384 = sshrl.u32 %s225, 5
              %s385 = sand.u32 %s225, 31
              %s386 = smul.u32 %s384, 32
              %s387 = smul.u32 4, %s386
              %s388 = scalar_lea.vmem %s229, %s387
              %s389 = smul.u32 4, %s386
              %s390 = scalar_lea.vmem %s221, %s389 [#allocation2]
              // While loop
              $region52: #{tpu_custom_call.1} parent=43 // loop_pre_header
                _
              $region53: #{tpu_custom_call.1} parent=43 // loop_header
                %s392 = sphi 0, %s394
                %p393 = scmp.ge.s32.totalorder %s392, %s385
                %s397 = sphi 0, %s406
                %s398 = sphi %s388, %s409
                %s399 = sphi %s390, %s410
              $region54: #{tpu_custom_call.1} parent=43 // loop_header_branch
                %396 = sbr.rel (%p393) target = $region58
              $region55: #{tpu_custom_call.1} parent=43 // loop_body
                %v400 = vld [vmem:[%s398] sm:%s238]
                %401 = vst [vmem:[%s399] sm:%s238] %v400
                %v402 = vld [vmem:[%s398 + $0x104] sm:%s238]
                %403 = vst [vmem:[%s399 + $0x80] sm:%s238] %v402
                %s404 = sadd.s32 1, %s397
                %p405 = scmp.ge.s32.totalorder %s404, %s385
                %s406 = scalar_select %p405, 0, %s404
                %s407 = smul.u32 %s406, 4
                %s408 = smul.u32 %s406, 4
                %s409 = scalar_lea.vmem %s388, %s407
                %s410 = scalar_lea.vmem %s390, %s408 [#allocation2]
              $region56: #{tpu_custom_call.1} parent=43 // loop_footer
                %s394 = sadd.s32 %s392, 1
              $region57: #{tpu_custom_call.1} parent=43 // loop_footer_branch
                %391 = sbr.rel target = $region53
              $region58: #{tpu_custom_call.1} parent=43 // loop_exit
                _
            $region44: #{tpu_custom_call.1} parent=35 // pred_fallthru
              _
          $region36: #{tpu_custom_call.1} parent=31 // pred_fallthru
            _
          %627 = vnop
        $region32: #{tpu_custom_call.1} parent=27 // pred_fallthru
          _
        // Predicated region
        $region91: #{tpu_custom_call.1} parent=27 // pred_check
          %p628 = pneg %p66
        $region92: #{tpu_custom_call.1} parent=27 // pred_check_branch
          %630 = sbr.rel (%p628) target = $region94
        $region93: #{tpu_custom_call.1} parent=27 // pred_region
          %s631 = sand.u32 %s56, 1
          %s632 = sand.u32 %s56, 1
          %s633 = smul.addr %s632, 8
          %s634 = scalar_lea.vmem [#allocation3], %s633
          %s635 = sadd.s32 %s16, 1
          %s636 = smul.u32 %s635, 32
          %s637 = smul.addr %s636, 4
          %s638 = scalar_lea.vmem %s1, %s637
          // Predicated region
          $region95: #{tpu_custom_call.1} parent=93 // pred_check
            _
          $region96: #{tpu_custom_call.1} parent=93 // pred_check_branch
            %640 = sbr.rel (0) target = $region98
          $region97: #{tpu_custom_call.1} parent=93 // pred_region
            // Predicated region
            $region99: #{tpu_custom_call.1} parent=97 // pred_check
              _
            $region100: #{tpu_custom_call.1} parent=97 // pred_check_branch
              %642 = sbr.rel target = $region102
            $region101: #{tpu_custom_call.1} parent=97 // pred_region
              // Predicated region
              $region114: #{tpu_custom_call.1} parent=101 // pred_check
                _
              $region115: #{tpu_custom_call.1} parent=101 // pred_check_branch
                %660 = sbr.rel (0) target = $region117
              $region116: #{tpu_custom_call.1} parent=101 // pred_region
                loop: start=0, step=1, limit=1
                $region118: #{tpu_custom_call.1} parent=116 // loop_pre_header
                  _
                $region119: #{tpu_custom_call.1} parent=116 // loop_header
                  %s662 = sphi 0, %s666
                  %p663 = scmp.ge.s32.totalorder %s662, 1
                  %s667 = sphi %s638, %s638
                  %s668 = sphi %s634, %s634
                $region120: #{tpu_custom_call.1} parent=116 // loop_header_branch
                  %665 = sbr.rel (%p663) target = $region124
                $region121: #{tpu_custom_call.1} parent=116 // loop_body
                  _
                $region122: #{tpu_custom_call.1} parent=116 // loop_footer
                  %s666 = sadd.s32 1, %s662
                $region123: #{tpu_custom_call.1} parent=116 // loop_footer_branch
                  %661 = sbr.rel target = $region119
                $region124: #{tpu_custom_call.1} parent=116 // loop_exit
                  _
                %s670 = ssub.s32 16, 1
                loop: start=0, step=1, limit=1
                $region125: #{tpu_custom_call.1} parent=116 // loop_pre_header
                  _
                $region126: #{tpu_custom_call.1} parent=116 // loop_header
                  %s672 = sphi 0, %s676
                  %p673 = scmp.ge.s32.totalorder %s672, 1
                  %s677 = sphi %s638, %s638
                  %s678 = sphi %s634, %s634
                $region127: #{tpu_custom_call.1} parent=116 // loop_header_branch
                  %675 = sbr.rel (%p673) target = $region131
                $region128: #{tpu_custom_call.1} parent=116 // loop_body
                  %v679 = vld [vmem:[%s677] sm:%s670]
                  %680 = vst [vmem:[%s678] sm:%s670] %v679
                  %v681 = vld [vmem:[%s677 + $0x104] sm:%s670]
                  %682 = vst [vmem:[%s678 + $0x4] sm:%s670] %v681
                $region129: #{tpu_custom_call.1} parent=116 // loop_footer
                  %s676 = sadd.s32 1, %s672
                $region130: #{tpu_custom_call.1} parent=116 // loop_footer_branch
                  %671 = sbr.rel target = $region126
                $region131: #{tpu_custom_call.1} parent=116 // loop_exit
                  _
              $region117: #{tpu_custom_call.1} parent=101 // pred_fallthru
                _
            $region102: #{tpu_custom_call.1} parent=97 // pred_fallthru
              _
            // Predicated region
            $region103: #{tpu_custom_call.1} parent=97 // pred_check
              _
            $region104: #{tpu_custom_call.1} parent=97 // pred_check_branch
              %644 = sbr.rel (0) target = $region106
            $region105: #{tpu_custom_call.1} parent=97 // pred_region
              %s646 = ssub.s32 16, 1
              loop: start=0, step=1, limit=1
              $region107: #{tpu_custom_call.1} parent=105 // loop_pre_header
                _
              $region108: #{tpu_custom_call.1} parent=105 // loop_header
                %s648 = sphi 0, %s652
                %p649 = scmp.ge.s32.totalorder %s648, 1
                %s653 = sphi %s638, %s638
                %s654 = sphi %s634, %s634
              $region109: #{tpu_custom_call.1} parent=105 // loop_header_branch
                %651 = sbr.rel (%p649) target = $region113
              $region110: #{tpu_custom_call.1} parent=105 // loop_body
                %v655 = vld [vmem:[%s653] sm:%s646]
                %656 = vst [vmem:[%s654] sm:%s646] %v655
                %v657 = vld [vmem:[%s653 + $0x104] sm:%s646]
                %658 = vst [vmem:[%s654 + $0x4] sm:%s646] %v657
              $region111: #{tpu_custom_call.1} parent=105 // loop_footer
                %s652 = sadd.s32 1, %s648
              $region112: #{tpu_custom_call.1} parent=105 // loop_footer_branch
                %647 = sbr.rel target = $region108
              $region113: #{tpu_custom_call.1} parent=105 // loop_exit
                _
            $region106: #{tpu_custom_call.1} parent=97 // pred_fallthru
              _
          $region98: #{tpu_custom_call.1} parent=93 // pred_fallthru
            _
          %683 = vnop
        $region94: #{tpu_custom_call.1} parent=27 // pred_fallthru
          _
      $region28: #{tpu_custom_call.1} parent=5 // pred_fallthru
        _
      %p684 = scmp.le.s32.totalorder 1, %s16
      %p685 = scmp.lt.s32.totalorder %s16, 3
      %p686 = pnand %p684, %p685
      %p687 = pneg %p686
      // Predicated region
      $region132: #{tpu_custom_call.1} parent=5 // pred_check
        _
      $region133: #{tpu_custom_call.1} parent=5 // pred_check_branch
        %689 = sbr.rel (%p686) target = $region135
      $region134: #{tpu_custom_call.1} parent=5 // pred_region
        %s690 = ssub.s32 %s16, 1
        %s691 = sand.u32 %s29, 1
        %s692 = sand.u32 %s29, 1
        %s693 = smul.addr %s692, 256
        %s694 = scalar_lea.vmem [#allocation2], %s693
        // Predicated region
        $region136: #{tpu_custom_call.1} parent=134 // pred_check
          %p695 = pneg %p42
        $region137: #{tpu_custom_call.1} parent=134 // pred_check_branch
          %697 = sbr.rel (%p695) target = $region139
        $region138: #{tpu_custom_call.1} parent=134 // pred_region
          _
        $region139: #{tpu_custom_call.1} parent=134 // pred_fallthru
          _
        %s698 = sand.u32 %s59, 1
        %s699 = sand.u32 %s59, 1
        %s700 = smul.addr %s699, 8
        %s701 = scalar_lea.vmem [#allocation3], %s700
        // Predicated region
        $region140: #{tpu_custom_call.1} parent=134 // pred_check
          %p702 = pneg %p72
        $region141: #{tpu_custom_call.1} parent=134 // pred_check_branch
          %704 = sbr.rel (%p702) target = $region143
        $region142: #{tpu_custom_call.1} parent=134 // pred_region
          _
        $region143: #{tpu_custom_call.1} parent=134 // pred_fallthru
          _
        %s705 = sand.u32 %s29, 1
        %s706 = sand.u32 %s29, 1
        %s707 = smul.addr %s706, 256
        %s708 = scalar_lea.vmem [#allocation2], %s707
        %p709 = pneg %p42
        %p710 = pneg %p39
        %s711 = sand.u32 %s59, 1
        %s712 = sand.u32 %s59, 1
        %s713 = smul.addr %s712, 8
        %s714 = scalar_lea.vmem [#allocation3], %s713
        %p715 = pneg %p72
        %p716 = pneg %p69
        %p717 = pneg %p93
        %p718 = pneg %p90
        %p719 = pneg %p114
        %p720 = pneg %p111
        %p721 = pneg %p135
        %p722 = pneg %p132
        %p723 = pneg %p161
        %p724 = pneg %p158
        %s725 = sand.u32 %s148, 1
        %s726 = sand.u32 %s148, 1
        %s727 = smul.addr %s726, 256
        %s728 = scalar_lea.vmem [#allocation4], %s727
        %p729 = pneg %p187
        %p730 = pneg %p184
        %s731 = sand.u32 %s174, 1
        %s732 = scalar_lea.sflag [#allocation6], %s731
        %s733 = sand.u32 %s174, 1
        %s734 = smul.addr %s733, 2
        %s735 = scalar_lea.vmem [#allocation5], %s734
        %s736 = smul.u32 32, %s21
        %s737 = ssub.s32 65, %s736
        %p738 = scmp.lt.s32.totalorder %s737, 32
        %s739 = scalar_select %p738, %s737, 32
        %s740 = smul.u32 128, %s739
        %s741 = sadd.s32 %s21, 1
        %s742 = smul.u32 %s741, 32
        %s743 = smul.u32 32, %s21
        %v745 = vld [vmem:[%s694] sm:$0xf]
        %v746 = vld [vmem:[%s694 + $0x4] sm:$0xf]
        %v747 = vld [vmem:[%s694 + $0x8] sm:$0xf]
        %v748 = vld [vmem:[%s694 + $0xc] sm:$0xf]
        %v749 = vld [vmem:[%s694 + $0x10] sm:$0xf]
        %v750 = vld [vmem:[%s694 + $0x14] sm:$0xf]
        %v751 = vld [vmem:[%s694 + $0x18] sm:$0xf]
        %v752 = vld [vmem:[%s694 + $0x1c] sm:$0xf]
        %v753 = vld [vmem:[%s694 + $0x20] sm:$0xf]
        %v754 = vld [vmem:[%s694 + $0x24] sm:$0xf]
        %v755 = vld [vmem:[%s694 + $0x28] sm:$0xf]
        %v756 = vld [vmem:[%s694 + $0x2c] sm:$0xf]
        %v757 = vld [vmem:[%s694 + $0x30] sm:$0xf]
        %v758 = vld [vmem:[%s694 + $0x34] sm:$0xf]
        %v759 = vld [vmem:[%s694 + $0x38] sm:$0xf]
        %v760 = vld [vmem:[%s694 + $0x3c] sm:$0xf]
        %v761 = vld [vmem:[%s694 + $0x40] sm:$0xf]
        %v762 = vld [vmem:[%s694 + $0x44] sm:$0xf]
        %v763 = vld [vmem:[%s694 + $0x48] sm:$0xf]
        %v764 = vld [vmem:[%s694 + $0x4c] sm:$0xf]
        %v765 = vld [vmem:[%s694 + $0x50] sm:$0xf]
        %v766 = vld [vmem:[%s694 + $0x54] sm:$0xf]
        %v767 = vld [vmem:[%s694 + $0x58] sm:$0xf]
        %v768 = vld [vmem:[%s694 + $0x5c] sm:$0xf]
        %v769 = vld [vmem:[%s694 + $0x60] sm:$0xf]
        %v770 = vld [vmem:[%s694 + $0x64] sm:$0xf]
        %v771 = vld [vmem:[%s694 + $0x68] sm:$0xf]
        %v772 = vld [vmem:[%s694 + $0x6c] sm:$0xf]
        %v773 = vld [vmem:[%s694 + $0x70] sm:$0xf]
        %v774 = vld [vmem:[%s694 + $0x74] sm:$0xf]
        %v775 = vld [vmem:[%s694 + $0x78] sm:$0xf]
        %v776 = vld [vmem:[%s694 + $0x7c] sm:$0xf]
        %v777 = vld [vmem:[%s694 + $0x80] sm:$0xf]
        %v778 = vld [vmem:[%s694 + $0x84] sm:$0xf]
        %v779 = vld [vmem:[%s694 + $0x88] sm:$0xf]
        %v780 = vld [vmem:[%s694 + $0x8c] sm:$0xf]
        %v781 = vld [vmem:[%s694 + $0x90] sm:$0xf]
        %v782 = vld [vmem:[%s694 + $0x94] sm:$0xf]
        %v783 = vld [vmem:[%s694 + $0x98] sm:$0xf]
        %v784 = vld [vmem:[%s694 + $0x9c] sm:$0xf]
        %v785 = vld [vmem:[%s694 + $0xa0] sm:$0xf]
        %v786 = vld [vmem:[%s694 + $0xa4] sm:$0xf]
        %v787 = vld [vmem:[%s694 + $0xa8] sm:$0xf]
        %v788 = vld [vmem:[%s694 + $0xac] sm:$0xf]
        %v789 = vld [vmem:[%s694 + $0xb0] sm:$0xf]
        %v790 = vld [vmem:[%s694 + $0xb4] sm:$0xf]
        %v791 = vld [vmem:[%s694 + $0xb8] sm:$0xf]
        %v792 = vld [vmem:[%s694 + $0xbc] sm:$0xf]
        %v793 = vld [vmem:[%s694 + $0xc0] sm:$0xf]
        %v794 = vld [vmem:[%s694 + $0xc4] sm:$0xf]
        %v795 = vld [vmem:[%s694 + $0xc8] sm:$0xf]
        %v796 = vld [vmem:[%s694 + $0xcc] sm:$0xf]
        %v797 = vld [vmem:[%s694 + $0xd0] sm:$0xf]
        %v798 = vld [vmem:[%s694 + $0xd4] sm:$0xf]
        %v799 = vld [vmem:[%s694 + $0xd8] sm:$0xf]
        %v800 = vld [vmem:[%s694 + $0xdc] sm:$0xf]
        %v801 = vld [vmem:[%s694 + $0xe0] sm:$0xf]
        %v802 = vld [vmem:[%s694 + $0xe4] sm:$0xf]
        %v803 = vld [vmem:[%s694 + $0xe8] sm:$0xf]
        %v804 = vld [vmem:[%s694 + $0xec] sm:$0xf]
        %v805 = vld [vmem:[%s694 + $0xf0] sm:$0xf]
        %v806 = vld [vmem:[%s694 + $0xf4] sm:$0xf]
        %v807 = vld [vmem:[%s694 + $0xf8] sm:$0xf]
        %v808 = vld [vmem:[%s694 + $0xfc] sm:$0xf]
        %v809 = vld [vmem:[%s701] sm:$0x7]
        %v810 = vld [vmem:[%s701 + $0x4] sm:$0x7]
        %v875 = vunpack.c.l.b16 %v745
        %v876 = vunpack.c.l.b16 %v746
        %v877 = vunpack.c.l.b16 %v747
        %v878 = vunpack.c.l.b16 %v748
        %v879 = vunpack.c.l.b16 %v749
        %v880 = vunpack.c.l.b16 %v750
        %v881 = vunpack.c.l.b16 %v751
        %v882 = vunpack.c.l.b16 %v752
        %v883 = vunpack.c.l.b16 %v753
        %v884 = vunpack.c.l.b16 %v754
        %v885 = vunpack.c.l.b16 %v755
        %v886 = vunpack.c.l.b16 %v756
        %v887 = vunpack.c.l.b16 %v757
        %v888 = vunpack.c.l.b16 %v758
        %v889 = vunpack.c.l.b16 %v759
        %v890 = vunpack.c.l.b16 %v760
        %v891 = vunpack.c.l.b16 %v761
        %v892 = vunpack.c.l.b16 %v762
        %v893 = vunpack.c.l.b16 %v763
        %v894 = vunpack.c.l.b16 %v764
        %v895 = vunpack.c.l.b16 %v765
        %v896 = vunpack.c.l.b16 %v766
        %v897 = vunpack.c.l.b16 %v767
        %v898 = vunpack.c.l.b16 %v768
        %v899 = vunpack.c.l.b16 %v769
        %v900 = vunpack.c.l.b16 %v770
        %v901 = vunpack.c.l.b16 %v771
        %v902 = vunpack.c.l.b16 %v772
        %v903 = vunpack.c.l.b16 %v773
        %v904 = vunpack.c.l.b16 %v774
        %v905 = vunpack.c.l.b16 %v775
        %v906 = vunpack.c.l.b16 %v776
        %v907 = vunpack.c.l.b16 %v777
        %v908 = vunpack.c.l.b16 %v778
        %v909 = vunpack.c.l.b16 %v779
        %v910 = vunpack.c.l.b16 %v780
        %v911 = vunpack.c.l.b16 %v781
        %v912 = vunpack.c.l.b16 %v782
        %v913 = vunpack.c.l.b16 %v783
        %v914 = vunpack.c.l.b16 %v784
        %v915 = vunpack.c.l.b16 %v785
        %v916 = vunpack.c.l.b16 %v786
        %v917 = vunpack.c.l.b16 %v787
        %v918 = vunpack.c.l.b16 %v788
        %v919 = vunpack.c.l.b16 %v789
        %v920 = vunpack.c.l.b16 %v790
        %v921 = vunpack.c.l.b16 %v791
        %v922 = vunpack.c.l.b16 %v792
        %v923 = vunpack.c.l.b16 %v793
        %v924 = vunpack.c.l.b16 %v794
        %v925 = vunpack.c.l.b16 %v795
        %v926 = vunpack.c.l.b16 %v796
        %v927 = vunpack.c.l.b16 %v797
        %v928 = vunpack.c.l.b16 %v798
        %v929 = vunpack.c.l.b16 %v799
        %v930 = vunpack.c.l.b16 %v800
        %v931 = vunpack.c.l.b16 %v801
        %v932 = vunpack.c.l.b16 %v802
        %v933 = vunpack.c.l.b16 %v803
        %v934 = vunpack.c.l.b16 %v804
        %v935 = vunpack.c.l.b16 %v805
        %v936 = vunpack.c.l.b16 %v806
        %v937 = vunpack.c.l.b16 %v807
        %v938 = vunpack.c.l.b16 %v808
        %v939 = vpack.c.b16 %v876, %v875
        %v940 = vpack.c.b16 %v878, %v877
        %v941 = vpack.c.b16 %v880, %v879
        %v942 = vpack.c.b16 %v882, %v881
        %v943 = vpack.c.b16 %v884, %v883
        %v944 = vpack.c.b16 %v886, %v885
        %v945 = vpack.c.b16 %v888, %v887
        %v946 = vpack.c.b16 %v890, %v889
        %v947 = vpack.c.b16 %v892, %v891
        %v948 = vpack.c.b16 %v894, %v893
        %v949 = vpack.c.b16 %v896, %v895
        %v950 = vpack.c.b16 %v898, %v897
        %v951 = vpack.c.b16 %v900, %v899
        %v952 = vpack.c.b16 %v902, %v901
        %v953 = vpack.c.b16 %v904, %v903
        %v954 = vpack.c.b16 %v906, %v905
        %v955 = vpack.c.b16 %v908, %v907
        %v956 = vpack.c.b16 %v910, %v909
        %v957 = vpack.c.b16 %v912, %v911
        %v958 = vpack.c.b16 %v914, %v913
        %v959 = vpack.c.b16 %v916, %v915
        %v960 = vpack.c.b16 %v918, %v917
        %v961 = vpack.c.b16 %v920, %v919
        %v962 = vpack.c.b16 %v922, %v921
        %v963 = vpack.c.b16 %v924, %v923
        %v964 = vpack.c.b16 %v926, %v925
        %v965 = vpack.c.b16 %v928, %v927
        %v966 = vpack.c.b16 %v930, %v929
        %v967 = vpack.c.b16 %v932, %v931
        %v968 = vpack.c.b16 %v934, %v933
        %v969 = vpack.c.b16 %v936, %v935
        %v970 = vpack.c.b16 %v938, %v937
        %vm971 = vsmask.f32 7424
        %v973 = vshrl.u32 %v939, 16
        %v975 = vshll.u32 %v939, 16
        %v977 = vrot.slane %v975, 1
        %v978 = vor.u32 %v973, %v977
        %v980 = vshll.u32 %v940, 16
        %v982 = vrot.slane %v980, 1
        %v983 = vsel %vm971, %v978, %v982
        %v984 = vshrl.u32 %v940, 16
        %v986 = vor.u32 %v984, %v982
        %v988 = vshll.u32 %v941, 16
        %v990 = vrot.slane %v988, 1
        %v991 = vsel %vm971, %v986, %v990
        %v992 = vshrl.u32 %v941, 16
        %v994 = vor.u32 %v992, %v990
        %v996 = vshll.u32 %v942, 16
        %v998 = vrot.slane %v996, 1
        %v999 = vsel %vm971, %v994, %v998
        %v1000 = vshrl.u32 %v942, 16
        %v1002 = vor.u32 %v1000, %v998
        %v1004 = vshll.u32 %v943, 16
        %v1006 = vrot.slane %v1004, 1
        %v1007 = vsel %vm971, %v1002, %v1006
        %v1008 = vshrl.u32 %v943, 16
        %v1010 = vor.u32 %v1008, %v1006
        %v1012 = vshll.u32 %v944, 16
        %v1014 = vrot.slane %v1012, 1
        %v1015 = vsel %vm971, %v1010, %v1014
        %v1016 = vshrl.u32 %v944, 16
        %v1018 = vor.u32 %v1016, %v1014
        %v1020 = vshll.u32 %v945, 16
        %v1022 = vrot.slane %v1020, 1
        %v1023 = vsel %vm971, %v1018, %v1022
        %v1024 = vshrl.u32 %v945, 16
        %v1026 = vor.u32 %v1024, %v1022
        %v1028 = vshll.u32 %v946, 16
        %v1030 = vrot.slane %v1028, 1
        %v1031 = vsel %vm971, %v1026, %v1030
        %v1032 = vshrl.u32 %v946, 16
        %v1034 = vor.u32 %v1032, %v1030
        %v1036 = vshll.u32 %v947, 16
        %v1038 = vrot.slane %v1036, 1
        %v1039 = vsel %vm971, %v1034, %v1038
        %v1040 = vshrl.u32 %v947, 16
        %v1042 = vor.u32 %v1040, %v1038
        %v1044 = vshll.u32 %v948, 16
        %v1046 = vrot.slane %v1044, 1
        %v1047 = vsel %vm971, %v1042, %v1046
        %v1048 = vshrl.u32 %v948, 16
        %v1050 = vor.u32 %v1048, %v1046
        %v1052 = vshll.u32 %v949, 16
        %v1054 = vrot.slane %v1052, 1
        %v1055 = vsel %vm971, %v1050, %v1054
        %v1056 = vshrl.u32 %v949, 16
        %v1058 = vor.u32 %v1056, %v1054
        %v1060 = vshll.u32 %v950, 16
        %v1062 = vrot.slane %v1060, 1
        %v1063 = vsel %vm971, %v1058, %v1062
        %v1064 = vshrl.u32 %v950, 16
        %v1066 = vor.u32 %v1064, %v1062
        %v1068 = vshll.u32 %v951, 16
        %v1070 = vrot.slane %v1068, 1
        %v1071 = vsel %vm971, %v1066, %v1070
        %v1072 = vshrl.u32 %v951, 16
        %v1074 = vor.u32 %v1072, %v1070
        %v1076 = vshll.u32 %v952, 16
        %v1078 = vrot.slane %v1076, 1
        %v1079 = vsel %vm971, %v1074, %v1078
        %v1080 = vshrl.u32 %v952, 16
        %v1082 = vor.u32 %v1080, %v1078
        %v1084 = vshll.u32 %v953, 16
        %v1086 = vrot.slane %v1084, 1
        %v1087 = vsel %vm971, %v1082, %v1086
        %v1088 = vshrl.u32 %v953, 16
        %v1090 = vor.u32 %v1088, %v1086
        %v1092 = vshll.u32 %v954, 16
        %v1094 = vrot.slane %v1092, 1
        %v1095 = vsel %vm971, %v1090, %v1094
        %v1096 = vshrl.u32 %v954, 16
        %v1098 = vor.u32 %v1096, %v1094
        %v1100 = vshll.u32 %v809, 16
        %v1102 = vrot.slane %v1100, 1
        %v1103 = vsel %vm971, %v1098, %v1102
        %v1105 = vshrl.u32 %v955, 16
        %v1107 = vshll.u32 %v955, 16
        %v1109 = vrot.slane %v1107, 1
        %v1110 = vor.u32 %v1105, %v1109
        %v1112 = vshll.u32 %v956, 16
        %v1114 = vrot.slane %v1112, 1
        %v1115 = vsel %vm971, %v1110, %v1114
        %v1116 = vshrl.u32 %v956, 16
        %v1118 = vor.u32 %v1116, %v1114
        %v1120 = vshll.u32 %v957, 16
        %v1122 = vrot.slane %v1120, 1
        %v1123 = vsel %vm971, %v1118, %v1122
        %v1124 = vshrl.u32 %v957, 16
        %v1126 = vor.u32 %v1124, %v1122
        %v1128 = vshll.u32 %v958, 16
        %v1130 = vrot.slane %v1128, 1
        %v1131 = vsel %vm971, %v1126, %v1130
        %v1132 = vshrl.u32 %v958, 16
        %v1134 = vor.u32 %v1132, %v1130
        %v1136 = vshll.u32 %v959, 16
        %v1138 = vrot.slane %v1136, 1
        %v1139 = vsel %vm971, %v1134, %v1138
        %v1140 = vshrl.u32 %v959, 16
        %v1142 = vor.u32 %v1140, %v1138
        %v1144 = vshll.u32 %v960, 16
        %v1146 = vrot.slane %v1144, 1
        %v1147 = vsel %vm971, %v1142, %v1146
        %v1148 = vshrl.u32 %v960, 16
        %v1150 = vor.u32 %v1148, %v1146
        %v1152 = vshll.u32 %v961, 16
        %v1154 = vrot.slane %v1152, 1
        %v1155 = vsel %vm971, %v1150, %v1154
        %v1156 = vshrl.u32 %v961, 16
        %v1158 = vor.u32 %v1156, %v1154
        %v1160 = vshll.u32 %v962, 16
        %v1162 = vrot.slane %v1160, 1
        %v1163 = vsel %vm971, %v1158, %v1162
        %v1164 = vshrl.u32 %v962, 16
        %v1166 = vor.u32 %v1164, %v1162
        %v1168 = vshll.u32 %v963, 16
        %v1170 = vrot.slane %v1168, 1
        %v1171 = vsel %vm971, %v1166, %v1170
        %v1172 = vshrl.u32 %v963, 16
        %v1174 = vor.u32 %v1172, %v1170
        %v1176 = vshll.u32 %v964, 16
        %v1178 = vrot.slane %v1176, 1
        %v1179 = vsel %vm971, %v1174, %v1178
        %v1180 = vshrl.u32 %v964, 16
        %v1182 = vor.u32 %v1180, %v1178
        %v1184 = vshll.u32 %v965, 16
        %v1186 = vrot.slane %v1184, 1
        %v1187 = vsel %vm971, %v1182, %v1186
        %v1188 = vshrl.u32 %v965, 16
        %v1190 = vor.u32 %v1188, %v1186
        %v1192 = vshll.u32 %v966, 16
        %v1194 = vrot.slane %v1192, 1
        %v1195 = vsel %vm971, %v1190, %v1194
        %v1196 = vshrl.u32 %v966, 16
        %v1198 = vor.u32 %v1196, %v1194
        %v1200 = vshll.u32 %v967, 16
        %v1202 = vrot.slane %v1200, 1
        %v1203 = vsel %vm971, %v1198, %v1202
        %v1204 = vshrl.u32 %v967, 16
        %v1206 = vor.u32 %v1204, %v1202
        %v1208 = vshll.u32 %v968, 16
        %v1210 = vrot.slane %v1208, 1
        %v1211 = vsel %vm971, %v1206, %v1210
        %v1212 = vshrl.u32 %v968, 16
        %v1214 = vor.u32 %v1212, %v1210
        %v1216 = vshll.u32 %v969, 16
        %v1218 = vrot.slane %v1216, 1
        %v1219 = vsel %vm971, %v1214, %v1218
        %v1220 = vshrl.u32 %v969, 16
        %v1222 = vor.u32 %v1220, %v1218
        %v1224 = vshll.u32 %v970, 16
        %v1226 = vrot.slane %v1224, 1
        %v1227 = vsel %vm971, %v1222, %v1226
        %v1228 = vshrl.u32 %v970, 16
        %v1230 = vor.u32 %v1228, %v1226
        %v1232 = vshll.u32 %v810, 16
        %v1234 = vrot.slane %v1232, 1
        %v1235 = vsel %vm971, %v1230, %v1234
        %1236 = vrot.lane.b32.xlu0 %v983, 3
        %v1237 = vpop.permute.xlu0 %1236
        %1238 = vrot.lane.b32.xlu0 %v991, 3
        %v1239 = vpop.permute.xlu0 %1238
        %1240 = vrot.lane.b32.xlu0 %v999, 3
        %v1241 = vpop.permute.xlu0 %1240
        %1242 = vrot.lane.b32.xlu0 %v1007, 3
        %v1243 = vpop.permute.xlu0 %1242
        %1244 = vrot.lane.b32.xlu0 %v1015, 3
        %v1245 = vpop.permute.xlu0 %1244
        %1246 = vrot.lane.b32.xlu0 %v1023, 3
        %v1247 = vpop.permute.xlu0 %1246
        %1248 = vrot.lane.b32.xlu0 %v1031, 3
        %v1249 = vpop.permute.xlu0 %1248
        %1250 = vrot.lane.b32.xlu0 %v1039, 3
        %v1251 = vpop.permute.xlu0 %1250
        %1252 = vrot.lane.b32.xlu0 %v1047, 3
        %v1253 = vpop.permute.xlu0 %1252
        %1254 = vrot.lane.b32.xlu0 %v1055, 3
        %v1255 = vpop.permute.xlu0 %1254
        %1256 = vrot.lane.b32.xlu0 %v1063, 3
        %v1257 = vpop.permute.xlu0 %1256
        %1258 = vrot.lane.b32.xlu0 %v1071, 3
        %v1259 = vpop.permute.xlu0 %1258
        %1260 = vrot.lane.b32.xlu0 %v1079, 3
        %v1261 = vpop.permute.xlu0 %1260
        %1262 = vrot.lane.b32.xlu0 %v1087, 3
        %v1263 = vpop.permute.xlu0 %1262
        %1264 = vrot.lane.b32.xlu0 %v1095, 3
        %v1265 = vpop.permute.xlu0 %1264
        %1266 = vrot.lane.b32.xlu0 %v1103, 3
        %v1267 = vpop.permute.xlu0 %1266
        %1268 = vrot.lane.b32.xlu0 %v1115, 3
        %v1269 = vpop.permute.xlu0 %1268
        %1270 = vrot.lane.b32.xlu0 %v1123, 3
        %v1271 = vpop.permute.xlu0 %1270
        %1272 = vrot.lane.b32.xlu0 %v1131, 3
        %v1273 = vpop.permute.xlu0 %1272
        %1274 = vrot.lane.b32.xlu0 %v1139, 3
        %v1275 = vpop.permute.xlu0 %1274
        %1276 = vrot.lane.b32.xlu0 %v1147, 3
        %v1277 = vpop.permute.xlu0 %1276
        %1278 = vrot.lane.b32.xlu0 %v1155, 3
        %v1279 = vpop.permute.xlu0 %1278
        %1280 = vrot.lane.b32.xlu0 %v1163, 3
        %v1281 = vpop.permute.xlu0 %1280
        %1282 = vrot.lane.b32.xlu0 %v1171, 3
        %v1283 = vpop.permute.xlu0 %1282
        %1284 = vrot.lane.b32.xlu0 %v1179, 3
        %v1285 = vpop.permute.xlu0 %1284
        %1286 = vrot.lane.b32.xlu0 %v1187, 3
        %v1287 = vpop.permute.xlu0 %1286
        %1288 = vrot.lane.b32.xlu0 %v1195, 3
        %v1289 = vpop.permute.xlu0 %1288
        %1290 = vrot.lane.b32.xlu0 %v1203, 3
        %v1291 = vpop.permute.xlu0 %1290
        %1292 = vrot.lane.b32.xlu0 %v1211, 3
        %v1293 = vpop.permute.xlu0 %1292
        %1294 = vrot.lane.b32.xlu0 %v1219, 3
        %v1295 = vpop.permute.xlu0 %1294
        %1296 = vrot.lane.b32.xlu0 %v1227, 3
        %v1297 = vpop.permute.xlu0 %1296
        %1298 = vrot.lane.b32.xlu0 %v1235, 3
        %v1299 = vpop.permute.xlu0 %1298
        %vm1302 = vcmask 1046528
        %v1303 = vrot.slane %v939, 1
        %v1304 = vrot.slane %v940, 1
        %v1305 = vsel %vm1302, %v1303, %v1304
        %v1306 = vrot.slane %v941, 1
        %v1307 = vsel %vm1302, %v1304, %v1306
        %v1308 = vrot.slane %v942, 1
        %v1309 = vsel %vm1302, %v1306, %v1308
        %v1310 = vrot.slane %v943, 1
        %v1311 = vsel %vm1302, %v1308, %v1310
        %v1312 = vrot.slane %v944, 1
        %v1313 = vsel %vm1302, %v1310, %v1312
        %v1314 = vrot.slane %v945, 1
        %v1315 = vsel %vm1302, %v1312, %v1314
        %v1316 = vrot.slane %v946, 1
        %v1317 = vsel %vm1302, %v1314, %v1316
        %v1318 = vrot.slane %v947, 1
        %v1319 = vsel %vm1302, %v1316, %v1318
        %v1320 = vrot.slane %v948, 1
        %v1321 = vsel %vm1302, %v1318, %v1320
        %v1322 = vrot.slane %v949, 1
        %v1323 = vsel %vm1302, %v1320, %v1322
        %v1324 = vrot.slane %v950, 1
        %v1325 = vsel %vm1302, %v1322, %v1324
        %v1326 = vrot.slane %v951, 1
        %v1327 = vsel %vm1302, %v1324, %v1326
        %v1328 = vrot.slane %v952, 1
        %v1329 = vsel %vm1302, %v1326, %v1328
        %v1330 = vrot.slane %v953, 1
        %v1331 = vsel %vm1302, %v1328, %v1330
        %v1332 = vrot.slane %v954, 1
        %v1333 = vsel %vm1302, %v1330, %v1332
        %v1334 = vrot.slane %v809, 1
        %v1335 = vsel %vm1302, %v1332, %v1334
        %v1336 = vrot.slane %v955, 1
        %v1337 = vrot.slane %v956, 1
        %v1338 = vsel %vm1302, %v1336, %v1337
        %v1339 = vrot.slane %v957, 1
        %v1340 = vsel %vm1302, %v1337, %v1339
        %v1341 = vrot.slane %v958, 1
        %v1342 = vsel %vm1302, %v1339, %v1341
        %v1343 = vrot.slane %v959, 1
        %v1344 = vsel %vm1302, %v1341, %v1343
        %v1345 = vrot.slane %v960, 1
        %v1346 = vsel %vm1302, %v1343, %v1345
        %v1347 = vrot.slane %v961, 1
        %v1348 = vsel %vm1302, %v1345, %v1347
        %v1349 = vrot.slane %v962, 1
        %v1350 = vsel %vm1302, %v1347, %v1349
        %v1351 = vrot.slane %v963, 1
        %v1352 = vsel %vm1302, %v1349, %v1351
        %v1353 = vrot.slane %v964, 1
        %v1354 = vsel %vm1302, %v1351, %v1353
        %v1355 = vrot.slane %v965, 1
        %v1356 = vsel %vm1302, %v1353, %v1355
        %v1357 = vrot.slane %v966, 1
        %v1358 = vsel %vm1302, %v1355, %v1357
        %v1359 = vrot.slane %v967, 1
        %v1360 = vsel %vm1302, %v1357, %v1359
        %v1361 = vrot.slane %v968, 1
        %v1362 = vsel %vm1302, %v1359, %v1361
        %v1363 = vrot.slane %v969, 1
        %v1364 = vsel %vm1302, %v1361, %v1363
        %v1365 = vrot.slane %v970, 1
        %v1366 = vsel %vm1302, %v1363, %v1365
        %v1367 = vrot.slane %v810, 1
        %v1368 = vsel %vm1302, %v1365, %v1367
        %1369 = vrot.lane.b32.xlu0 %v1305, 6
        %v1370 = vpop.permute.xlu0 %1369
        %1371 = vrot.lane.b32.xlu0 %v1307, 6
        %v1372 = vpop.permute.xlu0 %1371
        %1373 = vrot.lane.b32.xlu0 %v1309, 6
        %v1374 = vpop.permute.xlu0 %1373
        %1375 = vrot.lane.b32.xlu0 %v1311, 6
        %v1376 = vpop.permute.xlu0 %1375
        %1377 = vrot.lane.b32.xlu0 %v1313, 6
        %v1378 = vpop.permute.xlu0 %1377
        %1379 = vrot.lane.b32.xlu0 %v1315, 6
        %v1380 = vpop.permute.xlu0 %1379
        %1381 = vrot.lane.b32.xlu0 %v1317, 6
        %v1382 = vpop.permute.xlu0 %1381
        %1383 = vrot.lane.b32.xlu0 %v1319, 6
        %v1384 = vpop.permute.xlu0 %1383
        %1385 = vrot.lane.b32.xlu0 %v1321, 6
        %v1386 = vpop.permute.xlu0 %1385
        %1387 = vrot.lane.b32.xlu0 %v1323, 6
        %v1388 = vpop.permute.xlu0 %1387
        %1389 = vrot.lane.b32.xlu0 %v1325, 6
        %v1390 = vpop.permute.xlu0 %1389
        %1391 = vrot.lane.b32.xlu0 %v1327, 6
        %v1392 = vpop.permute.xlu0 %1391
        %1393 = vrot.lane.b32.xlu0 %v1329, 6
        %v1394 = vpop.permute.xlu0 %1393
        %1395 = vrot.lane.b32.xlu0 %v1331, 6
        %v1396 = vpop.permute.xlu0 %1395
        %1397 = vrot.lane.b32.xlu0 %v1333, 6
        %v1398 = vpop.permute.xlu0 %1397
        %1399 = vrot.lane.b32.xlu0 %v1335, 6
        %v1400 = vpop.permute.xlu0 %1399
        %1401 = vrot.lane.b32.xlu0 %v1338, 6
        %v1402 = vpop.permute.xlu0 %1401
        %1403 = vrot.lane.b32.xlu0 %v1340, 6
        %v1404 = vpop.permute.xlu0 %1403
        %1405 = vrot.lane.b32.xlu0 %v1342, 6
        %v1406 = vpop.permute.xlu0 %1405
        %1407 = vrot.lane.b32.xlu0 %v1344, 6
        %v1408 = vpop.permute.xlu0 %1407
        %1409 = vrot.lane.b32.xlu0 %v1346, 6
        %v1410 = vpop.permute.xlu0 %1409
        %1411 = vrot.lane.b32.xlu0 %v1348, 6
        %v1412 = vpop.permute.xlu0 %1411
        %1413 = vrot.lane.b32.xlu0 %v1350, 6
        %v1414 = vpop.permute.xlu0 %1413
        %1415 = vrot.lane.b32.xlu0 %v1352, 6
        %v1416 = vpop.permute.xlu0 %1415
        %1417 = vrot.lane.b32.xlu0 %v1354, 6
        %v1418 = vpop.permute.xlu0 %1417
        %1419 = vrot.lane.b32.xlu0 %v1356, 6
        %v1420 = vpop.permute.xlu0 %1419
        %1421 = vrot.lane.b32.xlu0 %v1358, 6
        %v1422 = vpop.permute.xlu0 %1421
        %1423 = vrot.lane.b32.xlu0 %v1360, 6
        %v1424 = vpop.permute.xlu0 %1423
        %1425 = vrot.lane.b32.xlu0 %v1362, 6
        %v1426 = vpop.permute.xlu0 %1425
        %1427 = vrot.lane.b32.xlu0 %v1364, 6
        %v1428 = vpop.permute.xlu0 %1427
        %1429 = vrot.lane.b32.xlu0 %v1366, 6
        %v1430 = vpop.permute.xlu0 %1429
        %1431 = vrot.lane.b32.xlu0 %v1368, 6
        %v1432 = vpop.permute.xlu0 %1431
        %vm1433 = vsmask.f32 6400
        %v1434 = vrot.slane %v973, 1
        %v1435 = vrot.slane %v975, 2
        %v1436 = vor.u32 %v1434, %v1435
        %v1437 = vrot.slane %v984, 1
        %v1438 = vrot.slane %v980, 2
        %v1439 = vor.u32 %v1437, %v1438
        %v1440 = vsel %vm1433, %v1436, %v1439
        %v1441 = vrot.slane %v992, 1
        %v1442 = vrot.slane %v988, 2
        %v1443 = vor.u32 %v1441, %v1442
        %v1444 = vsel %vm1433, %v1439, %v1443
        %v1445 = vrot.slane %v1000, 1
        %v1446 = vrot.slane %v996, 2
        %v1447 = vor.u32 %v1445, %v1446
        %v1448 = vsel %vm1433, %v1443, %v1447
        %v1449 = vrot.slane %v1008, 1
        %v1450 = vrot.slane %v1004, 2
        %v1451 = vor.u32 %v1449, %v1450
        %v1452 = vsel %vm1433, %v1447, %v1451
        %v1453 = vrot.slane %v1016, 1
        %v1454 = vrot.slane %v1012, 2
        %v1455 = vor.u32 %v1453, %v1454
        %v1456 = vsel %vm1433, %v1451, %v1455
        %v1457 = vrot.slane %v1024, 1
        %v1458 = vrot.slane %v1020, 2
        %v1459 = vor.u32 %v1457, %v1458
        %v1460 = vsel %vm1433, %v1455, %v1459
        %v1461 = vrot.slane %v1032, 1
        %v1462 = vrot.slane %v1028, 2
        %v1463 = vor.u32 %v1461, %v1462
        %v1464 = vsel %vm1433, %v1459, %v1463
        %v1465 = vrot.slane %v1040, 1
        %v1466 = vrot.slane %v1036, 2
        %v1467 = vor.u32 %v1465, %v1466
        %v1468 = vsel %vm1433, %v1463, %v1467
        %v1469 = vrot.slane %v1048, 1
        %v1470 = vrot.slane %v1044, 2
        %v1471 = vor.u32 %v1469, %v1470
        %v1472 = vsel %vm1433, %v1467, %v1471
        %v1473 = vrot.slane %v1056, 1
        %v1474 = vrot.slane %v1052, 2
        %v1475 = vor.u32 %v1473, %v1474
        %v1476 = vsel %vm1433, %v1471, %v1475
        %v1477 = vrot.slane %v1064, 1
        %v1478 = vrot.slane %v1060, 2
        %v1479 = vor.u32 %v1477, %v1478
        %v1480 = vsel %vm1433, %v1475, %v1479
        %v1481 = vrot.slane %v1072, 1
        %v1482 = vrot.slane %v1068, 2
        %v1483 = vor.u32 %v1481, %v1482
        %v1484 = vsel %vm1433, %v1479, %v1483
        %v1485 = vrot.slane %v1080, 1
        %v1486 = vrot.slane %v1076, 2
        %v1487 = vor.u32 %v1485, %v1486
        %v1488 = vsel %vm1433, %v1483, %v1487
        %v1489 = vrot.slane %v1088, 1
        %v1490 = vrot.slane %v1084, 2
        %v1491 = vor.u32 %v1489, %v1490
        %v1492 = vsel %vm1433, %v1487, %v1491
        %v1493 = vrot.slane %v1096, 1
        %v1494 = vrot.slane %v1092, 2
        %v1495 = vor.u32 %v1493, %v1494
        %v1496 = vsel %vm1433, %v1491, %v1495
        %v1497 = vshrl.u32 %v809, 16
        %v1499 = vrot.slane %v1497, 1
        %v1500 = vrot.slane %v1100, 2
        %v1501 = vor.u32 %v1499, %v1500
        %v1502 = vsel %vm1433, %v1495, %v1501
        %v1503 = vrot.slane %v1105, 1
        %v1504 = vrot.slane %v1107, 2
        %v1505 = vor.u32 %v1503, %v1504
        %v1506 = vrot.slane %v1116, 1
        %v1507 = vrot.slane %v1112, 2
        %v1508 = vor.u32 %v1506, %v1507
        %v1509 = vsel %vm1433, %v1505, %v1508
        %v1510 = vrot.slane %v1124, 1
        %v1511 = vrot.slane %v1120, 2
        %v1512 = vor.u32 %v1510, %v1511
        %v1513 = vsel %vm1433, %v1508, %v1512
        %v1514 = vrot.slane %v1132, 1
        %v1515 = vrot.slane %v1128, 2
        %v1516 = vor.u32 %v1514, %v1515
        %v1517 = vsel %vm1433, %v1512, %v1516
        %v1518 = vrot.slane %v1140, 1
        %v1519 = vrot.slane %v1136, 2
        %v1520 = vor.u32 %v1518, %v1519
        %v1521 = vsel %vm1433, %v1516, %v1520
        %v1522 = vrot.slane %v1148, 1
        %v1523 = vrot.slane %v1144, 2
        %v1524 = vor.u32 %v1522, %v1523
        %v1525 = vsel %vm1433, %v1520, %v1524
        %v1526 = vrot.slane %v1156, 1
        %v1527 = vrot.slane %v1152, 2
        %v1528 = vor.u32 %v1526, %v1527
        %v1529 = vsel %vm1433, %v1524, %v1528
        %v1530 = vrot.slane %v1164, 1
        %v1531 = vrot.slane %v1160, 2
        %v1532 = vor.u32 %v1530, %v1531
        %v1533 = vsel %vm1433, %v1528, %v1532
        %v1534 = vrot.slane %v1172, 1
        %v1535 = vrot.slane %v1168, 2
        %v1536 = vor.u32 %v1534, %v1535
        %v1537 = vsel %vm1433, %v1532, %v1536
        %v1538 = vrot.slane %v1180, 1
        %v1539 = vrot.slane %v1176, 2
        %v1540 = vor.u32 %v1538, %v1539
        %v1541 = vsel %vm1433, %v1536, %v1540
        %v1542 = vrot.slane %v1188, 1
        %v1543 = vrot.slane %v1184, 2
        %v1544 = vor.u32 %v1542, %v1543
        %v1545 = vsel %vm1433, %v1540, %v1544
        %v1546 = vrot.slane %v1196, 1
        %v1547 = vrot.slane %v1192, 2
        %v1548 = vor.u32 %v1546, %v1547
        %v1549 = vsel %vm1433, %v1544, %v1548
        %v1550 = vrot.slane %v1204, 1
        %v1551 = vrot.slane %v1200, 2
        %v1552 = vor.u32 %v1550, %v1551
        %v1553 = vsel %vm1433, %v1548, %v1552
        %v1554 = vrot.slane %v1212, 1
        %v1555 = vrot.slane %v1208, 2
        %v1556 = vor.u32 %v1554, %v1555
        %v1557 = vsel %vm1433, %v1552, %v1556
        %v1558 = vrot.slane %v1220, 1
        %v1559 = vrot.slane %v1216, 2
        %v1560 = vor.u32 %v1558, %v1559
        %v1561 = vsel %vm1433, %v1556, %v1560
        %v1562 = vrot.slane %v1228, 1
        %v1563 = vrot.slane %v1224, 2
        %v1564 = vor.u32 %v1562, %v1563
        %v1565 = vsel %vm1433, %v1560, %v1564
        %v1566 = vshrl.u32 %v810, 16
        %v1568 = vrot.slane %v1566, 1
        %v1569 = vrot.slane %v1232, 2
        %v1570 = vor.u32 %v1568, %v1569
        %v1571 = vsel %vm1433, %v1564, %v1570
        %1572 = vrot.lane.b32.xlu0 %v1440, 9
        %v1573 = vpop.permute.xlu0 %1572
        %1574 = vrot.lane.b32.xlu0 %v1444, 9
        %v1575 = vpop.permute.xlu0 %1574
        %1576 = vrot.lane.b32.xlu0 %v1448, 9
        %v1577 = vpop.permute.xlu0 %1576
        %1578 = vrot.lane.b32.xlu0 %v1452, 9
        %v1579 = vpop.permute.xlu0 %1578
        %1580 = vrot.lane.b32.xlu0 %v1456, 9
        %v1581 = vpop.permute.xlu0 %1580
        %1582 = vrot.lane.b32.xlu0 %v1460, 9
        %v1583 = vpop.permute.xlu0 %1582
        %1584 = vrot.lane.b32.xlu0 %v1464, 9
        %v1585 = vpop.permute.xlu0 %1584
        %1586 = vrot.lane.b32.xlu0 %v1468, 9
        %v1587 = vpop.permute.xlu0 %1586
        %1588 = vrot.lane.b32.xlu0 %v1472, 9
        %v1589 = vpop.permute.xlu0 %1588
        %1590 = vrot.lane.b32.xlu0 %v1476, 9
        %v1591 = vpop.permute.xlu0 %1590
        %1592 = vrot.lane.b32.xlu0 %v1480, 9
        %v1593 = vpop.permute.xlu0 %1592
        %1594 = vrot.lane.b32.xlu0 %v1484, 9
        %v1595 = vpop.permute.xlu0 %1594
        %1596 = vrot.lane.b32.xlu0 %v1488, 9
        %v1597 = vpop.permute.xlu0 %1596
        %1598 = vrot.lane.b32.xlu0 %v1492, 9
        %v1599 = vpop.permute.xlu0 %1598
        %1600 = vrot.lane.b32.xlu0 %v1496, 9
        %v1601 = vpop.permute.xlu0 %1600
        %1602 = vrot.lane.b32.xlu0 %v1502, 9
        %v1603 = vpop.permute.xlu0 %1602
        %1604 = vrot.lane.b32.xlu0 %v1509, 9
        %v1605 = vpop.permute.xlu0 %1604
        %1606 = vrot.lane.b32.xlu0 %v1513, 9
        %v1607 = vpop.permute.xlu0 %1606
        %1608 = vrot.lane.b32.xlu0 %v1517, 9
        %v1609 = vpop.permute.xlu0 %1608
        %1610 = vrot.lane.b32.xlu0 %v1521, 9
        %v1611 = vpop.permute.xlu0 %1610
        %1612 = vrot.lane.b32.xlu0 %v1525, 9
        %v1613 = vpop.permute.xlu0 %1612
        %1614 = vrot.lane.b32.xlu0 %v1529, 9
        %v1615 = vpop.permute.xlu0 %1614
        %1616 = vrot.lane.b32.xlu0 %v1533, 9
        %v1617 = vpop.permute.xlu0 %1616
        %1618 = vrot.lane.b32.xlu0 %v1537, 9
        %v1619 = vpop.permute.xlu0 %1618
        %1620 = vrot.lane.b32.xlu0 %v1541, 9
        %v1621 = vpop.permute.xlu0 %1620
        %1622 = vrot.lane.b32.xlu0 %v1545, 9
        %v1623 = vpop.permute.xlu0 %1622
        %1624 = vrot.lane.b32.xlu0 %v1549, 9
        %v1625 = vpop.permute.xlu0 %1624
        %1626 = vrot.lane.b32.xlu0 %v1553, 9
        %v1627 = vpop.permute.xlu0 %1626
        %1628 = vrot.lane.b32.xlu0 %v1557, 9
        %v1629 = vpop.permute.xlu0 %1628
        %1630 = vrot.lane.b32.xlu0 %v1561, 9
        %v1631 = vpop.permute.xlu0 %1630
        %1632 = vrot.lane.b32.xlu0 %v1565, 9
        %v1633 = vpop.permute.xlu0 %1632
        %1634 = vrot.lane.b32.xlu0 %v1571, 9
        %v1635 = vpop.permute.xlu0 %1634
        %vm1636 = vcmask 1045504
        %v1637 = vrot.slane %v939, 2
        %v1638 = vrot.slane %v940, 2
        %v1639 = vsel %vm1636, %v1637, %v1638
        %v1640 = vrot.slane %v941, 2
        %v1641 = vsel %vm1636, %v1638, %v1640
        %v1642 = vrot.slane %v942, 2
        %v1643 = vsel %vm1636, %v1640, %v1642
        %v1644 = vrot.slane %v943, 2
        %v1645 = vsel %vm1636, %v1642, %v1644
        %v1646 = vrot.slane %v944, 2
        %v1647 = vsel %vm1636, %v1644, %v1646
        %v1648 = vrot.slane %v945, 2
        %v1649 = vsel %vm1636, %v1646, %v1648
        %v1650 = vrot.slane %v946, 2
        %v1651 = vsel %vm1636, %v1648, %v1650
        %v1652 = vrot.slane %v947, 2
        %v1653 = vsel %vm1636, %v1650, %v1652
        %v1654 = vrot.slane %v948, 2
        %v1655 = vsel %vm1636, %v1652, %v1654
        %v1656 = vrot.slane %v949, 2
        %v1657 = vsel %vm1636, %v1654, %v1656
        %v1658 = vrot.slane %v950, 2
        %v1659 = vsel %vm1636, %v1656, %v1658
        %v1660 = vrot.slane %v951, 2
        %v1661 = vsel %vm1636, %v1658, %v1660
        %v1662 = vrot.slane %v952, 2
        %v1663 = vsel %vm1636, %v1660, %v1662
        %v1664 = vrot.slane %v953, 2
        %v1665 = vsel %vm1636, %v1662, %v1664
        %v1666 = vrot.slane %v954, 2
        %v1667 = vsel %vm1636, %v1664, %v1666
        %v1668 = vrot.slane %v809, 2
        %v1669 = vsel %vm1636, %v1666, %v1668
        %v1670 = vrot.slane %v955, 2
        %v1671 = vrot.slane %v956, 2
        %v1672 = vsel %vm1636, %v1670, %v1671
        %v1673 = vrot.slane %v957, 2
        %v1674 = vsel %vm1636, %v1671, %v1673
        %v1675 = vrot.slane %v958, 2
        %v1676 = vsel %vm1636, %v1673, %v1675
        %v1677 = vrot.slane %v959, 2
        %v1678 = vsel %vm1636, %v1675, %v1677
        %v1679 = vrot.slane %v960, 2
        %v1680 = vsel %vm1636, %v1677, %v1679
        %v1681 = vrot.slane %v961, 2
        %v1682 = vsel %vm1636, %v1679, %v1681
        %v1683 = vrot.slane %v962, 2
        %v1684 = vsel %vm1636, %v1681, %v1683
        %v1685 = vrot.slane %v963, 2
        %v1686 = vsel %vm1636, %v1683, %v1685
        %v1687 = vrot.slane %v964, 2
        %v1688 = vsel %vm1636, %v1685, %v1687
        %v1689 = vrot.slane %v965, 2
        %v1690 = vsel %vm1636, %v1687, %v1689
        %v1691 = vrot.slane %v966, 2
        %v1692 = vsel %vm1636, %v1689, %v1691
        %v1693 = vrot.slane %v967, 2
        %v1694 = vsel %vm1636, %v1691, %v1693
        %v1695 = vrot.slane %v968, 2
        %v1696 = vsel %vm1636, %v1693, %v1695
        %v1697 = vrot.slane %v969, 2
        %v1698 = vsel %vm1636, %v1695, %v1697
        %v1699 = vrot.slane %v970, 2
        %v1700 = vsel %vm1636, %v1697, %v1699
        %v1701 = vrot.slane %v810, 2
        %v1702 = vsel %vm1636, %v1699, %v1701
        %1703 = vrot.lane.b32.xlu0 %v1639, 12
        %v1704 = vpop.permute.xlu0 %1703
        %1705 = vrot.lane.b32.xlu0 %v1641, 12
        %v1706 = vpop.permute.xlu0 %1705
        %1707 = vrot.lane.b32.xlu0 %v1643, 12
        %v1708 = vpop.permute.xlu0 %1707
        %1709 = vrot.lane.b32.xlu0 %v1645, 12
        %v1710 = vpop.permute.xlu0 %1709
        %1711 = vrot.lane.b32.xlu0 %v1647, 12
        %v1712 = vpop.permute.xlu0 %1711
        %1713 = vrot.lane.b32.xlu0 %v1649, 12
        %v1714 = vpop.permute.xlu0 %1713
        %1715 = vrot.lane.b32.xlu0 %v1651, 12
        %v1716 = vpop.permute.xlu0 %1715
        %1717 = vrot.lane.b32.xlu0 %v1653, 12
        %v1718 = vpop.permute.xlu0 %1717
        %1719 = vrot.lane.b32.xlu0 %v1655, 12
        %v1720 = vpop.permute.xlu0 %1719
        %1721 = vrot.lane.b32.xlu0 %v1657, 12
        %v1722 = vpop.permute.xlu0 %1721
        %1723 = vrot.lane.b32.xlu0 %v1659, 12
        %v1724 = vpop.permute.xlu0 %1723
        %1725 = vrot.lane.b32.xlu0 %v1661, 12
        %v1726 = vpop.permute.xlu0 %1725
        %1727 = vrot.lane.b32.xlu0 %v1663, 12
        %v1728 = vpop.permute.xlu0 %1727
        %1729 = vrot.lane.b32.xlu0 %v1665, 12
        %v1730 = vpop.permute.xlu0 %1729
        %1731 = vrot.lane.b32.xlu0 %v1667, 12
        %v1732 = vpop.permute.xlu0 %1731
        %1733 = vrot.lane.b32.xlu0 %v1669, 12
        %v1734 = vpop.permute.xlu0 %1733
        %1735 = vrot.lane.b32.xlu0 %v1672, 12
        %v1736 = vpop.permute.xlu0 %1735
        %1737 = vrot.lane.b32.xlu0 %v1674, 12
        %v1738 = vpop.permute.xlu0 %1737
        %1739 = vrot.lane.b32.xlu0 %v1676, 12
        %v1740 = vpop.permute.xlu0 %1739
        %1741 = vrot.lane.b32.xlu0 %v1678, 12
        %v1742 = vpop.permute.xlu0 %1741
        %1743 = vrot.lane.b32.xlu0 %v1680, 12
        %v1744 = vpop.permute.xlu0 %1743
        %1745 = vrot.lane.b32.xlu0 %v1682, 12
        %v1746 = vpop.permute.xlu0 %1745
        %1747 = vrot.lane.b32.xlu0 %v1684, 12
        %v1748 = vpop.permute.xlu0 %1747
        %1749 = vrot.lane.b32.xlu0 %v1686, 12
        %v1750 = vpop.permute.xlu0 %1749
        %1751 = vrot.lane.b32.xlu0 %v1688, 12
        %v1752 = vpop.permute.xlu0 %1751
        %1753 = vrot.lane.b32.xlu0 %v1690, 12
        %v1754 = vpop.permute.xlu0 %1753
        %1755 = vrot.lane.b32.xlu0 %v1692, 12
        %v1756 = vpop.permute.xlu0 %1755
        %1757 = vrot.lane.b32.xlu0 %v1694, 12
        %v1758 = vpop.permute.xlu0 %1757
        %1759 = vrot.lane.b32.xlu0 %v1696, 12
        %v1760 = vpop.permute.xlu0 %1759
        %1761 = vrot.lane.b32.xlu0 %v1698, 12
        %v1762 = vpop.permute.xlu0 %1761
        %1763 = vrot.lane.b32.xlu0 %v1700, 12
        %v1764 = vpop.permute.xlu0 %1763
        %1765 = vrot.lane.b32.xlu0 %v1702, 12
        %v1766 = vpop.permute.xlu0 %1765
        %vm1767 = vsmask.f32 5376
        %v1768 = vrot.slane %v973, 2
        %v1769 = vrot.slane %v975, 3
        %v1770 = vor.u32 %v1768, %v1769
        %v1771 = vrot.slane %v984, 2
        %v1772 = vrot.slane %v980, 3
        %v1773 = vor.u32 %v1771, %v1772
        %v1774 = vsel %vm1767, %v1770, %v1773
        %v1775 = vrot.slane %v992, 2
        %v1776 = vrot.slane %v988, 3
        %v1777 = vor.u32 %v1775, %v1776
        %v1778 = vsel %vm1767, %v1773, %v1777
        %v1779 = vrot.slane %v1000, 2
        %v1780 = vrot.slane %v996, 3
        %v1781 = vor.u32 %v1779, %v1780
        %v1782 = vsel %vm1767, %v1777, %v1781
        %v1783 = vrot.slane %v1008, 2
        %v1784 = vrot.slane %v1004, 3
        %v1785 = vor.u32 %v1783, %v1784
        %v1786 = vsel %vm1767, %v1781, %v1785
        %v1787 = vrot.slane %v1016, 2
        %v1788 = vrot.slane %v1012, 3
        %v1789 = vor.u32 %v1787, %v1788
        %v1790 = vsel %vm1767, %v1785, %v1789
        %v1791 = vrot.slane %v1024, 2
        %v1792 = vrot.slane %v1020, 3
        %v1793 = vor.u32 %v1791, %v1792
        %v1794 = vsel %vm1767, %v1789, %v1793
        %v1795 = vrot.slane %v1032, 2
        %v1796 = vrot.slane %v1028, 3
        %v1797 = vor.u32 %v1795, %v1796
        %v1798 = vsel %vm1767, %v1793, %v1797
        %v1799 = vrot.slane %v1040, 2
        %v1800 = vrot.slane %v1036, 3
        %v1801 = vor.u32 %v1799, %v1800
        %v1802 = vsel %vm1767, %v1797, %v1801
        %v1803 = vrot.slane %v1048, 2
        %v1804 = vrot.slane %v1044, 3
        %v1805 = vor.u32 %v1803, %v1804
        %v1806 = vsel %vm1767, %v1801, %v1805
        %v1807 = vrot.slane %v1056, 2
        %v1808 = vrot.slane %v1052, 3
        %v1809 = vor.u32 %v1807, %v1808
        %v1810 = vsel %vm1767, %v1805, %v1809
        %v1811 = vrot.slane %v1064, 2
        %v1812 = vrot.slane %v1060, 3
        %v1813 = vor.u32 %v1811, %v1812
        %v1814 = vsel %vm1767, %v1809, %v1813
        %v1815 = vrot.slane %v1072, 2
        %v1816 = vrot.slane %v1068, 3
        %v1817 = vor.u32 %v1815, %v1816
        %v1818 = vsel %vm1767, %v1813, %v1817
        %v1819 = vrot.slane %v1080, 2
        %v1820 = vrot.slane %v1076, 3
        %v1821 = vor.u32 %v1819, %v1820
        %v1822 = vsel %vm1767, %v1817, %v1821
        %v1823 = vrot.slane %v1088, 2
        %v1824 = vrot.slane %v1084, 3
        %v1825 = vor.u32 %v1823, %v1824
        %v1826 = vsel %vm1767, %v1821, %v1825
        %v1827 = vrot.slane %v1096, 2
        %v1828 = vrot.slane %v1092, 3
        %v1829 = vor.u32 %v1827, %v1828
        %v1830 = vsel %vm1767, %v1825, %v1829
        %v1831 = vrot.slane %v1497, 2
        %v1832 = vrot.slane %v1100, 3
        %v1833 = vor.u32 %v1831, %v1832
        %v1834 = vsel %vm1767, %v1829, %v1833
        %v1835 = vrot.slane %v1105, 2
        %v1836 = vrot.slane %v1107, 3
        %v1837 = vor.u32 %v1835, %v1836
        %v1838 = vrot.slane %v1116, 2
        %v1839 = vrot.slane %v1112, 3
        %v1840 = vor.u32 %v1838, %v1839
        %v1841 = vsel %vm1767, %v1837, %v1840
        %v1842 = vrot.slane %v1124, 2
        %v1843 = vrot.slane %v1120, 3
        %v1844 = vor.u32 %v1842, %v1843
        %v1845 = vsel %vm1767, %v1840, %v1844
        %v1846 = vrot.slane %v1132, 2
        %v1847 = vrot.slane %v1128, 3
        %v1848 = vor.u32 %v1846, %v1847
        %v1849 = vsel %vm1767, %v1844, %v1848
        %v1850 = vrot.slane %v1140, 2
        %v1851 = vrot.slane %v1136, 3
        %v1852 = vor.u32 %v1850, %v1851
        %v1853 = vsel %vm1767, %v1848, %v1852
        %v1854 = vrot.slane %v1148, 2
        %v1855 = vrot.slane %v1144, 3
        %v1856 = vor.u32 %v1854, %v1855
        %v1857 = vsel %vm1767, %v1852, %v1856
        %v1858 = vrot.slane %v1156, 2
        %v1859 = vrot.slane %v1152, 3
        %v1860 = vor.u32 %v1858, %v1859
        %v1861 = vsel %vm1767, %v1856, %v1860
        %v1862 = vrot.slane %v1164, 2
        %v1863 = vrot.slane %v1160, 3
        %v1864 = vor.u32 %v1862, %v1863
        %v1865 = vsel %vm1767, %v1860, %v1864
        %v1866 = vrot.slane %v1172, 2
        %v1867 = vrot.slane %v1168, 3
        %v1868 = vor.u32 %v1866, %v1867
        %v1869 = vsel %vm1767, %v1864, %v1868
        %v1870 = vrot.slane %v1180, 2
        %v1871 = vrot.slane %v1176, 3
        %v1872 = vor.u32 %v1870, %v1871
        %v1873 = vsel %vm1767, %v1868, %v1872
        %v1874 = vrot.slane %v1188, 2
        %v1875 = vrot.slane %v1184, 3
        %v1876 = vor.u32 %v1874, %v1875
        %v1877 = vsel %vm1767, %v1872, %v1876
        %v1878 = vrot.slane %v1196, 2
        %v1879 = vrot.slane %v1192, 3
        %v1880 = vor.u32 %v1878, %v1879
        %v1881 = vsel %vm1767, %v1876, %v1880
        %v1882 = vrot.slane %v1204, 2
        %v1883 = vrot.slane %v1200, 3
        %v1884 = vor.u32 %v1882, %v1883
        %v1885 = vsel %vm1767, %v1880, %v1884
        %v1886 = vrot.slane %v1212, 2
        %v1887 = vrot.slane %v1208, 3
        %v1888 = vor.u32 %v1886, %v1887
        %v1889 = vsel %vm1767, %v1884, %v1888
        %v1890 = vrot.slane %v1220, 2
        %v1891 = vrot.slane %v1216, 3
        %v1892 = vor.u32 %v1890, %v1891
        %v1893 = vsel %vm1767, %v1888, %v1892
        %v1894 = vrot.slane %v1228, 2
        %v1895 = vrot.slane %v1224, 3
        %v1896 = vor.u32 %v1894, %v1895
        %v1897 = vsel %vm1767, %v1892, %v1896
        %v1898 = vrot.slane %v1566, 2
        %v1899 = vrot.slane %v1232, 3
        %v1900 = vor.u32 %v1898, %v1899
        %v1901 = vsel %vm1767, %v1896, %v1900
        %1902 = vrot.lane.b32.xlu0 %v1774, 15
        %v1903 = vpop.permute.xlu0 %1902
        %1904 = vrot.lane.b32.xlu0 %v1778, 15
        %v1905 = vpop.permute.xlu0 %1904
        %1906 = vrot.lane.b32.xlu0 %v1782, 15
        %v1907 = vpop.permute.xlu0 %1906
        %1908 = vrot.lane.b32.xlu0 %v1786, 15
        %v1909 = vpop.permute.xlu0 %1908
        %1910 = vrot.lane.b32.xlu0 %v1790, 15
        %v1911 = vpop.permute.xlu0 %1910
        %1912 = vrot.lane.b32.xlu0 %v1794, 15
        %v1913 = vpop.permute.xlu0 %1912
        %1914 = vrot.lane.b32.xlu0 %v1798, 15
        %v1915 = vpop.permute.xlu0 %1914
        %1916 = vrot.lane.b32.xlu0 %v1802, 15
        %v1917 = vpop.permute.xlu0 %1916
        %1918 = vrot.lane.b32.xlu0 %v1806, 15
        %v1919 = vpop.permute.xlu0 %1918
        %1920 = vrot.lane.b32.xlu0 %v1810, 15
        %v1921 = vpop.permute.xlu0 %1920
        %1922 = vrot.lane.b32.xlu0 %v1814, 15
        %v1923 = vpop.permute.xlu0 %1922
        %1924 = vrot.lane.b32.xlu0 %v1818, 15
        %v1925 = vpop.permute.xlu0 %1924
        %1926 = vrot.lane.b32.xlu0 %v1822, 15
        %v1927 = vpop.permute.xlu0 %1926
        %1928 = vrot.lane.b32.xlu0 %v1826, 15
        %v1929 = vpop.permute.xlu0 %1928
        %1930 = vrot.lane.b32.xlu0 %v1830, 15
        %v1931 = vpop.permute.xlu0 %1930
        %1932 = vrot.lane.b32.xlu0 %v1834, 15
        %v1933 = vpop.permute.xlu0 %1932
        %1934 = vrot.lane.b32.xlu0 %v1841, 15
        %v1935 = vpop.permute.xlu0 %1934
        %1936 = vrot.lane.b32.xlu0 %v1845, 15
        %v1937 = vpop.permute.xlu0 %1936
        %1938 = vrot.lane.b32.xlu0 %v1849, 15
        %v1939 = vpop.permute.xlu0 %1938
        %1940 = vrot.lane.b32.xlu0 %v1853, 15
        %v1941 = vpop.permute.xlu0 %1940
        %1942 = vrot.lane.b32.xlu0 %v1857, 15
        %v1943 = vpop.permute.xlu0 %1942
        %1944 = vrot.lane.b32.xlu0 %v1861, 15
        %v1945 = vpop.permute.xlu0 %1944
        %1946 = vrot.lane.b32.xlu0 %v1865, 15
        %v1947 = vpop.permute.xlu0 %1946
        %1948 = vrot.lane.b32.xlu0 %v1869, 15
        %v1949 = vpop.permute.xlu0 %1948
        %1950 = vrot.lane.b32.xlu0 %v1873, 15
        %v1951 = vpop.permute.xlu0 %1950
        %1952 = vrot.lane.b32.xlu0 %v1877, 15
        %v1953 = vpop.permute.xlu0 %1952
        %1954 = vrot.lane.b32.xlu0 %v1881, 15
        %v1955 = vpop.permute.xlu0 %1954
        %1956 = vrot.lane.b32.xlu0 %v1885, 15
        %v1957 = vpop.permute.xlu0 %1956
        %1958 = vrot.lane.b32.xlu0 %v1889, 15
        %v1959 = vpop.permute.xlu0 %1958
        %1960 = vrot.lane.b32.xlu0 %v1893, 15
        %v1961 = vpop.permute.xlu0 %1960
        %1962 = vrot.lane.b32.xlu0 %v1897, 15
        %v1963 = vpop.permute.xlu0 %1962
        %1964 = vrot.lane.b32.xlu0 %v1901, 15
        %v1965 = vpop.permute.xlu0 %1964
        %vm1966 = vcmask 1044480
        %v1967 = vrot.slane %v939, 3
        %v1968 = vrot.slane %v940, 3
        %v1969 = vsel %vm1966, %v1967, %v1968
        %v1970 = vrot.slane %v941, 3
        %v1971 = vsel %vm1966, %v1968, %v1970
        %v1972 = vrot.slane %v942, 3
        %v1973 = vsel %vm1966, %v1970, %v1972
        %v1974 = vrot.slane %v943, 3
        %v1975 = vsel %vm1966, %v1972, %v1974
        %v1976 = vrot.slane %v944, 3
        %v1977 = vsel %vm1966, %v1974, %v1976
        %v1978 = vrot.slane %v945, 3
        %v1979 = vsel %vm1966, %v1976, %v1978
        %v1980 = vrot.slane %v946, 3
        %v1981 = vsel %vm1966, %v1978, %v1980
        %v1982 = vrot.slane %v947, 3
        %v1983 = vsel %vm1966, %v1980, %v1982
        %v1984 = vrot.slane %v948, 3
        %v1985 = vsel %vm1966, %v1982, %v1984
        %v1986 = vrot.slane %v949, 3
        %v1987 = vsel %vm1966, %v1984, %v1986
        %v1988 = vrot.slane %v950, 3
        %v1989 = vsel %vm1966, %v1986, %v1988
        %v1990 = vrot.slane %v951, 3
        %v1991 = vsel %vm1966, %v1988, %v1990
        %v1992 = vrot.slane %v952, 3
        %v1993 = vsel %vm1966, %v1990, %v1992
        %v1994 = vrot.slane %v953, 3
        %v1995 = vsel %vm1966, %v1992, %v1994
        %v1996 = vrot.slane %v954, 3
        %v1997 = vsel %vm1966, %v1994, %v1996
        %v1998 = vrot.slane %v809, 3
        %v1999 = vsel %vm1966, %v1996, %v1998
        %v2000 = vrot.slane %v955, 3
        %v2001 = vrot.slane %v956, 3
        %v2002 = vsel %vm1966, %v2000, %v2001
        %v2003 = vrot.slane %v957, 3
        %v2004 = vsel %vm1966, %v2001, %v2003
        %v2005 = vrot.slane %v958, 3
        %v2006 = vsel %vm1966, %v2003, %v2005
        %v2007 = vrot.slane %v959, 3
        %v2008 = vsel %vm1966, %v2005, %v2007
        %v2009 = vrot.slane %v960, 3
        %v2010 = vsel %vm1966, %v2007, %v2009
        %v2011 = vrot.slane %v961, 3
        %v2012 = vsel %vm1966, %v2009, %v2011
        %v2013 = vrot.slane %v962, 3
        %v2014 = vsel %vm1966, %v2011, %v2013
        %v2015 = vrot.slane %v963, 3
        %v2016 = vsel %vm1966, %v2013, %v2015
        %v2017 = vrot.slane %v964, 3
        %v2018 = vsel %vm1966, %v2015, %v2017
        %v2019 = vrot.slane %v965, 3
        %v2020 = vsel %vm1966, %v2017, %v2019
        %v2021 = vrot.slane %v966, 3
        %v2022 = vsel %vm1966, %v2019, %v2021
        %v2023 = vrot.slane %v967, 3
        %v2024 = vsel %vm1966, %v2021, %v2023
        %v2025 = vrot.slane %v968, 3
        %v2026 = vsel %vm1966, %v2023, %v2025
        %v2027 = vrot.slane %v969, 3
        %v2028 = vsel %vm1966, %v2025, %v2027
        %v2029 = vrot.slane %v970, 3
        %v2030 = vsel %vm1966, %v2027, %v2029
        %v2031 = vrot.slane %v810, 3
        %v2032 = vsel %vm1966, %v2029, %v2031
        %2033 = vrot.lane.b32.xlu0 %v1969, 18
        %v2034 = vpop.permute.xlu0 %2033
        %2035 = vrot.lane.b32.xlu0 %v1971, 18
        %v2036 = vpop.permute.xlu0 %2035
        %2037 = vrot.lane.b32.xlu0 %v1973, 18
        %v2038 = vpop.permute.xlu0 %2037
        %2039 = vrot.lane.b32.xlu0 %v1975, 18
        %v2040 = vpop.permute.xlu0 %2039
        %2041 = vrot.lane.b32.xlu0 %v1977, 18
        %v2042 = vpop.permute.xlu0 %2041
        %2043 = vrot.lane.b32.xlu0 %v1979, 18
        %v2044 = vpop.permute.xlu0 %2043
        %2045 = vrot.lane.b32.xlu0 %v1981, 18
        %v2046 = vpop.permute.xlu0 %2045
        %2047 = vrot.lane.b32.xlu0 %v1983, 18
        %v2048 = vpop.permute.xlu0 %2047
        %2049 = vrot.lane.b32.xlu0 %v1985, 18
        %v2050 = vpop.permute.xlu0 %2049
        %2051 = vrot.lane.b32.xlu0 %v1987, 18
        %v2052 = vpop.permute.xlu0 %2051
        %2053 = vrot.lane.b32.xlu0 %v1989, 18
        %v2054 = vpop.permute.xlu0 %2053
        %2055 = vrot.lane.b32.xlu0 %v1991, 18
        %v2056 = vpop.permute.xlu0 %2055
        %2057 = vrot.lane.b32.xlu0 %v1993, 18
        %v2058 = vpop.permute.xlu0 %2057
        %2059 = vrot.lane.b32.xlu0 %v1995, 18
        %v2060 = vpop.permute.xlu0 %2059
        %2061 = vrot.lane.b32.xlu0 %v1997, 18
        %v2062 = vpop.permute.xlu0 %2061
        %2063 = vrot.lane.b32.xlu0 %v1999, 18
        %v2064 = vpop.permute.xlu0 %2063
        %2065 = vrot.lane.b32.xlu0 %v2002, 18
        %v2066 = vpop.permute.xlu0 %2065
        %2067 = vrot.lane.b32.xlu0 %v2004, 18
        %v2068 = vpop.permute.xlu0 %2067
        %2069 = vrot.lane.b32.xlu0 %v2006, 18
        %v2070 = vpop.permute.xlu0 %2069
        %2071 = vrot.lane.b32.xlu0 %v2008, 18
        %v2072 = vpop.permute.xlu0 %2071
        %2073 = vrot.lane.b32.xlu0 %v2010, 18
        %v2074 = vpop.permute.xlu0 %2073
        %2075 = vrot.lane.b32.xlu0 %v2012, 18
        %v2076 = vpop.permute.xlu0 %2075
        %2077 = vrot.lane.b32.xlu0 %v2014, 18
        %v2078 = vpop.permute.xlu0 %2077
        %2079 = vrot.lane.b32.xlu0 %v2016, 18
        %v2080 = vpop.permute.xlu0 %2079
        %2081 = vrot.lane.b32.xlu0 %v2018, 18
        %v2082 = vpop.permute.xlu0 %2081
        %2083 = vrot.lane.b32.xlu0 %v2020, 18
        %v2084 = vpop.permute.xlu0 %2083
        %2085 = vrot.lane.b32.xlu0 %v2022, 18
        %v2086 = vpop.permute.xlu0 %2085
        %2087 = vrot.lane.b32.xlu0 %v2024, 18
        %v2088 = vpop.permute.xlu0 %2087
        %2089 = vrot.lane.b32.xlu0 %v2026, 18
        %v2090 = vpop.permute.xlu0 %2089
        %2091 = vrot.lane.b32.xlu0 %v2028, 18
        %v2092 = vpop.permute.xlu0 %2091
        %2093 = vrot.lane.b32.xlu0 %v2030, 18
        %v2094 = vpop.permute.xlu0 %2093
        %2095 = vrot.lane.b32.xlu0 %v2032, 18
        %v2096 = vpop.permute.xlu0 %2095
        %vm2097 = vcmask 23552
        %v2099 = vsel %vm2097, %v939, %v1237
        %v2101 = vsel %vm2097, %v940, %v1239
        %v2103 = vsel %vm2097, %v941, %v1241
        %v2105 = vsel %vm2097, %v942, %v1243
        %v2107 = vsel %vm2097, %v943, %v1245
        %v2109 = vsel %vm2097, %v944, %v1247
        %v2111 = vsel %vm2097, %v945, %v1249
        %v2113 = vsel %vm2097, %v946, %v1251
        %v2115 = vsel %vm2097, %v947, %v1253
        %v2117 = vsel %vm2097, %v948, %v1255
        %v2119 = vsel %vm2097, %v949, %v1257
        %v2121 = vsel %vm2097, %v950, %v1259
        %v2123 = vsel %vm2097, %v951, %v1261
        %v2125 = vsel %vm2097, %v952, %v1263
        %v2127 = vsel %vm2097, %v953, %v1265
        %v2129 = vsel %vm2097, %v954, %v1267
        %v2131 = vsel %vm2097, %v955, %v1269
        %v2133 = vsel %vm2097, %v956, %v1271
        %v2135 = vsel %vm2097, %v957, %v1273
        %v2137 = vsel %vm2097, %v958, %v1275
        %v2139 = vsel %vm2097, %v959, %v1277
        %v2141 = vsel %vm2097, %v960, %v1279
        %v2143 = vsel %vm2097, %v961, %v1281
        %v2145 = vsel %vm2097, %v962, %v1283
        %v2147 = vsel %vm2097, %v963, %v1285
        %v2149 = vsel %vm2097, %v964, %v1287
        %v2151 = vsel %vm2097, %v965, %v1289
        %v2153 = vsel %vm2097, %v966, %v1291
        %v2155 = vsel %vm2097, %v967, %v1293
        %v2157 = vsel %vm2097, %v968, %v1295
        %v2159 = vsel %vm2097, %v969, %v1297
        %v2161 = vsel %vm2097, %v970, %v1299
        %vm2162 = vcmask 48128
        %v2164 = vsel %vm2162, %v2099, %v1370
        %v2166 = vsel %vm2162, %v2101, %v1372
        %v2168 = vsel %vm2162, %v2103, %v1374
        %v2170 = vsel %vm2162, %v2105, %v1376
        %v2172 = vsel %vm2162, %v2107, %v1378
        %v2174 = vsel %vm2162, %v2109, %v1380
        %v2176 = vsel %vm2162, %v2111, %v1382
        %v2178 = vsel %vm2162, %v2113, %v1384
        %v2180 = vsel %vm2162, %v2115, %v1386
        %v2182 = vsel %vm2162, %v2117, %v1388
        %v2184 = vsel %vm2162, %v2119, %v1390
        %v2186 = vsel %vm2162, %v2121, %v1392
        %v2188 = vsel %vm2162, %v2123, %v1394
        %v2190 = vsel %vm2162, %v2125, %v1396
        %v2192 = vsel %vm2162, %v2127, %v1398
        %v2194 = vsel %vm2162, %v2129, %v1400
        %v2196 = vsel %vm2162, %v2131, %v1402
        %v2198 = vsel %vm2162, %v2133, %v1404
        %v2200 = vsel %vm2162, %v2135, %v1406
        %v2202 = vsel %vm2162, %v2137, %v1408
        %v2204 = vsel %vm2162, %v2139, %v1410
        %v2206 = vsel %vm2162, %v2141, %v1412
        %v2208 = vsel %vm2162, %v2143, %v1414
        %v2210 = vsel %vm2162, %v2145, %v1416
        %v2212 = vsel %vm2162, %v2147, %v1418
        %v2214 = vsel %vm2162, %v2149, %v1420
        %v2216 = vsel %vm2162, %v2151, %v1422
        %v2218 = vsel %vm2162, %v2153, %v1424
        %v2220 = vsel %vm2162, %v2155, %v1426
        %v2222 = vsel %vm2162, %v2157, %v1428
        %v2224 = vsel %vm2162, %v2159, %v1430
        %v2226 = vsel %vm2162, %v2161, %v1432
        %vm2227 = vcmask 72704
        %v2229 = vsel %vm2227, %v2164, %v1573
        %v2231 = vsel %vm2227, %v2166, %v1575
        %v2233 = vsel %vm2227, %v2168, %v1577
        %v2235 = vsel %vm2227, %v2170, %v1579
        %v2237 = vsel %vm2227, %v2172, %v1581
        %v2239 = vsel %vm2227, %v2174, %v1583
        %v2241 = vsel %vm2227, %v2176, %v1585
        %v2243 = vsel %vm2227, %v2178, %v1587
        %v2245 = vsel %vm2227, %v2180, %v1589
        %v2247 = vsel %vm2227, %v2182, %v1591
        %v2249 = vsel %vm2227, %v2184, %v1593
        %v2251 = vsel %vm2227, %v2186, %v1595
        %v2253 = vsel %vm2227, %v2188, %v1597
        %v2255 = vsel %vm2227, %v2190, %v1599
        %v2257 = vsel %vm2227, %v2192, %v1601
        %v2259 = vsel %vm2227, %v2194, %v1603
        %v2261 = vsel %vm2227, %v2196, %v1605
        %v2263 = vsel %vm2227, %v2198, %v1607
        %v2265 = vsel %vm2227, %v2200, %v1609
        %v2267 = vsel %vm2227, %v2202, %v1611
        %v2269 = vsel %vm2227, %v2204, %v1613
        %v2271 = vsel %vm2227, %v2206, %v1615
        %v2273 = vsel %vm2227, %v2208, %v1617
        %v2275 = vsel %vm2227, %v2210, %v1619
        %v2277 = vsel %vm2227, %v2212, %v1621
        %v2279 = vsel %vm2227, %v2214, %v1623
        %v2281 = vsel %vm2227, %v2216, %v1625
        %v2283 = vsel %vm2227, %v2218, %v1627
        %v2285 = vsel %vm2227, %v2220, %v1629
        %v2287 = vsel %vm2227, %v2222, %v1631
        %v2289 = vsel %vm2227, %v2224, %v1633
        %v2291 = vsel %vm2227, %v2226, %v1635
        %vm2292 = vcmask 97280
        %v2294 = vsel %vm2292, %v2229, %v1704
        %v2296 = vsel %vm2292, %v2231, %v1706
        %v2298 = vsel %vm2292, %v2233, %v1708
        %v2300 = vsel %vm2292, %v2235, %v1710
        %v2302 = vsel %vm2292, %v2237, %v1712
        %v2304 = vsel %vm2292, %v2239, %v1714
        %v2306 = vsel %vm2292, %v2241, %v1716
        %v2308 = vsel %vm2292, %v2243, %v1718
        %v2310 = vsel %vm2292, %v2245, %v1720
        %v2312 = vsel %vm2292, %v2247, %v1722
        %v2314 = vsel %vm2292, %v2249, %v1724
        %v2316 = vsel %vm2292, %v2251, %v1726
        %v2318 = vsel %vm2292, %v2253, %v1728
        %v2320 = vsel %vm2292, %v2255, %v1730
        %v2322 = vsel %vm2292, %v2257, %v1732
        %v2324 = vsel %vm2292, %v2259, %v1734
        %v2326 = vsel %vm2292, %v2261, %v1736
        %v2328 = vsel %vm2292, %v2263, %v1738
        %v2330 = vsel %vm2292, %v2265, %v1740
        %v2332 = vsel %vm2292, %v2267, %v1742
        %v2334 = vsel %vm2292, %v2269, %v1744
        %v2336 = vsel %vm2292, %v2271, %v1746
        %v2338 = vsel %vm2292, %v2273, %v1748
        %v2340 = vsel %vm2292, %v2275, %v1750
        %v2342 = vsel %vm2292, %v2277, %v1752
        %v2344 = vsel %vm2292, %v2279, %v1754
        %v2346 = vsel %vm2292, %v2281, %v1756
        %v2348 = vsel %vm2292, %v2283, %v1758
        %v2350 = vsel %vm2292, %v2285, %v1760
        %v2352 = vsel %vm2292, %v2287, %v1762
        %v2354 = vsel %vm2292, %v2289, %v1764
        %v2356 = vsel %vm2292, %v2291, %v1766
        %vm2357 = vcmask 121856
        %v2359 = vsel %vm2357, %v2294, %v1903
        %v2361 = vsel %vm2357, %v2296, %v1905
        %v2363 = vsel %vm2357, %v2298, %v1907
        %v2365 = vsel %vm2357, %v2300, %v1909
        %v2367 = vsel %vm2357, %v2302, %v1911
        %v2369 = vsel %vm2357, %v2304, %v1913
        %v2371 = vsel %vm2357, %v2306, %v1915
        %v2373 = vsel %vm2357, %v2308, %v1917
        %v2375 = vsel %vm2357, %v2310, %v1919
        %v2377 = vsel %vm2357, %v2312, %v1921
        %v2379 = vsel %vm2357, %v2314, %v1923
        %v2381 = vsel %vm2357, %v2316, %v1925
        %v2383 = vsel %vm2357, %v2318, %v1927
        %v2385 = vsel %vm2357, %v2320, %v1929
        %v2387 = vsel %vm2357, %v2322, %v1931
        %v2389 = vsel %vm2357, %v2324, %v1933
        %v2391 = vsel %vm2357, %v2326, %v1935
        %v2393 = vsel %vm2357, %v2328, %v1937
        %v2395 = vsel %vm2357, %v2330, %v1939
        %v2397 = vsel %vm2357, %v2332, %v1941
        %v2399 = vsel %vm2357, %v2334, %v1943
        %v2401 = vsel %vm2357, %v2336, %v1945
        %v2403 = vsel %vm2357, %v2338, %v1947
        %v2405 = vsel %vm2357, %v2340, %v1949
        %v2407 = vsel %vm2357, %v2342, %v1951
        %v2409 = vsel %vm2357, %v2344, %v1953
        %v2411 = vsel %vm2357, %v2346, %v1955
        %v2413 = vsel %vm2357, %v2348, %v1957
        %v2415 = vsel %vm2357, %v2350, %v1959
        %v2417 = vsel %vm2357, %v2352, %v1961
        %v2419 = vsel %vm2357, %v2354, %v1963
        %v2421 = vsel %vm2357, %v2356, %v1965
        %vm2422 = vcmask 146432
        %v2424 = vsel %vm2422, %v2359, %v2034
        %v2426 = vsel %vm2422, %v2361, %v2036
        %v2428 = vsel %vm2422, %v2363, %v2038
        %v2430 = vsel %vm2422, %v2365, %v2040
        %v2432 = vsel %vm2422, %v2367, %v2042
        %v2434 = vsel %vm2422, %v2369, %v2044
        %v2436 = vsel %vm2422, %v2371, %v2046
        %v2438 = vsel %vm2422, %v2373, %v2048
        %v2440 = vsel %vm2422, %v2375, %v2050
        %v2442 = vsel %vm2422, %v2377, %v2052
        %v2444 = vsel %vm2422, %v2379, %v2054
        %v2446 = vsel %vm2422, %v2381, %v2056
        %v2448 = vsel %vm2422, %v2383, %v2058
        %v2450 = vsel %vm2422, %v2385, %v2060
        %v2452 = vsel %vm2422, %v2387, %v2062
        %v2454 = vsel %vm2422, %v2389, %v2064
        %v2456 = vsel %vm2422, %v2391, %v2066
        %v2458 = vsel %vm2422, %v2393, %v2068
        %v2460 = vsel %vm2422, %v2395, %v2070
        %v2462 = vsel %vm2422, %v2397, %v2072
        %v2464 = vsel %vm2422, %v2399, %v2074
        %v2466 = vsel %vm2422, %v2401, %v2076
        %v2468 = vsel %vm2422, %v2403, %v2078
        %v2470 = vsel %vm2422, %v2405, %v2080
        %v2472 = vsel %vm2422, %v2407, %v2082
        %v2474 = vsel %vm2422, %v2409, %v2084
        %v2476 = vsel %vm2422, %v2411, %v2086
        %v2478 = vsel %vm2422, %v2413, %v2088
        %v2480 = vsel %vm2422, %v2415, %v2090
        %v2482 = vsel %vm2422, %v2417, %v2092
        %v2484 = vsel %vm2422, %v2419, %v2094
        %v2486 = vsel %vm2422, %v2421, %v2096
        %v2487 = vld [vmem:[%s2] sm:$0x3]
        %v2488 = vld [vmem:[%s2 + $0x2] sm:$0x3]
        %v2489 = vld [vmem:[%s2 + $0x4] sm:$0x3]
        %v2490 = vld [vmem:[%s2 + $0x6] sm:$0x3]
        %v2491 = vld [vmem:[%s2 + $0x8] sm:$0x3]
        %v2492 = vld [vmem:[%s2 + $0xa] sm:$0x3]
        %v2493 = vld [vmem:[%s2 + $0xc] sm:$0x3]
        %v2502 = vunpack.c.l.s4 1966171168
        %v2503 = vunpack.c.0.s8 %v2502
        %v2504 = vlaneseq
        %v2505 = vshrl.u32 %v2504, 7
        %v2506 = vsub.s32 %v2503, %v2505
        %v2507 = vrot.slane %v2487, %v2506
        %v2508 = vcombine.high %v2507, %v2507
        %v2510 = vunpack.c.l.s4 1966171168
        %v2511 = vunpack.c.0.s8 %v2510
        %v2512 = vlaneseq
        %v2513 = vshrl.u32 %v2512, 7
        %v2514 = vsub.s32 %v2511, %v2513
        %v2515 = vrot.slane %v2488, %v2514
        %v2516 = vcombine.high %v2515, %v2515
        %v2518 = vunpack.c.l.s4 1966171168
        %v2519 = vunpack.c.0.s8 %v2518
        %v2520 = vlaneseq
        %v2521 = vshrl.u32 %v2520, 7
        %v2522 = vsub.s32 %v2519, %v2521
        %v2523 = vrot.slane %v2489, %v2522
        %v2524 = vcombine.high %v2523, %v2523
        %v2526 = vunpack.c.l.s4 1966171168
        %v2527 = vunpack.c.0.s8 %v2526
        %v2528 = vlaneseq
        %v2529 = vshrl.u32 %v2528, 7
        %v2530 = vsub.s32 %v2527, %v2529
        %v2531 = vrot.slane %v2490, %v2530
        %v2532 = vcombine.high %v2531, %v2531
        %v2534 = vunpack.c.l.s4 1966171168
        %v2535 = vunpack.c.0.s8 %v2534
        %v2536 = vlaneseq
        %v2537 = vshrl.u32 %v2536, 7
        %v2538 = vsub.s32 %v2535, %v2537
        %v2539 = vrot.slane %v2491, %v2538
        %v2540 = vcombine.high %v2539, %v2539
        %v2542 = vunpack.c.l.s4 1966171168
        %v2543 = vunpack.c.0.s8 %v2542
        %v2544 = vlaneseq
        %v2545 = vshrl.u32 %v2544, 7
        %v2546 = vsub.s32 %v2543, %v2545
        %v2547 = vrot.slane %v2492, %v2546
        %v2548 = vcombine.high %v2547, %v2547
        %v2550 = vunpack.c.l.s4 1966171168
        %v2551 = vunpack.c.0.s8 %v2550
        %v2552 = vlaneseq
        %v2553 = vshrl.u32 %v2552, 7
        %v2554 = vsub.s32 %v2551, %v2553
        %v2555 = vrot.slane %v2493, %v2554
        %v2556 = vcombine.high %v2555, %v2555
        %v2557 = vunpack.i.l.s16 %v2507
        %v2558 = vunpack.i.h.s16 %v2507
        %v2559 = vunpack.i.l.s16 %v2508
        %v2560 = vunpack.i.l.s16 %v2515
        %v2561 = vunpack.i.h.s16 %v2515
        %v2562 = vunpack.i.l.s16 %v2516
        %v2563 = vunpack.i.l.s16 %v2523
        %v2564 = vunpack.i.h.s16 %v2523
        %v2565 = vunpack.i.l.s16 %v2524
        %v2566 = vunpack.i.l.s16 %v2531
        %v2567 = vunpack.i.h.s16 %v2531
        %v2568 = vunpack.i.l.s16 %v2532
        %v2569 = vunpack.i.l.s16 %v2539
        %v2570 = vunpack.i.h.s16 %v2539
        %v2571 = vunpack.i.l.s16 %v2540
        %v2572 = vunpack.i.l.s16 %v2547
        %v2573 = vunpack.i.h.s16 %v2547
        %v2574 = vunpack.i.l.s16 %v2548
        %v2575 = vunpack.i.l.s16 %v2555
        %v2576 = vunpack.i.h.s16 %v2555
        %v2577 = vunpack.i.l.s16 %v2556
        %v2578 = vpack.i.b16 %v2558, %v2557
        %v2579 = vpack.i.b16 %v2560, %v2559
        %v2580 = vpack.i.b16 %v2562, %v2561
        %v2581 = vpack.i.b16 %v2564, %v2563
        %v2582 = vpack.i.b16 %v2566, %v2565
        %v2583 = vpack.i.b16 %v2568, %v2567
        %v2584 = vpack.i.b16 %v2570, %v2569
        %v2585 = vpack.i.b16 %v2572, %v2571
        %v2586 = vpack.i.b16 %v2574, %v2573
        %v2587 = vpack.i.b16 %v2576, %v2575
        %v2589 = vcombine.low %v2578, %v2579
        %v2590 = vcombine.low %v2580, %v2581
        %v2591 = vcombine.low %v2582, %v2583
        %v2592 = vcombine.low %v2584, %v2585
        %v2594 = vunpack.c.l.s4 1966171168
        %v2595 = vunpack.c.0.s8 %v2594
        %v2596 = vlaneseq
        %v2597 = vshrl.u32 %v2596, 7
        %v2598 = vsub.s32 %v2595, %v2597
        %v2599 = vrot.slane %v2589, %v2598
        %v2601 = vunpack.c.l.s4 1966171168
        %v2602 = vunpack.c.0.s8 %v2601
        %v2603 = vlaneseq
        %v2604 = vshrl.u32 %v2603, 7
        %v2605 = vsub.s32 %v2602, %v2604
        %v2606 = vrot.slane %v2590, %v2605
        %v2608 = vunpack.c.l.s4 1966171168
        %v2609 = vunpack.c.0.s8 %v2608
        %v2610 = vlaneseq
        %v2611 = vshrl.u32 %v2610, 7
        %v2612 = vsub.s32 %v2609, %v2611
        %v2613 = vrot.slane %v2591, %v2612
        %v2615 = vunpack.c.l.s4 1966171168
        %v2616 = vunpack.c.0.s8 %v2615
        %v2617 = vlaneseq
        %v2618 = vshrl.u32 %v2617, 7
        %v2619 = vsub.s32 %v2616, %v2618
        %v2620 = vrot.slane %v2592, %v2619
        %v2621 = vcombine.low %v2599, %v2606
        %v2622 = vcombine.low %v2613, %v2620
        %v2624 = vunpack.c.l.s4 1966171168
        %v2625 = vunpack.c.0.s8 %v2624
        %v2626 = vlaneseq
        %v2627 = vshrl.u32 %v2626, 7
        %v2628 = vsub.s32 %v2625, %v2627
        %v2629 = vrot.slane %v2621, %v2628
        %v2631 = vunpack.c.l.s4 1966171168
        %v2632 = vunpack.c.0.s8 %v2631
        %v2633 = vlaneseq
        %v2634 = vshrl.u32 %v2633, 7
        %v2635 = vsub.s32 %v2632, %v2634
        %v2636 = vrot.slane %v2622, %v2635
        %v2637 = vcombine.low %v2629, %v2636
        %v2638 = vcombine.low %v2586, %v2587
        %v2640 = vunpack.c.l.s4 1966171168
        %v2641 = vunpack.c.0.s8 %v2640
        %v2642 = vlaneseq
        %v2643 = vshrl.u32 %v2642, 7
        %v2644 = vsub.s32 %v2641, %v2643
        %v2645 = vrot.slane %v2638, %v2644
        %v2647 = vunpack.c.l.s4 1966171168
        %v2648 = vunpack.c.0.s8 %v2647
        %v2649 = vlaneseq
        %v2650 = vshrl.u32 %v2649, 7
        %v2651 = vsub.s32 %v2648, %v2650
        %v2652 = vrot.slane %v2577, %v2651
        %v2653 = vcombine.low %v2645, %v2652
        %v2655 = vunpack.c.l.s4 1966171168
        %v2656 = vunpack.c.0.s8 %v2655
        %v2657 = vlaneseq
        %v2658 = vshrl.u32 %v2657, 7
        %v2659 = vsub.s32 %v2656, %v2658
        %v2660 = vrot.slane %v2653, %v2659
        %vm2662 = vcmask 171008
        %v2663 = vsel %vm2662, %v2424, 0
        %v2665 = vsel %vm2662, %v2426, 0
        %v2667 = vsel %vm2662, %v2428, 0
        %v2669 = vsel %vm2662, %v2430, 0
        %v2671 = vsel %vm2662, %v2432, 0
        %v2673 = vsel %vm2662, %v2434, 0
        %v2675 = vsel %vm2662, %v2436, 0
        %v2677 = vsel %vm2662, %v2438, 0
        %v2679 = vsel %vm2662, %v2440, 0
        %v2681 = vsel %vm2662, %v2442, 0
        %v2683 = vsel %vm2662, %v2444, 0
        %v2685 = vsel %vm2662, %v2446, 0
        %v2687 = vsel %vm2662, %v2448, 0
        %v2689 = vsel %vm2662, %v2450, 0
        %v2691 = vsel %vm2662, %v2452, 0
        %v2693 = vsel %vm2662, %v2454, 0
        %v2695 = vsel %vm2662, %v2456, 0
        %v2697 = vsel %vm2662, %v2458, 0
        %v2699 = vsel %vm2662, %v2460, 0
        %v2701 = vsel %vm2662, %v2462, 0
        %v2703 = vsel %vm2662, %v2464, 0
        %v2705 = vsel %vm2662, %v2466, 0
        %v2707 = vsel %vm2662, %v2468, 0
        %v2709 = vsel %vm2662, %v2470, 0
        %v2711 = vsel %vm2662, %v2472, 0
        %v2713 = vsel %vm2662, %v2474, 0
        %v2715 = vsel %vm2662, %v2476, 0
        %v2717 = vsel %vm2662, %v2478, 0
        %v2719 = vsel %vm2662, %v2480, 0
        %v2721 = vsel %vm2662, %v2482, 0
        %v2723 = vsel %vm2662, %v2484, 0
        %v2725 = vsel %vm2662, %v2486, 0
        %vm2727 = vcmask 1041408
        %vm2728 = vcmask 1042432
        %v2729 = vsel %vm2727, 4294967295, 65535
        %v2730 = vsel %vm2728, %v2729, 0
        %v2732 = vand.u32 %v2660, %v2730
        %2734 = vmatprep.subr.bf16.mxu0 0
        %2735 = vmatpush1.bf16.msra.mxu0 0
        %2736 = vmatprep.subr.bf16.mxu0 0
        %2737 = vmatpush1.bf16.msra.mxu0 0
        %2738 = vmatprep.subr.bf16.mxu0 0
        %2739 = vmatpush1.bf16.msra.mxu0 0
        %2740 = vmatprep.subr.bf16.mxu0 0
        %2741 = vmatpush1.bf16.msra.mxu0 0
        %2742 = vmatprep.subr.bf16.mxu0 0
        %2743 = vmatpush1.bf16.msra.mxu0 0
        %2744 = vmatprep.subr.bf16.mxu0 0
        %2745 = vmatpush1.bf16.msra.mxu0 0
        %2746 = vmatprep.subr.bf16.mxu0 0
        %2747 = vmatpush1.bf16.msra.mxu0 %v2732
        %2748 = vmatprep.subr.bf16.mxu0 0
        %2749 = vmatpush1.bf16.msra.mxu0 %v2637
        %2750 = vmatprep.subr.bf16.mxu0 0
        %2751 = vmatpush2.bf16.msra.mxu0 0
        %2752 = vmatprep.subr.bf16.mxu0 0
        %2753 = vmatpush2.bf16.msra.mxu0 0
        %2754 = vmatprep.subr.bf16.mxu0 0
        %2755 = vmatpush2.bf16.msra.mxu0 0
        %2756 = vmatprep.subr.bf16.mxu0 0
        %2757 = vmatpush2.bf16.msra.mxu0 0
        %2758 = vmatprep.subr.bf16.mxu0 0
        %2759 = vmatpush2.bf16.msra.mxu0 0
        %2760 = vmatprep.subr.bf16.mxu0 0
        %2761 = vmatpush2.bf16.msra.mxu0 0
        %2762 = vmatprep.subr.bf16.mxu0 0
        %2763 = vmatpush2.bf16.msra.mxu0 0
        %2764 = vmatprep.subr.bf16.mxu0 0
        %2765 = vmatpush2.bf16.msra.mxu0 0
        %2766 = vmatprep.mubr.bf16.mxu0 0
        %2767 = vmatmul.mubr.bf16.gmra.mxu0 %v2663
        %v2768 = vpop.f32.mrf.mxu0
        %v2769 = vadd.f32 0.0, %v2768
        %v2770 = vpop.f32.mrf.mxu0
        %v2771 = vpop.f32.mrf.mxu0
        %v2772 = vadd.f32 0.0, %v2771
        %v2773 = vpop.f32.mrf.mxu0
        %2774 = vmatprep.mubr.bf16.mxu0 0
        %2775 = vmatmul.mubr.bf16.gmra.mxu0 %v2665
        %v2776 = vpop.f32.mrf.mxu0
        %v2777 = vadd.f32 0.0, %v2776
        %v2778 = vpop.f32.mrf.mxu0
        %v2779 = vpop.f32.mrf.mxu0
        %v2780 = vadd.f32 0.0, %v2779
        %v2781 = vpop.f32.mrf.mxu0
        %2782 = vmatprep.mubr.bf16.mxu0 0
        %2783 = vmatmul.mubr.bf16.gmra.mxu0 %v2667
        %v2784 = vpop.f32.mrf.mxu0
        %v2785 = vadd.f32 0.0, %v2784
        %v2786 = vpop.f32.mrf.mxu0
        %v2787 = vpop.f32.mrf.mxu0
        %v2788 = vadd.f32 0.0, %v2787
        %v2789 = vpop.f32.mrf.mxu0
        %2790 = vmatprep.mubr.bf16.mxu0 0
        %2791 = vmatmul.mubr.bf16.gmra.mxu0 %v2669
        %v2792 = vpop.f32.mrf.mxu0
        %v2793 = vadd.f32 0.0, %v2792
        %v2794 = vpop.f32.mrf.mxu0
        %v2795 = vpop.f32.mrf.mxu0
        %v2796 = vadd.f32 0.0, %v2795
        %v2797 = vpop.f32.mrf.mxu0
        %2798 = vmatprep.mubr.bf16.mxu0 0
        %2799 = vmatmul.mubr.bf16.gmra.mxu0 %v2671
        %v2800 = vpop.f32.mrf.mxu0
        %v2801 = vadd.f32 0.0, %v2800
        %v2802 = vpop.f32.mrf.mxu0
        %v2803 = vpop.f32.mrf.mxu0
        %v2804 = vadd.f32 0.0, %v2803
        %v2805 = vpop.f32.mrf.mxu0
        %2806 = vmatprep.mubr.bf16.mxu0 0
        %2807 = vmatmul.mubr.bf16.gmra.mxu0 %v2673
        %v2808 = vpop.f32.mrf.mxu0
        %v2809 = vadd.f32 0.0, %v2808
        %v2810 = vpop.f32.mrf.mxu0
        %v2811 = vpop.f32.mrf.mxu0
        %v2812 = vadd.f32 0.0, %v2811
        %v2813 = vpop.f32.mrf.mxu0
        %2814 = vmatprep.mubr.bf16.mxu0 0
        %2815 = vmatmul.mubr.bf16.gmra.mxu0 %v2675
        %v2816 = vpop.f32.mrf.mxu0
        %v2817 = vadd.f32 0.0, %v2816
        %v2818 = vpop.f32.mrf.mxu0
        %v2819 = vpop.f32.mrf.mxu0
        %v2820 = vadd.f32 0.0, %v2819
        %v2821 = vpop.f32.mrf.mxu0
        %2822 = vmatprep.mubr.bf16.mxu0 0
        %2823 = vmatmul.mubr.bf16.gmra.mxu0 %v2677
        %v2824 = vpop.f32.mrf.mxu0
        %v2825 = vadd.f32 0.0, %v2824
        %v2826 = vpop.f32.mrf.mxu0
        %v2827 = vpop.f32.mrf.mxu0
        %v2828 = vadd.f32 0.0, %v2827
        %v2829 = vpop.f32.mrf.mxu0
        %2830 = vmatprep.mubr.bf16.mxu0 0
        %2831 = vmatmul.mubr.bf16.gmra.mxu0 %v2679
        %v2832 = vpop.f32.mrf.mxu0
        %v2833 = vadd.f32 0.0, %v2832
        %v2834 = vpop.f32.mrf.mxu0
        %v2835 = vpop.f32.mrf.mxu0
        %v2836 = vadd.f32 0.0, %v2835
        %v2837 = vpop.f32.mrf.mxu0
        %2838 = vmatprep.mubr.bf16.mxu0 0
        %2839 = vmatmul.mubr.bf16.gmra.mxu0 %v2681
        %v2840 = vpop.f32.mrf.mxu0
        %v2841 = vadd.f32 0.0, %v2840
        %v2842 = vpop.f32.mrf.mxu0
        %v2843 = vpop.f32.mrf.mxu0
        %v2844 = vadd.f32 0.0, %v2843
        %v2845 = vpop.f32.mrf.mxu0
        %2846 = vmatprep.mubr.bf16.mxu0 0
        %2847 = vmatmul.mubr.bf16.gmra.mxu0 %v2683
        %v2848 = vpop.f32.mrf.mxu0
        %v2849 = vadd.f32 0.0, %v2848
        %v2850 = vpop.f32.mrf.mxu0
        %v2851 = vpop.f32.mrf.mxu0
        %v2852 = vadd.f32 0.0, %v2851
        %v2853 = vpop.f32.mrf.mxu0
        %2854 = vmatprep.mubr.bf16.mxu0 0
        %2855 = vmatmul.mubr.bf16.gmra.mxu0 %v2685
        %v2856 = vpop.f32.mrf.mxu0
        %v2857 = vadd.f32 0.0, %v2856
        %v2858 = vpop.f32.mrf.mxu0
        %v2859 = vpop.f32.mrf.mxu0
        %v2860 = vadd.f32 0.0, %v2859
        %v2861 = vpop.f32.mrf.mxu0
        %2862 = vmatprep.mubr.bf16.mxu0 0
        %2863 = vmatmul.mubr.bf16.gmra.mxu0 %v2687
        %v2864 = vpop.f32.mrf.mxu0
        %v2865 = vadd.f32 0.0, %v2864
        %v2866 = vpop.f32.mrf.mxu0
        %v2867 = vpop.f32.mrf.mxu0
        %v2868 = vadd.f32 0.0, %v2867
        %v2869 = vpop.f32.mrf.mxu0
        %2870 = vmatprep.mubr.bf16.mxu0 0
        %2871 = vmatmul.mubr.bf16.gmra.mxu0 %v2689
        %v2872 = vpop.f32.mrf.mxu0
        %v2873 = vadd.f32 0.0, %v2872
        %v2874 = vpop.f32.mrf.mxu0
        %v2875 = vpop.f32.mrf.mxu0
        %v2876 = vadd.f32 0.0, %v2875
        %v2877 = vpop.f32.mrf.mxu0
        %2878 = vmatprep.mubr.bf16.mxu0 0
        %2879 = vmatmul.mubr.bf16.gmra.mxu0 %v2691
        %v2880 = vpop.f32.mrf.mxu0
        %v2881 = vadd.f32 0.0, %v2880
        %v2882 = vpop.f32.mrf.mxu0
        %v2883 = vpop.f32.mrf.mxu0
        %v2884 = vadd.f32 0.0, %v2883
        %v2885 = vpop.f32.mrf.mxu0
        %2886 = vmatprep.mubr.bf16.mxu0 0
        %2887 = vmatmul.mubr.bf16.gmra.mxu0 %v2693
        %v2888 = vpop.f32.mrf.mxu0
        %v2889 = vadd.f32 0.0, %v2888
        %v2890 = vpop.f32.mrf.mxu0
        %v2891 = vpop.f32.mrf.mxu0
        %v2892 = vadd.f32 0.0, %v2891
        %v2893 = vpop.f32.mrf.mxu0
        %2894 = vmatprep.mubr.bf16.mxu0 0
        %2895 = vmatmul.mubr.bf16.gmra.mxu0 %v2695
        %v2896 = vpop.f32.mrf.mxu0
        %v2897 = vadd.f32 0.0, %v2896
        %v2898 = vpop.f32.mrf.mxu0
        %v2899 = vpop.f32.mrf.mxu0
        %v2900 = vadd.f32 0.0, %v2899
        %v2901 = vpop.f32.mrf.mxu0
        %2902 = vmatprep.mubr.bf16.mxu0 0
        %2903 = vmatmul.mubr.bf16.gmra.mxu0 %v2697
        %v2904 = vpop.f32.mrf.mxu0
        %v2905 = vadd.f32 0.0, %v2904
        %v2906 = vpop.f32.mrf.mxu0
        %v2907 = vpop.f32.mrf.mxu0
        %v2908 = vadd.f32 0.0, %v2907
        %v2909 = vpop.f32.mrf.mxu0
        %2910 = vmatprep.mubr.bf16.mxu0 0
        %2911 = vmatmul.mubr.bf16.gmra.mxu0 %v2699
        %v2912 = vpop.f32.mrf.mxu0
        %v2913 = vadd.f32 0.0, %v2912
        %v2914 = vpop.f32.mrf.mxu0
        %v2915 = vpop.f32.mrf.mxu0
        %v2916 = vadd.f32 0.0, %v2915
        %v2917 = vpop.f32.mrf.mxu0
        %2918 = vmatprep.mubr.bf16.mxu0 0
        %2919 = vmatmul.mubr.bf16.gmra.mxu0 %v2701
        %v2920 = vpop.f32.mrf.mxu0
        %v2921 = vadd.f32 0.0, %v2920
        %v2922 = vpop.f32.mrf.mxu0
        %v2923 = vpop.f32.mrf.mxu0
        %v2924 = vadd.f32 0.0, %v2923
        %v2925 = vpop.f32.mrf.mxu0
        %2926 = vmatprep.mubr.bf16.mxu0 0
        %2927 = vmatmul.mubr.bf16.gmra.mxu0 %v2703
        %v2928 = vpop.f32.mrf.mxu0
        %v2929 = vadd.f32 0.0, %v2928
        %v2930 = vpop.f32.mrf.mxu0
        %v2931 = vpop.f32.mrf.mxu0
        %v2932 = vadd.f32 0.0, %v2931
        %v2933 = vpop.f32.mrf.mxu0
        %2934 = vmatprep.mubr.bf16.mxu0 0
        %2935 = vmatmul.mubr.bf16.gmra.mxu0 %v2705
        %v2936 = vpop.f32.mrf.mxu0
        %v2937 = vadd.f32 0.0, %v2936
        %v2938 = vpop.f32.mrf.mxu0
        %v2939 = vpop.f32.mrf.mxu0
        %v2940 = vadd.f32 0.0, %v2939
        %v2941 = vpop.f32.mrf.mxu0
        %2942 = vmatprep.mubr.bf16.mxu0 0
        %2943 = vmatmul.mubr.bf16.gmra.mxu0 %v2707
        %v2944 = vpop.f32.mrf.mxu0
        %v2945 = vadd.f32 0.0, %v2944
        %v2946 = vpop.f32.mrf.mxu0
        %v2947 = vpop.f32.mrf.mxu0
        %v2948 = vadd.f32 0.0, %v2947
        %v2949 = vpop.f32.mrf.mxu0
        %2950 = vmatprep.mubr.bf16.mxu0 0
        %2951 = vmatmul.mubr.bf16.gmra.mxu0 %v2709
        %v2952 = vpop.f32.mrf.mxu0
        %v2953 = vadd.f32 0.0, %v2952
        %v2954 = vpop.f32.mrf.mxu0
        %v2955 = vpop.f32.mrf.mxu0
        %v2956 = vadd.f32 0.0, %v2955
        %v2957 = vpop.f32.mrf.mxu0
        %2958 = vmatprep.mubr.bf16.mxu0 0
        %2959 = vmatmul.mubr.bf16.gmra.mxu0 %v2711
        %v2960 = vpop.f32.mrf.mxu0
        %v2961 = vadd.f32 0.0, %v2960
        %v2962 = vpop.f32.mrf.mxu0
        %v2963 = vpop.f32.mrf.mxu0
        %v2964 = vadd.f32 0.0, %v2963
        %v2965 = vpop.f32.mrf.mxu0
        %2966 = vmatprep.mubr.bf16.mxu0 0
        %2967 = vmatmul.mubr.bf16.gmra.mxu0 %v2713
        %v2968 = vpop.f32.mrf.mxu0
        %v2969 = vadd.f32 0.0, %v2968
        %v2970 = vpop.f32.mrf.mxu0
        %v2971 = vpop.f32.mrf.mxu0
        %v2972 = vadd.f32 0.0, %v2971
        %v2973 = vpop.f32.mrf.mxu0
        %2974 = vmatprep.mubr.bf16.mxu0 0
        %2975 = vmatmul.mubr.bf16.gmra.mxu0 %v2715
        %v2976 = vpop.f32.mrf.mxu0
        %v2977 = vadd.f32 0.0, %v2976
        %v2978 = vpop.f32.mrf.mxu0
        %v2979 = vpop.f32.mrf.mxu0
        %v2980 = vadd.f32 0.0, %v2979
        %v2981 = vpop.f32.mrf.mxu0
        %2982 = vmatprep.mubr.bf16.mxu0 0
        %2983 = vmatmul.mubr.bf16.gmra.mxu0 %v2717
        %v2984 = vpop.f32.mrf.mxu0
        %v2985 = vadd.f32 0.0, %v2984
        %v2986 = vpop.f32.mrf.mxu0
        %v2987 = vpop.f32.mrf.mxu0
        %v2988 = vadd.f32 0.0, %v2987
        %v2989 = vpop.f32.mrf.mxu0
        %2990 = vmatprep.mubr.bf16.mxu0 0
        %2991 = vmatmul.mubr.bf16.gmra.mxu0 %v2719
        %v2992 = vpop.f32.mrf.mxu0
        %v2993 = vadd.f32 0.0, %v2992
        %v2994 = vpop.f32.mrf.mxu0
        %v2995 = vpop.f32.mrf.mxu0
        %v2996 = vadd.f32 0.0, %v2995
        %v2997 = vpop.f32.mrf.mxu0
        %2998 = vmatprep.mubr.bf16.mxu0 0
        %2999 = vmatmul.mubr.bf16.gmra.mxu0 %v2721
        %v3000 = vpop.f32.mrf.mxu0
        %v3001 = vadd.f32 0.0, %v3000
        %v3002 = vpop.f32.mrf.mxu0
        %v3003 = vpop.f32.mrf.mxu0
        %v3004 = vadd.f32 0.0, %v3003
        %v3005 = vpop.f32.mrf.mxu0
        %3006 = vmatprep.mubr.bf16.mxu0 0
        %3007 = vmatmul.mubr.bf16.gmra.mxu0 %v2723
        %v3008 = vpop.f32.mrf.mxu0
        %v3009 = vadd.f32 0.0, %v3008
        %v3010 = vpop.f32.mrf.mxu0
        %v3011 = vpop.f32.mrf.mxu0
        %v3012 = vadd.f32 0.0, %v3011
        %v3013 = vpop.f32.mrf.mxu0
        %3014 = vmatprep.mubr.bf16.mxu0 0
        %3015 = vmatmul.mubr.bf16.gmra.mxu0 %v2725
        %v3016 = vpop.f32.mrf.mxu0
        %v3017 = vadd.f32 0.0, %v3016
        %v3018 = vpop.f32.mrf.mxu0
        %v3019 = vpop.f32.mrf.mxu0
        %v3020 = vadd.f32 0.0, %v3019
        %v3021 = vpop.f32.mrf.mxu0
        %3022 = vdwg.mxu0
        %v3023 = vpack.c.bf16 %v2772, %v2769
        %v3024 = vpack.c.bf16 %v2780, %v2777
        %v3025 = vpack.c.bf16 %v2788, %v2785
        %v3026 = vpack.c.bf16 %v2796, %v2793
        %v3027 = vpack.c.bf16 %v2804, %v2801
        %v3028 = vpack.c.bf16 %v2812, %v2809
        %v3029 = vpack.c.bf16 %v2820, %v2817
        %v3030 = vpack.c.bf16 %v2828, %v2825
        %v3031 = vpack.c.bf16 %v2836, %v2833
        %v3032 = vpack.c.bf16 %v2844, %v2841
        %v3033 = vpack.c.bf16 %v2852, %v2849
        %v3034 = vpack.c.bf16 %v2860, %v2857
        %v3035 = vpack.c.bf16 %v2868, %v2865
        %v3036 = vpack.c.bf16 %v2876, %v2873
        %v3037 = vpack.c.bf16 %v2884, %v2881
        %v3038 = vpack.c.bf16 %v2892, %v2889
        %v3039 = vpack.c.bf16 %v2900, %v2897
        %v3040 = vpack.c.bf16 %v2908, %v2905
        %v3041 = vpack.c.bf16 %v2916, %v2913
        %v3042 = vpack.c.bf16 %v2924, %v2921
        %v3043 = vpack.c.bf16 %v2932, %v2929
        %v3044 = vpack.c.bf16 %v2940, %v2937
        %v3045 = vpack.c.bf16 %v2948, %v2945
        %v3046 = vpack.c.bf16 %v2956, %v2953
        %v3047 = vpack.c.bf16 %v2964, %v2961
        %v3048 = vpack.c.bf16 %v2972, %v2969
        %v3049 = vpack.c.bf16 %v2980, %v2977
        %v3050 = vpack.c.bf16 %v2988, %v2985
        %v3051 = vpack.c.bf16 %v2996, %v2993
        %v3052 = vpack.c.bf16 %v3004, %v3001
        %v3053 = vpack.c.bf16 %v3012, %v3009
        %v3054 = vpack.c.bf16 %v3020, %v3017
        %v3087 = vunpack.c.l.b16 %v3023
        %v3088 = vunpack.c.h.b16 %v3023
        %v3089 = vunpack.c.l.b16 %v3024
        %v3090 = vunpack.c.h.b16 %v3024
        %v3091 = vunpack.c.l.b16 %v3025
        %v3092 = vunpack.c.h.b16 %v3025
        %v3093 = vunpack.c.l.b16 %v3026
        %v3094 = vunpack.c.h.b16 %v3026
        %v3095 = vunpack.c.l.b16 %v3027
        %v3096 = vunpack.c.h.b16 %v3027
        %v3097 = vunpack.c.l.b16 %v3028
        %v3098 = vunpack.c.h.b16 %v3028
        %v3099 = vunpack.c.l.b16 %v3029
        %v3100 = vunpack.c.h.b16 %v3029
        %v3101 = vunpack.c.l.b16 %v3030
        %v3102 = vunpack.c.h.b16 %v3030
        %v3103 = vunpack.c.l.b16 %v3031
        %v3104 = vunpack.c.h.b16 %v3031
        %v3105 = vunpack.c.l.b16 %v3032
        %v3106 = vunpack.c.h.b16 %v3032
        %v3107 = vunpack.c.l.b16 %v3033
        %v3108 = vunpack.c.h.b16 %v3033
        %v3109 = vunpack.c.l.b16 %v3034
        %v3110 = vunpack.c.h.b16 %v3034
        %v3111 = vunpack.c.l.b16 %v3035
        %v3112 = vunpack.c.h.b16 %v3035
        %v3113 = vunpack.c.l.b16 %v3036
        %v3114 = vunpack.c.h.b16 %v3036
        %v3115 = vunpack.c.l.b16 %v3037
        %v3116 = vunpack.c.h.b16 %v3037
        %v3117 = vunpack.c.l.b16 %v3038
        %v3118 = vunpack.c.h.b16 %v3038
        %v3119 = vunpack.c.l.b16 %v3039
        %v3120 = vunpack.c.h.b16 %v3039
        %v3121 = vunpack.c.l.b16 %v3040
        %v3122 = vunpack.c.h.b16 %v3040
        %v3123 = vunpack.c.l.b16 %v3041
        %v3124 = vunpack.c.h.b16 %v3041
        %v3125 = vunpack.c.l.b16 %v3042
        %v3126 = vunpack.c.h.b16 %v3042
        %v3127 = vunpack.c.l.b16 %v3043
        %v3128 = vunpack.c.h.b16 %v3043
        %v3129 = vunpack.c.l.b16 %v3044
        %v3130 = vunpack.c.h.b16 %v3044
        %v3131 = vunpack.c.l.b16 %v3045
        %v3132 = vunpack.c.h.b16 %v3045
        %v3133 = vunpack.c.l.b16 %v3046
        %v3134 = vunpack.c.h.b16 %v3046
        %v3135 = vunpack.c.l.b16 %v3047
        %v3136 = vunpack.c.h.b16 %v3047
        %v3137 = vunpack.c.l.b16 %v3048
        %v3138 = vunpack.c.h.b16 %v3048
        %v3139 = vunpack.c.l.b16 %v3049
        %v3140 = vunpack.c.h.b16 %v3049
        %v3141 = vunpack.c.l.b16 %v3050
        %v3142 = vunpack.c.h.b16 %v3050
        %v3143 = vunpack.c.l.b16 %v3051
        %v3144 = vunpack.c.h.b16 %v3051
        %v3145 = vunpack.c.l.b16 %v3052
        %v3146 = vunpack.c.h.b16 %v3052
        %v3147 = vunpack.c.l.b16 %v3053
        %v3148 = vunpack.c.h.b16 %v3053
        %v3149 = vunpack.c.l.b16 %v3054
        %v3150 = vunpack.c.h.b16 %v3054
        %v3151 = vpack.c.b16 %v3087, %v3087
        %v3152 = vpack.c.b16 %v3088, %v3088
        %v3153 = vpack.c.b16 %v3089, %v3089
        %v3154 = vpack.c.b16 %v3090, %v3090
        %v3155 = vpack.c.b16 %v3091, %v3091
        %v3156 = vpack.c.b16 %v3092, %v3092
        %v3157 = vpack.c.b16 %v3093, %v3093
        %v3158 = vpack.c.b16 %v3094, %v3094
        %v3159 = vpack.c.b16 %v3095, %v3095
        %v3160 = vpack.c.b16 %v3096, %v3096
        %v3161 = vpack.c.b16 %v3097, %v3097
        %v3162 = vpack.c.b16 %v3098, %v3098
        %v3163 = vpack.c.b16 %v3099, %v3099
        %v3164 = vpack.c.b16 %v3100, %v3100
        %v3165 = vpack.c.b16 %v3101, %v3101
        %v3166 = vpack.c.b16 %v3102, %v3102
        %v3167 = vpack.c.b16 %v3103, %v3103
        %v3168 = vpack.c.b16 %v3104, %v3104
        %v3169 = vpack.c.b16 %v3105, %v3105
        %v3170 = vpack.c.b16 %v3106, %v3106
        %v3171 = vpack.c.b16 %v3107, %v3107
        %v3172 = vpack.c.b16 %v3108, %v3108
        %v3173 = vpack.c.b16 %v3109, %v3109
        %v3174 = vpack.c.b16 %v3110, %v3110
        %v3175 = vpack.c.b16 %v3111, %v3111
        %v3176 = vpack.c.b16 %v3112, %v3112
        %v3177 = vpack.c.b16 %v3113, %v3113
        %v3178 = vpack.c.b16 %v3114, %v3114
        %v3179 = vpack.c.b16 %v3115, %v3115
        %v3180 = vpack.c.b16 %v3116, %v3116
        %v3181 = vpack.c.b16 %v3117, %v3117
        %v3182 = vpack.c.b16 %v3118, %v3118
        %v3183 = vpack.c.b16 %v3119, %v3119
        %v3184 = vpack.c.b16 %v3120, %v3120
        %v3185 = vpack.c.b16 %v3121, %v3121
        %v3186 = vpack.c.b16 %v3122, %v3122
        %v3187 = vpack.c.b16 %v3123, %v3123
        %v3188 = vpack.c.b16 %v3124, %v3124
        %v3189 = vpack.c.b16 %v3125, %v3125
        %v3190 = vpack.c.b16 %v3126, %v3126
        %v3191 = vpack.c.b16 %v3127, %v3127
        %v3192 = vpack.c.b16 %v3128, %v3128
        %v3193 = vpack.c.b16 %v3129, %v3129
        %v3194 = vpack.c.b16 %v3130, %v3130
        %v3195 = vpack.c.b16 %v3131, %v3131
        %v3196 = vpack.c.b16 %v3132, %v3132
        %v3197 = vpack.c.b16 %v3133, %v3133
        %v3198 = vpack.c.b16 %v3134, %v3134
        %v3199 = vpack.c.b16 %v3135, %v3135
        %v3200 = vpack.c.b16 %v3136, %v3136
        %v3201 = vpack.c.b16 %v3137, %v3137
        %v3202 = vpack.c.b16 %v3138, %v3138
        %v3203 = vpack.c.b16 %v3139, %v3139
        %v3204 = vpack.c.b16 %v3140, %v3140
        %v3205 = vpack.c.b16 %v3141, %v3141
        %v3206 = vpack.c.b16 %v3142, %v3142
        %v3207 = vpack.c.b16 %v3143, %v3143
        %v3208 = vpack.c.b16 %v3144, %v3144
        %v3209 = vpack.c.b16 %v3145, %v3145
        %v3210 = vpack.c.b16 %v3146, %v3146
        %v3211 = vpack.c.b16 %v3147, %v3147
        %v3212 = vpack.c.b16 %v3148, %v3148
        %v3213 = vpack.c.b16 %v3149, %v3149
        %v3214 = vpack.c.b16 %v3150, %v3150
        %vm3279 = vcmask 257024
        %3280 = vst.msk [vmem:[%s728] sm:$0xf] %vm3279, %v3151
        %3281 = vst.msk [vmem:[%s728 + $0x4] sm:$0xf] %vm3279, %v3152
        %3282 = vst.msk [vmem:[%s728 + $0x8] sm:$0xf] %vm3279, %v3153
        %3283 = vst.msk [vmem:[%s728 + $0xc] sm:$0xf] %vm3279, %v3154
        %3284 = vst.msk [vmem:[%s728 + $0x10] sm:$0xf] %vm3279, %v3155
        %3285 = vst.msk [vmem:[%s728 + $0x14] sm:$0xf] %vm3279, %v3156
        %3286 = vst.msk [vmem:[%s728 + $0x18] sm:$0xf] %vm3279, %v3157
        %3287 = vst.msk [vmem:[%s728 + $0x1c] sm:$0xf] %vm3279, %v3158
        %3288 = vst.msk [vmem:[%s728 + $0x20] sm:$0xf] %vm3279, %v3159
        %3289 = vst.msk [vmem:[%s728 + $0x24] sm:$0xf] %vm3279, %v3160
        %3290 = vst.msk [vmem:[%s728 + $0x28] sm:$0xf] %vm3279, %v3161
        %3291 = vst.msk [vmem:[%s728 + $0x2c] sm:$0xf] %vm3279, %v3162
        %3292 = vst.msk [vmem:[%s728 + $0x30] sm:$0xf] %vm3279, %v3163
        %3293 = vst.msk [vmem:[%s728 + $0x34] sm:$0xf] %vm3279, %v3164
        %3294 = vst.msk [vmem:[%s728 + $0x38] sm:$0xf] %vm3279, %v3165
        %3295 = vst.msk [vmem:[%s728 + $0x3c] sm:$0xf] %vm3279, %v3166
        %3296 = vst.msk [vmem:[%s728 + $0x40] sm:$0xf] %vm3279, %v3167
        %3297 = vst.msk [vmem:[%s728 + $0x44] sm:$0xf] %vm3279, %v3168
        %3298 = vst.msk [vmem:[%s728 + $0x48] sm:$0xf] %vm3279, %v3169
        %3299 = vst.msk [vmem:[%s728 + $0x4c] sm:$0xf] %vm3279, %v3170
        %3300 = vst.msk [vmem:[%s728 + $0x50] sm:$0xf] %vm3279, %v3171
        %3301 = vst.msk [vmem:[%s728 + $0x54] sm:$0xf] %vm3279, %v3172
        %3302 = vst.msk [vmem:[%s728 + $0x58] sm:$0xf] %vm3279, %v3173
        %3303 = vst.msk [vmem:[%s728 + $0x5c] sm:$0xf] %vm3279, %v3174
        %3304 = vst.msk [vmem:[%s728 + $0x60] sm:$0xf] %vm3279, %v3175
        %3305 = vst.msk [vmem:[%s728 + $0x64] sm:$0xf] %vm3279, %v3176
        %3306 = vst.msk [vmem:[%s728 + $0x68] sm:$0xf] %vm3279, %v3177
        %3307 = vst.msk [vmem:[%s728 + $0x6c] sm:$0xf] %vm3279, %v3178
        %3308 = vst.msk [vmem:[%s728 + $0x70] sm:$0xf] %vm3279, %v3179
        %3309 = vst.msk [vmem:[%s728 + $0x74] sm:$0xf] %vm3279, %v3180
        %3310 = vst.msk [vmem:[%s728 + $0x78] sm:$0xf] %vm3279, %v3181
        %3311 = vst.msk [vmem:[%s728 + $0x7c] sm:$0xf] %vm3279, %v3182
        %3312 = vst.msk [vmem:[%s728 + $0x80] sm:$0xf] %vm3279, %v3183
        %3313 = vst.msk [vmem:[%s728 + $0x84] sm:$0xf] %vm3279, %v3184
        %3314 = vst.msk [vmem:[%s728 + $0x88] sm:$0xf] %vm3279, %v3185
        %3315 = vst.msk [vmem:[%s728 + $0x8c] sm:$0xf] %vm3279, %v3186
        %3316 = vst.msk [vmem:[%s728 + $0x90] sm:$0xf] %vm3279, %v3187
        %3317 = vst.msk [vmem:[%s728 + $0x94] sm:$0xf] %vm3279, %v3188
        %3318 = vst.msk [vmem:[%s728 + $0x98] sm:$0xf] %vm3279, %v3189
        %3319 = vst.msk [vmem:[%s728 + $0x9c] sm:$0xf] %vm3279, %v3190
        %3320 = vst.msk [vmem:[%s728 + $0xa0] sm:$0xf] %vm3279, %v3191
        %3321 = vst.msk [vmem:[%s728 + $0xa4] sm:$0xf] %vm3279, %v3192
        %3322 = vst.msk [vmem:[%s728 + $0xa8] sm:$0xf] %vm3279, %v3193
        %3323 = vst.msk [vmem:[%s728 + $0xac] sm:$0xf] %vm3279, %v3194
        %3324 = vst.msk [vmem:[%s728 + $0xb0] sm:$0xf] %vm3279, %v3195
        %3325 = vst.msk [vmem:[%s728 + $0xb4] sm:$0xf] %vm3279, %v3196
        %3326 = vst.msk [vmem:[%s728 + $0xb8] sm:$0xf] %vm3279, %v3197
        %3327 = vst.msk [vmem:[%s728 + $0xbc] sm:$0xf] %vm3279, %v3198
        %3328 = vst.msk [vmem:[%s728 + $0xc0] sm:$0xf] %vm3279, %v3199
        %3329 = vst.msk [vmem:[%s728 + $0xc4] sm:$0xf] %vm3279, %v3200
        %3330 = vst.msk [vmem:[%s728 + $0xc8] sm:$0xf] %vm3279, %v3201
        %3331 = vst.msk [vmem:[%s728 + $0xcc] sm:$0xf] %vm3279, %v3202
        %3332 = vst.msk [vmem:[%s728 + $0xd0] sm:$0xf] %vm3279, %v3203
        %3333 = vst.msk [vmem:[%s728 + $0xd4] sm:$0xf] %vm3279, %v3204
        %3334 = vst.msk [vmem:[%s728 + $0xd8] sm:$0xf] %vm3279, %v3205
        %3335 = vst.msk [vmem:[%s728 + $0xdc] sm:$0xf] %vm3279, %v3206
        %3336 = vst.msk [vmem:[%s728 + $0xe0] sm:$0xf] %vm3279, %v3207
        %3337 = vst.msk [vmem:[%s728 + $0xe4] sm:$0xf] %vm3279, %v3208
        %3338 = vst.msk [vmem:[%s728 + $0xe8] sm:$0xf] %vm3279, %v3209
        %3339 = vst.msk [vmem:[%s728 + $0xec] sm:$0xf] %vm3279, %v3210
        %3340 = vst.msk [vmem:[%s728 + $0xf0] sm:$0xf] %vm3279, %v3211
        %3341 = vst.msk [vmem:[%s728 + $0xf4] sm:$0xf] %vm3279, %v3212
        %3342 = vst.msk [vmem:[%s728 + $0xf8] sm:$0xf] %vm3279, %v3213
        %3343 = vst.msk [vmem:[%s728 + $0xfc] sm:$0xf] %vm3279, %v3214
        %vm3344 = vcmask 261120
        %v3345 = vsel %vm3344, %v2769, 0.0
        %v3346 = vsel %vm3344, %v2772, 0.0
        %v3347 = vadd.f32 %v3345, %v3346
        %v3348 = vsel %vm3344, %v2777, 0.0
        %v3349 = vadd.f32 %v3347, %v3348
        %v3350 = vsel %vm3344, %v2780, 0.0
        %v3351 = vadd.f32 %v3349, %v3350
        %v3352 = vsel %vm3344, %v2785, 0.0
        %v3353 = vadd.f32 %v3351, %v3352
        %v3354 = vsel %vm3344, %v2788, 0.0
        %v3355 = vadd.f32 %v3353, %v3354
        %v3356 = vsel %vm3344, %v2793, 0.0
        %v3357 = vadd.f32 %v3355, %v3356
        %v3358 = vsel %vm3344, %v2796, 0.0
        %v3359 = vadd.f32 %v3357, %v3358
        %v3360 = vsel %vm3344, %v2801, 0.0
        %v3361 = vadd.f32 %v3359, %v3360
        %v3362 = vsel %vm3344, %v2804, 0.0
        %v3363 = vadd.f32 %v3361, %v3362
        %v3364 = vsel %vm3344, %v2809, 0.0
        %v3365 = vadd.f32 %v3363, %v3364
        %v3366 = vsel %vm3344, %v2812, 0.0
        %v3367 = vadd.f32 %v3365, %v3366
        %v3368 = vsel %vm3344, %v2817, 0.0
        %v3369 = vadd.f32 %v3367, %v3368
        %v3370 = vsel %vm3344, %v2820, 0.0
        %v3371 = vadd.f32 %v3369, %v3370
        %v3372 = vsel %vm3344, %v2825, 0.0
        %v3373 = vadd.f32 %v3371, %v3372
        %v3374 = vsel %vm3344, %v2828, 0.0
        %v3375 = vadd.f32 %v3373, %v3374
        %v3376 = vsel %vm3344, %v2833, 0.0
        %v3377 = vadd.f32 %v3375, %v3376
        %v3378 = vsel %vm3344, %v2836, 0.0
        %v3379 = vadd.f32 %v3377, %v3378
        %v3380 = vsel %vm3344, %v2841, 0.0
        %v3381 = vadd.f32 %v3379, %v3380
        %v3382 = vsel %vm3344, %v2844, 0.0
        %v3383 = vadd.f32 %v3381, %v3382
        %v3384 = vsel %vm3344, %v2849, 0.0
        %v3385 = vadd.f32 %v3383, %v3384
        %v3386 = vsel %vm3344, %v2852, 0.0
        %v3387 = vadd.f32 %v3385, %v3386
        %v3388 = vsel %vm3344, %v2857, 0.0
        %v3389 = vadd.f32 %v3387, %v3388
        %v3390 = vsel %vm3344, %v2860, 0.0
        %v3391 = vadd.f32 %v3389, %v3390
        %v3392 = vsel %vm3344, %v2865, 0.0
        %v3393 = vadd.f32 %v3391, %v3392
        %v3394 = vsel %vm3344, %v2868, 0.0
        %v3395 = vadd.f32 %v3393, %v3394
        %v3396 = vsel %vm3344, %v2873, 0.0
        %v3397 = vadd.f32 %v3395, %v3396
        %v3398 = vsel %vm3344, %v2876, 0.0
        %v3399 = vadd.f32 %v3397, %v3398
        %v3400 = vsel %vm3344, %v2881, 0.0
        %v3401 = vadd.f32 %v3399, %v3400
        %v3402 = vsel %vm3344, %v2884, 0.0
        %v3403 = vadd.f32 %v3401, %v3402
        %v3404 = vsel %vm3344, %v2889, 0.0
        %v3405 = vadd.f32 %v3403, %v3404
        %v3406 = vsel %vm3344, %v2892, 0.0
        %v3407 = vadd.f32 %v3405, %v3406
        %v3408 = vsel %vm3344, %v2897, 0.0
        %v3409 = vadd.f32 %v3407, %v3408
        %v3410 = vsel %vm3344, %v2900, 0.0
        %v3411 = vadd.f32 %v3409, %v3410
        %v3412 = vsel %vm3344, %v2905, 0.0
        %v3413 = vadd.f32 %v3411, %v3412
        %v3414 = vsel %vm3344, %v2908, 0.0
        %v3415 = vadd.f32 %v3413, %v3414
        %v3416 = vsel %vm3344, %v2913, 0.0
        %v3417 = vadd.f32 %v3415, %v3416
        %v3418 = vsel %vm3344, %v2916, 0.0
        %v3419 = vadd.f32 %v3417, %v3418
        %v3420 = vsel %vm3344, %v2921, 0.0
        %v3421 = vadd.f32 %v3419, %v3420
        %v3422 = vsel %vm3344, %v2924, 0.0
        %v3423 = vadd.f32 %v3421, %v3422
        %v3424 = vsel %vm3344, %v2929, 0.0
        %v3425 = vadd.f32 %v3423, %v3424
        %v3426 = vsel %vm3344, %v2932, 0.0
        %v3427 = vadd.f32 %v3425, %v3426
        %v3428 = vsel %vm3344, %v2937, 0.0
        %v3429 = vadd.f32 %v3427, %v3428
        %v3430 = vsel %vm3344, %v2940, 0.0
        %v3431 = vadd.f32 %v3429, %v3430
        %v3432 = vsel %vm3344, %v2945, 0.0
        %v3433 = vadd.f32 %v3431, %v3432
        %v3434 = vsel %vm3344, %v2948, 0.0
        %v3435 = vadd.f32 %v3433, %v3434
        %v3436 = vsel %vm3344, %v2953, 0.0
        %v3437 = vadd.f32 %v3435, %v3436
        %v3438 = vsel %vm3344, %v2956, 0.0
        %v3439 = vadd.f32 %v3437, %v3438
        %v3440 = vsel %vm3344, %v2961, 0.0
        %v3441 = vadd.f32 %v3439, %v3440
        %v3442 = vsel %vm3344, %v2964, 0.0
        %v3443 = vadd.f32 %v3441, %v3442
        %v3444 = vsel %vm3344, %v2969, 0.0
        %v3445 = vadd.f32 %v3443, %v3444
        %v3446 = vsel %vm3344, %v2972, 0.0
        %v3447 = vadd.f32 %v3445, %v3446
        %v3448 = vsel %vm3344, %v2977, 0.0
        %v3449 = vadd.f32 %v3447, %v3448
        %v3450 = vsel %vm3344, %v2980, 0.0
        %v3451 = vadd.f32 %v3449, %v3450
        %v3452 = vsel %vm3344, %v2985, 0.0
        %v3453 = vadd.f32 %v3451, %v3452
        %v3454 = vsel %vm3344, %v2988, 0.0
        %v3455 = vadd.f32 %v3453, %v3454
        %v3456 = vsel %vm3344, %v2993, 0.0
        %v3457 = vadd.f32 %v3455, %v3456
        %v3458 = vsel %vm3344, %v2996, 0.0
        %v3459 = vadd.f32 %v3457, %v3458
        %v3460 = vsel %vm3344, %v3001, 0.0
        %v3461 = vadd.f32 %v3459, %v3460
        %v3462 = vsel %vm3344, %v3004, 0.0
        %v3463 = vadd.f32 %v3461, %v3462
        %v3464 = vsel %vm3344, %v3009, 0.0
        %v3465 = vadd.f32 %v3463, %v3464
        %v3466 = vsel %vm3344, %v3012, 0.0
        %v3467 = vadd.f32 %v3465, %v3466
        %v3468 = vsel %vm3344, %v3017, 0.0
        %v3469 = vadd.f32 %v3467, %v3468
        %v3470 = vsel %vm3344, %v3020, 0.0
        %v3471 = vadd.f32 %v3469, %v3470
        %v3472 = vrot.slane %v3471, 4
        %v3473 = vadd.f32 %v3471, %v3472
        %v3474 = vrot.slane %v3473, 2
        %v3475 = vadd.f32 %v3473, %v3474
        %v3476 = vrot.slane %v3475, 1
        %v3477 = vadd.f32 %v3475, %v3476
        %v3478 = vmul.f32 %v2769, %v2769
        %v3479 = vmul.f32 %v2772, %v2772
        %v3480 = vmul.f32 %v2777, %v2777
        %v3481 = vmul.f32 %v2780, %v2780
        %v3482 = vmul.f32 %v2785, %v2785
        %v3483 = vmul.f32 %v2788, %v2788
        %v3484 = vmul.f32 %v2793, %v2793
        %v3485 = vmul.f32 %v2796, %v2796
        %v3486 = vmul.f32 %v2801, %v2801
        %v3487 = vmul.f32 %v2804, %v2804
        %v3488 = vmul.f32 %v2809, %v2809
        %v3489 = vmul.f32 %v2812, %v2812
        %v3490 = vmul.f32 %v2817, %v2817
        %v3491 = vmul.f32 %v2820, %v2820
        %v3492 = vmul.f32 %v2825, %v2825
        %v3493 = vmul.f32 %v2828, %v2828
        %v3494 = vmul.f32 %v2833, %v2833
        %v3495 = vmul.f32 %v2836, %v2836
        %v3496 = vmul.f32 %v2841, %v2841
        %v3497 = vmul.f32 %v2844, %v2844
        %v3498 = vmul.f32 %v2849, %v2849
        %v3499 = vmul.f32 %v2852, %v2852
        %v3500 = vmul.f32 %v2857, %v2857
        %v3501 = vmul.f32 %v2860, %v2860
        %v3502 = vmul.f32 %v2865, %v2865
        %v3503 = vmul.f32 %v2868, %v2868
        %v3504 = vmul.f32 %v2873, %v2873
        %v3505 = vmul.f32 %v2876, %v2876
        %v3506 = vmul.f32 %v2881, %v2881
        %v3507 = vmul.f32 %v2884, %v2884
        %v3508 = vmul.f32 %v2889, %v2889
        %v3509 = vmul.f32 %v2892, %v2892
        %v3510 = vmul.f32 %v2897, %v2897
        %v3511 = vmul.f32 %v2900, %v2900
        %v3512 = vmul.f32 %v2905, %v2905
        %v3513 = vmul.f32 %v2908, %v2908
        %v3514 = vmul.f32 %v2913, %v2913
        %v3515 = vmul.f32 %v2916, %v2916
        %v3516 = vmul.f32 %v2921, %v2921
        %v3517 = vmul.f32 %v2924, %v2924
        %v3518 = vmul.f32 %v2929, %v2929
        %v3519 = vmul.f32 %v2932, %v2932
        %v3520 = vmul.f32 %v2937, %v2937
        %v3521 = vmul.f32 %v2940, %v2940
        %v3522 = vmul.f32 %v2945, %v2945
        %v3523 = vmul.f32 %v2948, %v2948
        %v3524 = vmul.f32 %v2953, %v2953
        %v3525 = vmul.f32 %v2956, %v2956
        %v3526 = vmul.f32 %v2961, %v2961
        %v3527 = vmul.f32 %v2964, %v2964
        %v3528 = vmul.f32 %v2969, %v2969
        %v3529 = vmul.f32 %v2972, %v2972
        %v3530 = vmul.f32 %v2977, %v2977
        %v3531 = vmul.f32 %v2980, %v2980
        %v3532 = vmul.f32 %v2985, %v2985
        %v3533 = vmul.f32 %v2988, %v2988
        %v3534 = vmul.f32 %v2993, %v2993
        %v3535 = vmul.f32 %v2996, %v2996
        %v3536 = vmul.f32 %v3001, %v3001
        %v3537 = vmul.f32 %v3004, %v3004
        %v3538 = vmul.f32 %v3009, %v3009
        %v3539 = vmul.f32 %v3012, %v3012
        %v3540 = vmul.f32 %v3017, %v3017
        %v3541 = vmul.f32 %v3020, %v3020
        %v3542 = vsel %vm3344, %v3478, 0.0
        %v3543 = vsel %vm3344, %v3479, 0.0
        %v3544 = vadd.f32 %v3542, %v3543
        %v3545 = vsel %vm3344, %v3480, 0.0
        %v3546 = vadd.f32 %v3544, %v3545
        %v3547 = vsel %vm3344, %v3481, 0.0
        %v3548 = vadd.f32 %v3546, %v3547
        %v3549 = vsel %vm3344, %v3482, 0.0
        %v3550 = vadd.f32 %v3548, %v3549
        %v3551 = vsel %vm3344, %v3483, 0.0
        %v3552 = vadd.f32 %v3550, %v3551
        %v3553 = vsel %vm3344, %v3484, 0.0
        %v3554 = vadd.f32 %v3552, %v3553
        %v3555 = vsel %vm3344, %v3485, 0.0
        %v3556 = vadd.f32 %v3554, %v3555
        %v3557 = vsel %vm3344, %v3486, 0.0
        %v3558 = vadd.f32 %v3556, %v3557
        %v3559 = vsel %vm3344, %v3487, 0.0
        %v3560 = vadd.f32 %v3558, %v3559
        %v3561 = vsel %vm3344, %v3488, 0.0
        %v3562 = vadd.f32 %v3560, %v3561
        %v3563 = vsel %vm3344, %v3489, 0.0
        %v3564 = vadd.f32 %v3562, %v3563
        %v3565 = vsel %vm3344, %v3490, 0.0
        %v3566 = vadd.f32 %v3564, %v3565
        %v3567 = vsel %vm3344, %v3491, 0.0
        %v3568 = vadd.f32 %v3566, %v3567
        %v3569 = vsel %vm3344, %v3492, 0.0
        %v3570 = vadd.f32 %v3568, %v3569
        %v3571 = vsel %vm3344, %v3493, 0.0
        %v3572 = vadd.f32 %v3570, %v3571
        %v3573 = vsel %vm3344, %v3494, 0.0
        %v3574 = vadd.f32 %v3572, %v3573
        %v3575 = vsel %vm3344, %v3495, 0.0
        %v3576 = vadd.f32 %v3574, %v3575
        %v3577 = vsel %vm3344, %v3496, 0.0
        %v3578 = vadd.f32 %v3576, %v3577
        %v3579 = vsel %vm3344, %v3497, 0.0
        %v3580 = vadd.f32 %v3578, %v3579
        %v3581 = vsel %vm3344, %v3498, 0.0
        %v3582 = vadd.f32 %v3580, %v3581
        %v3583 = vsel %vm3344, %v3499, 0.0
        %v3584 = vadd.f32 %v3582, %v3583
        %v3585 = vsel %vm3344, %v3500, 0.0
        %v3586 = vadd.f32 %v3584, %v3585
        %v3587 = vsel %vm3344, %v3501, 0.0
        %v3588 = vadd.f32 %v3586, %v3587
        %v3589 = vsel %vm3344, %v3502, 0.0
        %v3590 = vadd.f32 %v3588, %v3589
        %v3591 = vsel %vm3344, %v3503, 0.0
        %v3592 = vadd.f32 %v3590, %v3591
        %v3593 = vsel %vm3344, %v3504, 0.0
        %v3594 = vadd.f32 %v3592, %v3593
        %v3595 = vsel %vm3344, %v3505, 0.0
        %v3596 = vadd.f32 %v3594, %v3595
        %v3597 = vsel %vm3344, %v3506, 0.0
        %v3598 = vadd.f32 %v3596, %v3597
        %v3599 = vsel %vm3344, %v3507, 0.0
        %v3600 = vadd.f32 %v3598, %v3599
        %v3601 = vsel %vm3344, %v3508, 0.0
        %v3602 = vadd.f32 %v3600, %v3601
        %v3603 = vsel %vm3344, %v3509, 0.0
        %v3604 = vadd.f32 %v3602, %v3603
        %v3605 = vsel %vm3344, %v3510, 0.0
        %v3606 = vadd.f32 %v3604, %v3605
        %v3607 = vsel %vm3344, %v3511, 0.0
        %v3608 = vadd.f32 %v3606, %v3607
        %v3609 = vsel %vm3344, %v3512, 0.0
        %v3610 = vadd.f32 %v3608, %v3609
        %v3611 = vsel %vm3344, %v3513, 0.0
        %v3612 = vadd.f32 %v3610, %v3611
        %v3613 = vsel %vm3344, %v3514, 0.0
        %v3614 = vadd.f32 %v3612, %v3613
        %v3615 = vsel %vm3344, %v3515, 0.0
        %v3616 = vadd.f32 %v3614, %v3615
        %v3617 = vsel %vm3344, %v3516, 0.0
        %v3618 = vadd.f32 %v3616, %v3617
        %v3619 = vsel %vm3344, %v3517, 0.0
        %v3620 = vadd.f32 %v3618, %v3619
        %v3621 = vsel %vm3344, %v3518, 0.0
        %v3622 = vadd.f32 %v3620, %v3621
        %v3623 = vsel %vm3344, %v3519, 0.0
        %v3624 = vadd.f32 %v3622, %v3623
        %v3625 = vsel %vm3344, %v3520, 0.0
        %v3626 = vadd.f32 %v3624, %v3625
        %v3627 = vsel %vm3344, %v3521, 0.0
        %v3628 = vadd.f32 %v3626, %v3627
        %v3629 = vsel %vm3344, %v3522, 0.0
        %v3630 = vadd.f32 %v3628, %v3629
        %v3631 = vsel %vm3344, %v3523, 0.0
        %v3632 = vadd.f32 %v3630, %v3631
        %v3633 = vsel %vm3344, %v3524, 0.0
        %v3634 = vadd.f32 %v3632, %v3633
        %v3635 = vsel %vm3344, %v3525, 0.0
        %v3636 = vadd.f32 %v3634, %v3635
        %v3637 = vsel %vm3344, %v3526, 0.0
        %v3638 = vadd.f32 %v3636, %v3637
        %v3639 = vsel %vm3344, %v3527, 0.0
        %v3640 = vadd.f32 %v3638, %v3639
        %v3641 = vsel %vm3344, %v3528, 0.0
        %v3642 = vadd.f32 %v3640, %v3641
        %v3643 = vsel %vm3344, %v3529, 0.0
        %v3644 = vadd.f32 %v3642, %v3643
        %v3645 = vsel %vm3344, %v3530, 0.0
        %v3646 = vadd.f32 %v3644, %v3645
        %v3647 = vsel %vm3344, %v3531, 0.0
        %v3648 = vadd.f32 %v3646, %v3647
        %v3649 = vsel %vm3344, %v3532, 0.0
        %v3650 = vadd.f32 %v3648, %v3649
        %v3651 = vsel %vm3344, %v3533, 0.0
        %v3652 = vadd.f32 %v3650, %v3651
        %v3653 = vsel %vm3344, %v3534, 0.0
        %v3654 = vadd.f32 %v3652, %v3653
        %v3655 = vsel %vm3344, %v3535, 0.0
        %v3656 = vadd.f32 %v3654, %v3655
        %v3657 = vsel %vm3344, %v3536, 0.0
        %v3658 = vadd.f32 %v3656, %v3657
        %v3659 = vsel %vm3344, %v3537, 0.0
        %v3660 = vadd.f32 %v3658, %v3659
        %v3661 = vsel %vm3344, %v3538, 0.0
        %v3662 = vadd.f32 %v3660, %v3661
        %v3663 = vsel %vm3344, %v3539, 0.0
        %v3664 = vadd.f32 %v3662, %v3663
        %v3665 = vsel %vm3344, %v3540, 0.0
        %v3666 = vadd.f32 %v3664, %v3665
        %v3667 = vsel %vm3344, %v3541, 0.0
        %v3668 = vadd.f32 %v3666, %v3667
        %v3669 = vrot.slane %v3668, 4
        %v3670 = vadd.f32 %v3668, %v3669
        %v3671 = vrot.slane %v3670, 2
        %v3672 = vadd.f32 %v3670, %v3671
        %v3673 = vrot.slane %v3672, 1
        %v3674 = vadd.f32 %v3672, %v3673
        %vm3675 = vcmask 1040384
        %v3676 = vsel %vm3675, %v3477, %v3674
        %vm3677 = vcmask 254976
        %3678 = vst.msk [vmem:[%s735] sm:$0x3] %vm3677, %v3676
        %s3679 = sand.u32 %s148, 1
        %s3680 = sand.u32 %s148, 1
        %s3681 = smul.addr %s3680, 256
        %s3682 = scalar_lea.vmem [#allocation4], %s3681
        %s3683 = sand.u32 %s174, 1
        %s3684 = scalar_lea.sflag [#allocation6], %s3683
        %s3685 = sand.u32 %s174, 1
        %s3686 = smul.addr %s3685, 2
        %s3687 = scalar_lea.vmem [#allocation5], %s3686
        // Predicated region
        $region144: #{tpu_custom_call.1} parent=134 // pred_check
          %p3688 = pneg %p158
        $region145: #{tpu_custom_call.1} parent=134 // pred_check_branch
          %3690 = sbr.rel (%p3688) target = $region147
        $region146: #{tpu_custom_call.1} parent=134 // pred_region
          %s3691 = smul.u32 32, %s21
          %s3692 = smul.addr %s3691, 4
          %s3693 = scalar_lea.vmem %s5, %s3692
          // Predicated region
          $region148: #{tpu_custom_call.1} parent=146 // pred_check
            _
          $region149: #{tpu_custom_call.1} parent=146 // pred_check_branch
            %3695 = sbr.rel (0) target = $region151
          $region150: #{tpu_custom_call.1} parent=146 // pred_region
            // Predicated region
            $region152: #{tpu_custom_call.1} parent=150 // pred_check
              _
            $region153: #{tpu_custom_call.1} parent=150 // pred_check_branch
              %3697 = sbr.rel target = $region155
            $region154: #{tpu_custom_call.1} parent=150 // pred_region
              // Predicated region
              $region167: #{tpu_custom_call.1} parent=154 // pred_check
                _
              $region168: #{tpu_custom_call.1} parent=154 // pred_check_branch
                %3839 = sbr.rel (0) target = $region170
              $region169: #{tpu_custom_call.1} parent=154 // pred_region
                loop: start=0, step=1, limit=1
                $region171: #{tpu_custom_call.1} parent=169 // loop_pre_header
                  _
                $region172: #{tpu_custom_call.1} parent=169 // loop_header
                  %s3841 = sphi 0, %s3845
                  %p3842 = scmp.ge.s32.totalorder %s3841, 1
                  %s3846 = sphi %s3682, %s3682
                  %s3847 = sphi %s3693, %s3693
                $region173: #{tpu_custom_call.1} parent=169 // loop_header_branch
                  %3844 = sbr.rel (%p3842) target = $region177
                $region174: #{tpu_custom_call.1} parent=169 // loop_body
                  _
                $region175: #{tpu_custom_call.1} parent=169 // loop_footer
                  %s3845 = sadd.s32 1, %s3841
                $region176: #{tpu_custom_call.1} parent=169 // loop_footer_branch
                  %3840 = sbr.rel target = $region172
                $region177: #{tpu_custom_call.1} parent=169 // loop_exit
                  _
                %s3849 = ssub.s32 16, 1
                loop: start=0, step=1, limit=1
                $region178: #{tpu_custom_call.1} parent=169 // loop_pre_header
                  _
                $region179: #{tpu_custom_call.1} parent=169 // loop_header
                  %s3851 = sphi 0, %s3855
                  %p3852 = scmp.ge.s32.totalorder %s3851, 1
                  %s3856 = sphi %s3682, %s3682
                  %s3857 = sphi %s3693, %s3693
                $region180: #{tpu_custom_call.1} parent=169 // loop_header_branch
                  %3854 = sbr.rel (%p3852) target = $region184
                $region181: #{tpu_custom_call.1} parent=169 // loop_body
                  %v3858 = vld [vmem:[%s3856] sm:%s3849]
                  %3859 = vst [vmem:[%s3857] sm:%s3849] %v3858
                  %v3860 = vld [vmem:[%s3856 + $0x4] sm:%s3849]
                  %3861 = vst [vmem:[%s3857 + $0x4] sm:%s3849] %v3860
                  %v3862 = vld [vmem:[%s3856 + $0x8] sm:%s3849]
                  %3863 = vst [vmem:[%s3857 + $0x8] sm:%s3849] %v3862
                  %v3864 = vld [vmem:[%s3856 + $0xc] sm:%s3849]
                  %3865 = vst [vmem:[%s3857 + $0xc] sm:%s3849] %v3864
                  %v3866 = vld [vmem:[%s3856 + $0x10] sm:%s3849]
                  %3867 = vst [vmem:[%s3857 + $0x10] sm:%s3849] %v3866
                  %v3868 = vld [vmem:[%s3856 + $0x14] sm:%s3849]
                  %3869 = vst [vmem:[%s3857 + $0x14] sm:%s3849] %v3868
                  %v3870 = vld [vmem:[%s3856 + $0x18] sm:%s3849]
                  %3871 = vst [vmem:[%s3857 + $0x18] sm:%s3849] %v3870
                  %v3872 = vld [vmem:[%s3856 + $0x1c] sm:%s3849]
                  %3873 = vst [vmem:[%s3857 + $0x1c] sm:%s3849] %v3872
                  %v3874 = vld [vmem:[%s3856 + $0x20] sm:%s3849]
                  %3875 = vst [vmem:[%s3857 + $0x20] sm:%s3849] %v3874
                  %v3876 = vld [vmem:[%s3856 + $0x24] sm:%s3849]
                  %3877 = vst [vmem:[%s3857 + $0x24] sm:%s3849] %v3876
                  %v3878 = vld [vmem:[%s3856 + $0x28] sm:%s3849]
                  %3879 = vst [vmem:[%s3857 + $0x28] sm:%s3849] %v3878
                  %v3880 = vld [vmem:[%s3856 + $0x2c] sm:%s3849]
                  %3881 = vst [vmem:[%s3857 + $0x2c] sm:%s3849] %v3880
                  %v3882 = vld [vmem:[%s3856 + $0x30] sm:%s3849]
                  %3883 = vst [vmem:[%s3857 + $0x30] sm:%s3849] %v3882
                  %v3884 = vld [vmem:[%s3856 + $0x34] sm:%s3849]
                  %3885 = vst [vmem:[%s3857 + $0x34] sm:%s3849] %v3884
                  %v3886 = vld [vmem:[%s3856 + $0x38] sm:%s3849]
                  %3887 = vst [vmem:[%s3857 + $0x38] sm:%s3849] %v3886
                  %v3888 = vld [vmem:[%s3856 + $0x3c] sm:%s3849]
                  %3889 = vst [vmem:[%s3857 + $0x3c] sm:%s3849] %v3888
                  %v3890 = vld [vmem:[%s3856 + $0x40] sm:%s3849]
                  %3891 = vst [vmem:[%s3857 + $0x40] sm:%s3849] %v3890
                  %v3892 = vld [vmem:[%s3856 + $0x44] sm:%s3849]
                  %3893 = vst [vmem:[%s3857 + $0x44] sm:%s3849] %v3892
                  %v3894 = vld [vmem:[%s3856 + $0x48] sm:%s3849]
                  %3895 = vst [vmem:[%s3857 + $0x48] sm:%s3849] %v3894
                  %v3896 = vld [vmem:[%s3856 + $0x4c] sm:%s3849]
                  %3897 = vst [vmem:[%s3857 + $0x4c] sm:%s3849] %v3896
                  %v3898 = vld [vmem:[%s3856 + $0x50] sm:%s3849]
                  %3899 = vst [vmem:[%s3857 + $0x50] sm:%s3849] %v3898
                  %v3900 = vld [vmem:[%s3856 + $0x54] sm:%s3849]
                  %3901 = vst [vmem:[%s3857 + $0x54] sm:%s3849] %v3900
                  %v3902 = vld [vmem:[%s3856 + $0x58] sm:%s3849]
                  %3903 = vst [vmem:[%s3857 + $0x58] sm:%s3849] %v3902
                  %v3904 = vld [vmem:[%s3856 + $0x5c] sm:%s3849]
                  %3905 = vst [vmem:[%s3857 + $0x5c] sm:%s3849] %v3904
                  %v3906 = vld [vmem:[%s3856 + $0x60] sm:%s3849]
                  %3907 = vst [vmem:[%s3857 + $0x60] sm:%s3849] %v3906
                  %v3908 = vld [vmem:[%s3856 + $0x64] sm:%s3849]
                  %3909 = vst [vmem:[%s3857 + $0x64] sm:%s3849] %v3908
                  %v3910 = vld [vmem:[%s3856 + $0x68] sm:%s3849]
                  %3911 = vst [vmem:[%s3857 + $0x68] sm:%s3849] %v3910
                  %v3912 = vld [vmem:[%s3856 + $0x6c] sm:%s3849]
                  %3913 = vst [vmem:[%s3857 + $0x6c] sm:%s3849] %v3912
                  %v3914 = vld [vmem:[%s3856 + $0x70] sm:%s3849]
                  %3915 = vst [vmem:[%s3857 + $0x70] sm:%s3849] %v3914
                  %v3916 = vld [vmem:[%s3856 + $0x74] sm:%s3849]
                  %3917 = vst [vmem:[%s3857 + $0x74] sm:%s3849] %v3916
                  %v3918 = vld [vmem:[%s3856 + $0x78] sm:%s3849]
                  %3919 = vst [vmem:[%s3857 + $0x78] sm:%s3849] %v3918
                  %v3920 = vld [vmem:[%s3856 + $0x7c] sm:%s3849]
                  %3921 = vst [vmem:[%s3857 + $0x7c] sm:%s3849] %v3920
                  %v3922 = vld [vmem:[%s3856 + $0x80] sm:%s3849]
                  %3923 = vst [vmem:[%s3857 + $0x100] sm:%s3849] %v3922
                  %v3924 = vld [vmem:[%s3856 + $0x84] sm:%s3849]
                  %3925 = vst [vmem:[%s3857 + $0x104] sm:%s3849] %v3924
                  %v3926 = vld [vmem:[%s3856 + $0x88] sm:%s3849]
                  %3927 = vst [vmem:[%s3857 + $0x108] sm:%s3849] %v3926
                  %v3928 = vld [vmem:[%s3856 + $0x8c] sm:%s3849]
                  %3929 = vst [vmem:[%s3857 + $0x10c] sm:%s3849] %v3928
                  %v3930 = vld [vmem:[%s3856 + $0x90] sm:%s3849]
                  %3931 = vst [vmem:[%s3857 + $0x110] sm:%s3849] %v3930
                  %v3932 = vld [vmem:[%s3856 + $0x94] sm:%s3849]
                  %3933 = vst [vmem:[%s3857 + $0x114] sm:%s3849] %v3932
                  %v3934 = vld [vmem:[%s3856 + $0x98] sm:%s3849]
                  %3935 = vst [vmem:[%s3857 + $0x118] sm:%s3849] %v3934
                  %v3936 = vld [vmem:[%s3856 + $0x9c] sm:%s3849]
                  %3937 = vst [vmem:[%s3857 + $0x11c] sm:%s3849] %v3936
                  %v3938 = vld [vmem:[%s3856 + $0xa0] sm:%s3849]
                  %3939 = vst [vmem:[%s3857 + $0x120] sm:%s3849] %v3938
                  %v3940 = vld [vmem:[%s3856 + $0xa4] sm:%s3849]
                  %3941 = vst [vmem:[%s3857 + $0x124] sm:%s3849] %v3940
                  %v3942 = vld [vmem:[%s3856 + $0xa8] sm:%s3849]
                  %3943 = vst [vmem:[%s3857 + $0x128] sm:%s3849] %v3942
                  %v3944 = vld [vmem:[%s3856 + $0xac] sm:%s3849]
                  %3945 = vst [vmem:[%s3857 + $0x12c] sm:%s3849] %v3944
                  %v3946 = vld [vmem:[%s3856 + $0xb0] sm:%s3849]
                  %3947 = vst [vmem:[%s3857 + $0x130] sm:%s3849] %v3946
                  %v3948 = vld [vmem:[%s3856 + $0xb4] sm:%s3849]
                  %3949 = vst [vmem:[%s3857 + $0x134] sm:%s3849] %v3948
                  %v3950 = vld [vmem:[%s3856 + $0xb8] sm:%s3849]
                  %3951 = vst [vmem:[%s3857 + $0x138] sm:%s3849] %v3950
                  %v3952 = vld [vmem:[%s3856 + $0xbc] sm:%s3849]
                  %3953 = vst [vmem:[%s3857 + $0x13c] sm:%s3849] %v3952
                  %v3954 = vld [vmem:[%s3856 + $0xc0] sm:%s3849]
                  %3955 = vst [vmem:[%s3857 + $0x140] sm:%s3849] %v3954
                  %v3956 = vld [vmem:[%s3856 + $0xc4] sm:%s3849]
                  %3957 = vst [vmem:[%s3857 + $0x144] sm:%s3849] %v3956
                  %v3958 = vld [vmem:[%s3856 + $0xc8] sm:%s3849]
                  %3959 = vst [vmem:[%s3857 + $0x148] sm:%s3849] %v3958
                  %v3960 = vld [vmem:[%s3856 + $0xcc] sm:%s3849]
                  %3961 = vst [vmem:[%s3857 + $0x14c] sm:%s3849] %v3960
                  %v3962 = vld [vmem:[%s3856 + $0xd0] sm:%s3849]
                  %3963 = vst [vmem:[%s3857 + $0x150] sm:%s3849] %v3962
                  %v3964 = vld [vmem:[%s3856 + $0xd4] sm:%s3849]
                  %3965 = vst [vmem:[%s3857 + $0x154] sm:%s3849] %v3964
                  %v3966 = vld [vmem:[%s3856 + $0xd8] sm:%s3849]
                  %3967 = vst [vmem:[%s3857 + $0x158] sm:%s3849] %v3966
                  %v3968 = vld [vmem:[%s3856 + $0xdc] sm:%s3849]
                  %3969 = vst [vmem:[%s3857 + $0x15c] sm:%s3849] %v3968
                  %v3970 = vld [vmem:[%s3856 + $0xe0] sm:%s3849]
                  %3971 = vst [vmem:[%s3857 + $0x160] sm:%s3849] %v3970
                  %v3972 = vld [vmem:[%s3856 + $0xe4] sm:%s3849]
                  %3973 = vst [vmem:[%s3857 + $0x164] sm:%s3849] %v3972
                  %v3974 = vld [vmem:[%s3856 + $0xe8] sm:%s3849]
                  %3975 = vst [vmem:[%s3857 + $0x168] sm:%s3849] %v3974
                  %v3976 = vld [vmem:[%s3856 + $0xec] sm:%s3849]
                  %3977 = vst [vmem:[%s3857 + $0x16c] sm:%s3849] %v3976
                  %v3978 = vld [vmem:[%s3856 + $0xf0] sm:%s3849]
                  %3979 = vst [vmem:[%s3857 + $0x170] sm:%s3849] %v3978
                  %v3980 = vld [vmem:[%s3856 + $0xf4] sm:%s3849]
                  %3981 = vst [vmem:[%s3857 + $0x174] sm:%s3849] %v3980
                  %v3982 = vld [vmem:[%s3856 + $0xf8] sm:%s3849]
                  %3983 = vst [vmem:[%s3857 + $0x178] sm:%s3849] %v3982
                  %v3984 = vld [vmem:[%s3856 + $0xfc] sm:%s3849]
                  %3985 = vst [vmem:[%s3857 + $0x17c] sm:%s3849] %v3984
                $region182: #{tpu_custom_call.1} parent=169 // loop_footer
                  %s3855 = sadd.s32 1, %s3851
                $region183: #{tpu_custom_call.1} parent=169 // loop_footer_branch
                  %3850 = sbr.rel target = $region179
                $region184: #{tpu_custom_call.1} parent=169 // loop_exit
                  _
              $region170: #{tpu_custom_call.1} parent=154 // pred_fallthru
                _
            $region155: #{tpu_custom_call.1} parent=150 // pred_fallthru
              _
            // Predicated region
            $region156: #{tpu_custom_call.1} parent=150 // pred_check
              _
            $region157: #{tpu_custom_call.1} parent=150 // pred_check_branch
              %3699 = sbr.rel (0) target = $region159
            $region158: #{tpu_custom_call.1} parent=150 // pred_region
              %s3701 = ssub.s32 16, 1
              loop: start=0, step=1, limit=1
              $region160: #{tpu_custom_call.1} parent=158 // loop_pre_header
                _
              $region161: #{tpu_custom_call.1} parent=158 // loop_header
                %s3703 = sphi 0, %s3707
                %p3704 = scmp.ge.s32.totalorder %s3703, 1
                %s3708 = sphi %s3682, %s3682
                %s3709 = sphi %s3693, %s3693
              $region162: #{tpu_custom_call.1} parent=158 // loop_header_branch
                %3706 = sbr.rel (%p3704) target = $region166
              $region163: #{tpu_custom_call.1} parent=158 // loop_body
                %v3710 = vld [vmem:[%s3708] sm:%s3701]
                %3711 = vst [vmem:[%s3709] sm:%s3701] %v3710
                %v3712 = vld [vmem:[%s3708 + $0x4] sm:%s3701]
                %3713 = vst [vmem:[%s3709 + $0x4] sm:%s3701] %v3712
                %v3714 = vld [vmem:[%s3708 + $0x8] sm:%s3701]
                %3715 = vst [vmem:[%s3709 + $0x8] sm:%s3701] %v3714
                %v3716 = vld [vmem:[%s3708 + $0xc] sm:%s3701]
                %3717 = vst [vmem:[%s3709 + $0xc] sm:%s3701] %v3716
                %v3718 = vld [vmem:[%s3708 + $0x10] sm:%s3701]
                %3719 = vst [vmem:[%s3709 + $0x10] sm:%s3701] %v3718
                %v3720 = vld [vmem:[%s3708 + $0x14] sm:%s3701]
                %3721 = vst [vmem:[%s3709 + $0x14] sm:%s3701] %v3720
                %v3722 = vld [vmem:[%s3708 + $0x18] sm:%s3701]
                %3723 = vst [vmem:[%s3709 + $0x18] sm:%s3701] %v3722
                %v3724 = vld [vmem:[%s3708 + $0x1c] sm:%s3701]
                %3725 = vst [vmem:[%s3709 + $0x1c] sm:%s3701] %v3724
                %v3726 = vld [vmem:[%s3708 + $0x20] sm:%s3701]
                %3727 = vst [vmem:[%s3709 + $0x20] sm:%s3701] %v3726
                %v3728 = vld [vmem:[%s3708 + $0x24] sm:%s3701]
                %3729 = vst [vmem:[%s3709 + $0x24] sm:%s3701] %v3728
                %v3730 = vld [vmem:[%s3708 + $0x28] sm:%s3701]
                %3731 = vst [vmem:[%s3709 + $0x28] sm:%s3701] %v3730
                %v3732 = vld [vmem:[%s3708 + $0x2c] sm:%s3701]
                %3733 = vst [vmem:[%s3709 + $0x2c] sm:%s3701] %v3732
                %v3734 = vld [vmem:[%s3708 + $0x30] sm:%s3701]
                %3735 = vst [vmem:[%s3709 + $0x30] sm:%s3701] %v3734
                %v3736 = vld [vmem:[%s3708 + $0x34] sm:%s3701]
                %3737 = vst [vmem:[%s3709 + $0x34] sm:%s3701] %v3736
                %v3738 = vld [vmem:[%s3708 + $0x38] sm:%s3701]
                %3739 = vst [vmem:[%s3709 + $0x38] sm:%s3701] %v3738
                %v3740 = vld [vmem:[%s3708 + $0x3c] sm:%s3701]
                %3741 = vst [vmem:[%s3709 + $0x3c] sm:%s3701] %v3740
                %v3742 = vld [vmem:[%s3708 + $0x40] sm:%s3701]
                %3743 = vst [vmem:[%s3709 + $0x40] sm:%s3701] %v3742
                %v3744 = vld [vmem:[%s3708 + $0x44] sm:%s3701]
                %3745 = vst [vmem:[%s3709 + $0x44] sm:%s3701] %v3744
                %v3746 = vld [vmem:[%s3708 + $0x48] sm:%s3701]
                %3747 = vst [vmem:[%s3709 + $0x48] sm:%s3701] %v3746
                %v3748 = vld [vmem:[%s3708 + $0x4c] sm:%s3701]
                %3749 = vst [vmem:[%s3709 + $0x4c] sm:%s3701] %v3748
                %v3750 = vld [vmem:[%s3708 + $0x50] sm:%s3701]
                %3751 = vst [vmem:[%s3709 + $0x50] sm:%s3701] %v3750
                %v3752 = vld [vmem:[%s3708 + $0x54] sm:%s3701]
                %3753 = vst [vmem:[%s3709 + $0x54] sm:%s3701] %v3752
                %v3754 = vld [vmem:[%s3708 + $0x58] sm:%s3701]
                %3755 = vst [vmem:[%s3709 + $0x58] sm:%s3701] %v3754
                %v3756 = vld [vmem:[%s3708 + $0x5c] sm:%s3701]
                %3757 = vst [vmem:[%s3709 + $0x5c] sm:%s3701] %v3756
                %v3758 = vld [vmem:[%s3708 + $0x60] sm:%s3701]
                %3759 = vst [vmem:[%s3709 + $0x60] sm:%s3701] %v3758
                %v3760 = vld [vmem:[%s3708 + $0x64] sm:%s3701]
                %3761 = vst [vmem:[%s3709 + $0x64] sm:%s3701] %v3760
                %v3762 = vld [vmem:[%s3708 + $0x68] sm:%s3701]
                %3763 = vst [vmem:[%s3709 + $0x68] sm:%s3701] %v3762
                %v3764 = vld [vmem:[%s3708 + $0x6c] sm:%s3701]
                %3765 = vst [vmem:[%s3709 + $0x6c] sm:%s3701] %v3764
                %v3766 = vld [vmem:[%s3708 + $0x70] sm:%s3701]
                %3767 = vst [vmem:[%s3709 + $0x70] sm:%s3701] %v3766
                %v3768 = vld [vmem:[%s3708 + $0x74] sm:%s3701]
                %3769 = vst [vmem:[%s3709 + $0x74] sm:%s3701] %v3768
                %v3770 = vld [vmem:[%s3708 + $0x78] sm:%s3701]
                %3771 = vst [vmem:[%s3709 + $0x78] sm:%s3701] %v3770
                %v3772 = vld [vmem:[%s3708 + $0x7c] sm:%s3701]
                %3773 = vst [vmem:[%s3709 + $0x7c] sm:%s3701] %v3772
                %v3774 = vld [vmem:[%s3708 + $0x80] sm:%s3701]
                %3775 = vst [vmem:[%s3709 + $0x100] sm:%s3701] %v3774
                %v3776 = vld [vmem:[%s3708 + $0x84] sm:%s3701]
                %3777 = vst [vmem:[%s3709 + $0x104] sm:%s3701] %v3776
                %v3778 = vld [vmem:[%s3708 + $0x88] sm:%s3701]
                %3779 = vst [vmem:[%s3709 + $0x108] sm:%s3701] %v3778
                %v3780 = vld [vmem:[%s3708 + $0x8c] sm:%s3701]
                %3781 = vst [vmem:[%s3709 + $0x10c] sm:%s3701] %v3780
                %v3782 = vld [vmem:[%s3708 + $0x90] sm:%s3701]
                %3783 = vst [vmem:[%s3709 + $0x110] sm:%s3701] %v3782
                %v3784 = vld [vmem:[%s3708 + $0x94] sm:%s3701]
                %3785 = vst [vmem:[%s3709 + $0x114] sm:%s3701] %v3784
                %v3786 = vld [vmem:[%s3708 + $0x98] sm:%s3701]
                %3787 = vst [vmem:[%s3709 + $0x118] sm:%s3701] %v3786
                %v3788 = vld [vmem:[%s3708 + $0x9c] sm:%s3701]
                %3789 = vst [vmem:[%s3709 + $0x11c] sm:%s3701] %v3788
                %v3790 = vld [vmem:[%s3708 + $0xa0] sm:%s3701]
                %3791 = vst [vmem:[%s3709 + $0x120] sm:%s3701] %v3790
                %v3792 = vld [vmem:[%s3708 + $0xa4] sm:%s3701]
                %3793 = vst [vmem:[%s3709 + $0x124] sm:%s3701] %v3792
                %v3794 = vld [vmem:[%s3708 + $0xa8] sm:%s3701]
                %3795 = vst [vmem:[%s3709 + $0x128] sm:%s3701] %v3794
                %v3796 = vld [vmem:[%s3708 + $0xac] sm:%s3701]
                %3797 = vst [vmem:[%s3709 + $0x12c] sm:%s3701] %v3796
                %v3798 = vld [vmem:[%s3708 + $0xb0] sm:%s3701]
                %3799 = vst [vmem:[%s3709 + $0x130] sm:%s3701] %v3798
                %v3800 = vld [vmem:[%s3708 + $0xb4] sm:%s3701]
                %3801 = vst [vmem:[%s3709 + $0x134] sm:%s3701] %v3800
                %v3802 = vld [vmem:[%s3708 + $0xb8] sm:%s3701]
                %3803 = vst [vmem:[%s3709 + $0x138] sm:%s3701] %v3802
                %v3804 = vld [vmem:[%s3708 + $0xbc] sm:%s3701]
                %3805 = vst [vmem:[%s3709 + $0x13c] sm:%s3701] %v3804
                %v3806 = vld [vmem:[%s3708 + $0xc0] sm:%s3701]
                %3807 = vst [vmem:[%s3709 + $0x140] sm:%s3701] %v3806
                %v3808 = vld [vmem:[%s3708 + $0xc4] sm:%s3701]
                %3809 = vst [vmem:[%s3709 + $0x144] sm:%s3701] %v3808
                %v3810 = vld [vmem:[%s3708 + $0xc8] sm:%s3701]
                %3811 = vst [vmem:[%s3709 + $0x148] sm:%s3701] %v3810
                %v3812 = vld [vmem:[%s3708 + $0xcc] sm:%s3701]
                %3813 = vst [vmem:[%s3709 + $0x14c] sm:%s3701] %v3812
                %v3814 = vld [vmem:[%s3708 + $0xd0] sm:%s3701]
                %3815 = vst [vmem:[%s3709 + $0x150] sm:%s3701] %v3814
                %v3816 = vld [vmem:[%s3708 + $0xd4] sm:%s3701]
                %3817 = vst [vmem:[%s3709 + $0x154] sm:%s3701] %v3816
                %v3818 = vld [vmem:[%s3708 + $0xd8] sm:%s3701]
                %3819 = vst [vmem:[%s3709 + $0x158] sm:%s3701] %v3818
                %v3820 = vld [vmem:[%s3708 + $0xdc] sm:%s3701]
                %3821 = vst [vmem:[%s3709 + $0x15c] sm:%s3701] %v3820
                %v3822 = vld [vmem:[%s3708 + $0xe0] sm:%s3701]
                %3823 = vst [vmem:[%s3709 + $0x160] sm:%s3701] %v3822
                %v3824 = vld [vmem:[%s3708 + $0xe4] sm:%s3701]
                %3825 = vst [vmem:[%s3709 + $0x164] sm:%s3701] %v3824
                %v3826 = vld [vmem:[%s3708 + $0xe8] sm:%s3701]
                %3827 = vst [vmem:[%s3709 + $0x168] sm:%s3701] %v3826
                %v3828 = vld [vmem:[%s3708 + $0xec] sm:%s3701]
                %3829 = vst [vmem:[%s3709 + $0x16c] sm:%s3701] %v3828
                %v3830 = vld [vmem:[%s3708 + $0xf0] sm:%s3701]
                %3831 = vst [vmem:[%s3709 + $0x170] sm:%s3701] %v3830
                %v3832 = vld [vmem:[%s3708 + $0xf4] sm:%s3701]
                %3833 = vst [vmem:[%s3709 + $0x174] sm:%s3701] %v3832
                %v3834 = vld [vmem:[%s3708 + $0xf8] sm:%s3701]
                %3835 = vst [vmem:[%s3709 + $0x178] sm:%s3701] %v3834
                %v3836 = vld [vmem:[%s3708 + $0xfc] sm:%s3701]
                %3837 = vst [vmem:[%s3709 + $0x17c] sm:%s3701] %v3836
              $region164: #{tpu_custom_call.1} parent=158 // loop_footer
                %s3707 = sadd.s32 1, %s3703
              $region165: #{tpu_custom_call.1} parent=158 // loop_footer_branch
                %3702 = sbr.rel target = $region161
              $region166: #{tpu_custom_call.1} parent=158 // loop_exit
                _
            $region159: #{tpu_custom_call.1} parent=150 // pred_fallthru
              _
          $region151: #{tpu_custom_call.1} parent=146 // pred_fallthru
            _
          %3986 = vnop
        $region147: #{tpu_custom_call.1} parent=134 // pred_fallthru
          _
        // Predicated region
        $region185: #{tpu_custom_call.1} parent=134 // pred_check
          %p3987 = pneg %p184
        $region186: #{tpu_custom_call.1} parent=134 // pred_check_branch
          %3989 = sbr.rel (%p3987) target = $region188
        $region187: #{tpu_custom_call.1} parent=134 // pred_region
          %s3991 = ssub.s32 32, 32
          %3992 = vsyncadd %s3684, %s3991
          %s3993 = smul.addr %s21, 32
          %s3994 = scalar_lea.hbm %s6, %s3993
          %s3996 = sshll.u32 %s3687, 4
          %s3997 = int_to_ptr.vmem [resolvable:$true] %s3996
          %3999 = dma.vmem_to_hbm [thread:$0]  %s3997, 32, %s3994, %s3684
        $region188: #{tpu_custom_call.1} parent=134 // pred_fallthru
          _
      $region135: #{tpu_custom_call.1} parent=5 // pred_fallthru
        _
      %p4000 = scmp.le.s32.totalorder 2, %s16
      // Predicated region
      $region189: #{tpu_custom_call.1} parent=5 // pred_check
        %p4001 = pneg %p4000
      $region190: #{tpu_custom_call.1} parent=5 // pred_check_branch
        %4003 = sbr.rel (%p4001) target = $region192
      $region191: #{tpu_custom_call.1} parent=5 // pred_region
        %s4004 = ssub.s32 %s16, 2
        // Predicated region
        $region193: #{tpu_custom_call.1} parent=191 // pred_check
          %p4005 = pneg %p164
        $region194: #{tpu_custom_call.1} parent=191 // pred_check_branch
          %4007 = sbr.rel (%p4005) target = $region196
        $region195: #{tpu_custom_call.1} parent=191 // pred_region
          %s4008 = sand.u32 %s149, 1
          %s4009 = sand.u32 %s149, 1
          %s4010 = smul.addr %s4009, 256
          %s4011 = scalar_lea.vmem [#allocation4], %s4010
        $region196: #{tpu_custom_call.1} parent=191 // pred_fallthru
          _
        // Predicated region
        $region197: #{tpu_custom_call.1} parent=191 // pred_check
          %p4012 = pneg %p190
        $region198: #{tpu_custom_call.1} parent=191 // pred_check_branch
          %4014 = sbr.rel (%p4012) target = $region200
        $region199: #{tpu_custom_call.1} parent=191 // pred_region
          %s4015 = sand.u32 %s175, 1
          %s4016 = scalar_lea.sflag [#allocation6], %s4015
          %s4017 = sand.u32 %s175, 1
          %s4018 = smul.addr %s4017, 2
          %s4019 = scalar_lea.vmem [#allocation5], %s4018
          %4020 = dma.done %s4016, 32
        $region200: #{tpu_custom_call.1} parent=191 // pred_fallthru
          _
      $region192: #{tpu_custom_call.1} parent=5 // pred_fallthru
        _
    $region6: #{tpu_custom_call.1} parent=1 // loop_footer
      %s20 = sadd.s32 1, %s16
    $region7: #{tpu_custom_call.1} parent=1 // loop_footer_branch
      %15 = sbr.rel target = $region3
    $region8: #{tpu_custom_call.1} parent=1 // loop_exit
      _
    %4021 = vsyncpa [#allocation6], 1
    %s4022 = scalar_lea.sflag [#allocation6], 1
    %4023 = vsyncpa %s4022, 1

</llo_original>
